<compile_context>
chip_gen: v7x
topology: tpu7x:2x2x1
jax: 0.10.0
libtpu: 0.0.40
codegen_flags: <defaults>
</compile_context>

<pallas_src>
import functools

import jax
import jax.numpy as jnp
from jax import lax
from jax.experimental import pallas as pl
from jax.experimental.pallas import tpu as pltpu


def _bilstm_layer_kernel(g_ref, m_ref, whh_ref, y_ref, hfin_ref, h_scr, c_scr,
                         *, hidden, chunk, unroll):
    """Fused fwd+bwd LSTM recurrence over one time chunk.

    g_ref    (tc, B, 8D): precomputed input gates + bias, gate-major layout
                          [i_f,i_b,f_f,f_b,g_f,g_b,o_f,o_b]; the bwd half is stored
                          time-reversed so both directions read the same index s.
    m_ref    (tc, B, 2D): {0,1} float mask, halves = [fwd | bwd(time-reversed)].
    whh_ref  (2D, 8D)   : block-diagonal recurrent weights, same gate layout.
    y_ref    (tc, B, 2D): per-step hidden outputs (bwd half time-reversed).
    hfin_ref (B, 2D)    : final hidden state [h_fwd_final | h_bwd_final].
    h_scr/c_scr (B, 2D) : state carried across time chunks (grid iterations).
    """
    D2 = 2 * hidden

    @pl.when(pl.program_id(0) == 0)
    def _init():
        h_scr[...] = jnp.zeros_like(h_scr)
        c_scr[...] = jnp.zeros_like(c_scr)

    def step(s, carry):
        h = h_scr[...]
        c = c_scr[...]
        # Single MXU matmul per step serves both directions (block-diag W_hh);
        # input projection + bias already folded into g_ref.
        gates = g_ref[s] + jnp.dot(h, whh_ref[...],
                                   preferred_element_type=jnp.float32)  # (B, 8D)
        i_g = jax.nn.sigmoid(gates[:, 0:D2])
        f_g = jax.nn.sigmoid(gates[:, D2:2 * D2])
        g_g = jnp.tanh(gates[:, 2 * D2:3 * D2])
        o_g = jax.nn.sigmoid(gates[:, 3 * D2:4 * D2])
        c_new = f_g * c + i_g * g_g
        h_new = o_g * jnp.tanh(c_new)
        # Packed-sequence semantics: padded steps freeze h/c (vselect, not 3 VPU ops).
        keep = m_ref[s] > 0.5
        h_scr[...] = jnp.where(keep, h_new, h)
        c_scr[...] = jnp.where(keep, c_new, c)
        y_ref[s] = jnp.where(keep, h_new, 0.0)   # zero output at padded positions
        return carry

    lax.fori_loop(0, chunk, step, 0, unroll=unroll)
    # hfin block index is constant across the grid -> stays VMEM-resident; the
    # last grid step's write is what lands in HBM.
    hfin_ref[...] = h_scr[...]


def _pick_time_chunk(seq_len, target=64):
    tc = min(seq_len, target)
    while seq_len % tc:
        tc -= 1
    return tc


def bilstm_layer(inp_tm, mask2_tm, layer_params):
    """One fused bidirectional LSTM layer.

    inp_tm   (T, B, In) time-major input.
    mask2_tm (T, B, 2D) float mask, halves = [fwd | bwd(time-reversed)].
    Returns (out_tm (T, B, 2D) = [y_fwd | y_bwd] in true time order,
             h_avg  (B, D)     = (h_fwd_final + h_bwd_final) / 2).
    """
    w_ih_f, w_hh_f, b_f = layer_params['f']
    w_ih_b, w_hh_b, b_b = layer_params['b']
    T, B, _ = inp_tm.shape
    D = w_hh_f.shape[0]

    # ---- hoisted input projection: one batched matmul per direction (MXU-friendly)
    g_f = jnp.einsum('tbi,ig->tbg', inp_tm, w_ih_f) + b_f           # (T, B, 4D)
    g_b = jnp.einsum('tbi,ig->tbg', inp_tm[::-1], w_ih_b) + b_b     # (T, B, 4D), rev time
    # gate-major interleave -> (T, B, 8D): [i_f,i_b,f_f,f_b,g_f,g_b,o_f,o_b]
    g_all = jnp.stack([g_f.reshape(T, B, 4, D),
                       g_b.reshape(T, B, 4, D)], axis=3).reshape(T, B, 8 * D)

    # ---- block-diagonal recurrent weight (2D, 8D), same gate-major layout
    wf = w_hh_f.reshape(D, 4, D)
    wb = w_hh_b.reshape(D, 4, D)
    top = jnp.concatenate([wf, jnp.zeros_like(wf)], axis=-1)        # (D, 4, 2D)
    bot = jnp.concatenate([jnp.zeros_like(wb), wb], axis=-1)        # (D, 4, 2D)
    w_block = jnp.concatenate([top, bot], axis=0).reshape(2 * D, 8 * D)

    tc = _pick_time_chunk(T)
    unroll = True if tc <= 16 else 4
    kernel = functools.partial(_bilstm_layer_kernel,
                               hidden=D, chunk=tc, unroll=unroll)

    y, hfin = pl.pallas_call(
        kernel,
        out_shape=(jax.ShapeDtypeStruct((T, B, 2 * D), jnp.float32),
                   jax.ShapeDtypeStruct((B, 2 * D), jnp.float32)),
        grid_spec=pltpu.PrefetchScalarGridSpec(
            num_scalar_prefetch=0,
            grid=(T // tc,),
            in_specs=[pl.BlockSpec((tc, B, 8 * D), lambda t: (t, 0, 0)),
                      pl.BlockSpec((tc, B, 2 * D), lambda t: (t, 0, 0)),
                      pl.BlockSpec((2 * D, 8 * D), lambda t: (0, 0))],
            out_specs=(pl.BlockSpec((tc, B, 2 * D), lambda t: (t, 0, 0)),
                       pl.BlockSpec((B, 2 * D), lambda t: (0, 0))),
            scratch_shapes=[pltpu.VMEM((B, 2 * D), jnp.float32),
                            pltpu.VMEM((B, 2 * D), jnp.float32)]),
        compiler_params=pltpu.CompilerParams(
            dimension_semantics=("arbitrary",)),   # time chunks carry state
    )(g_all, mask2_tm, w_block)

    out_tm = jnp.concatenate([y[:, :, :D], jnp.flip(y[:, :, D:], axis=0)],
                             axis=-1)                               # (T, B, 2D)
    h_avg = (hfin[:, :D] + hfin[:, D:]) * 0.5
    return out_tm, h_avg


def init_params(key, input_dim, num_layers):
    """Deterministic synthetic weights matching nn.LSTM(input_dim, input_dim,
    num_layers, bidirectional=True) shapes (stored pre-transposed, biases summed,
    gate order i,f,g,o as in PyTorch)."""
    D = input_dim
    scale = 1.0 / float(D) ** 0.5
    params = []
    for layer in range(num_layers):
        in_dim = D if layer == 0 else 2 * D
        layer_p = {}
        for direction in ('f', 'b'):
            key, k1, k2, k3, k4 = jax.random.split(key, 5)
            w_ih = jax.random.uniform(k1, (in_dim, 4 * D), jnp.float32, -scale, scale)
            w_hh = jax.random.uniform(k2, (D, 4 * D), jnp.float32, -scale, scale)
            b_ih = jax.random.uniform(k3, (4 * D,), jnp.float32, -scale, scale)
            b_hh = jax.random.uniform(k4, (4 * D,), jnp.float32, -scale, scale)
            layer_p[direction] = (w_ih, w_hh, (b_ih + b_hh).reshape(1, 4 * D))
        params.append(layer_p)
    return params


def bilstm_sequence_to_vector(vector_sequence, sequence_mask, params):
    """vector_sequence: (B, T, D) f32, sequence_mask: (B, T) {0,1}.
    Returns dict matching the PyTorch module:
      combined_vector: (B, D)
      layer_representations: (num_layers, B, D)
    Note: all-padding rows yield a zero final state (same caveat as packed path).
    """
    mask_f = sequence_mask.astype(jnp.float32)
    x = vector_sequence * mask_f[:, :, None]
    inp = jnp.transpose(x, (1, 0, 2))                   # (T, B, D) time-major
    T, B, D = inp.shape
    m_tm = jnp.transpose(mask_f)[:, :, None]            # (T, B, 1)
    mask2 = jnp.concatenate([jnp.broadcast_to(m_tm, (T, B, D)),
                             jnp.broadcast_to(m_tm[::-1], (T, B, D))], axis=-1)

    lays = []
    for layer_p in params:
        inp, h_avg = bilstm_layer(inp, mask2, layer_p)  # fwd final==last real token,
        lays.append(h_avg)                              # bwd final==first token

    combined_vector = lays[-1]
    layer_representations = jnp.stack(lays, axis=0)
    return {'combined_vector': combined_vector,
            'layer_representations': layer_representations}


if __name__ == "__main__":
    key = jax.random.PRNGKey(0)
    B, T, D, NUM_LAYERS = 2, 8, 32, 2

    kx, kp = jax.random.split(key)
    vector_sequence = jax.random.normal(kx, (B, T, D), jnp.float32)
    lengths = jnp.array([T, 5])
    sequence_mask = (jnp.arange(T)[None, :] < lengths[:, None]).astype(jnp.float32)

    params = init_params(kp, D, NUM_LAYERS)

    fwd = jax.jit(bilstm_sequence_to_vector)
    out = fwd(vector_sequence, sequence_mask, params)
    jax.block_until_ready(out)

    assert out['combined_vector'].shape == (B, D)
    assert out['layer_representations'].shape == (NUM_LAYERS, B, D)
    assert bool(jnp.all(jnp.isfinite(out['combined_vector'])))
    assert bool(jnp.all(jnp.isfinite(out['layer_representations'])))
    print("KERNEL_OK")
</pallas_src>

<mosaic_0001>
module attributes {stable_mosaic.version = 11 : i64} {
  func.func @_bilstm_layer_kernel(%arg0: i32, %arg1: memref<8x2x256xf32, #tpu.memory_space<vmem>>, %arg2: memref<8x2x64xf32, #tpu.memory_space<vmem>>, %arg3: memref<64x256xf32, #tpu.memory_space<vmem>>, %arg4: memref<8x2x64xf32, #tpu.memory_space<vmem>>, %arg5: memref<2x64xf32, #tpu.memory_space<vmem>>, %arg6: memref<2x64xf32, #tpu.memory_space<vmem>>, %arg7: memref<2x64xf32, #tpu.memory_space<vmem>>) attributes {dimension_semantics = [#tpu.dimension_semantics<arbitrary>], iteration_bounds = array<i64: 1>, scalar_prefetch = 0 : i64, scratch_operands = 2 : i64, tpu.core_type = #tpu.core_type<tc>, window_params = [{transform_indices = @transform_0, window_bounds = array<i64: 8, 2, 256>}, {transform_indices = @transform_1, window_bounds = array<i64: 8, 2, 64>}, {pipeline_mode = #tpu.pipeline_mode<synchronous>, transform_indices = @transform_2, window_bounds = array<i64: 64, 256>}, {transform_indices = @transform_3, window_bounds = array<i64: 8, 2, 64>}, {pipeline_mode = #tpu.pipeline_mode<synchronous>, transform_indices = @transform_4, window_bounds = array<i64: 2, 64>}]} {
    %c0_i32 = arith.constant 0 : i32
    %0 = arith.cmpi eq, %arg0, %c0_i32 : i32
    %1 = arith.extui %0 : i1 to i32
    %c0_i32_0 = arith.constant 0 : i32
    %2 = arith.cmpi ne, %1, %c0_i32_0 : i32
    scf.if %2 {
      %cst_180 = arith.constant 0.000000e+00 : f32
      %389 = vector.broadcast %cst_180 : f32 to vector<2x64xf32>
      %c0_181 = arith.constant 0 : index
      %c0_182 = arith.constant 0 : index
      %390 = vector.load %arg6[%c0_181, %c0_182] : memref<2x64xf32, #tpu.memory_space<vmem>>, vector<2x64xf32>
      tpu.vector_store %arg6[%c0_181, %c0_182], %389 {strides = array<i32>} : memref<2x64xf32, #tpu.memory_space<vmem>>, vector<2x64xf32>,
      %cst_183 = arith.constant 0.000000e+00 : f32
      %391 = vector.broadcast %cst_183 : f32 to vector<2x64xf32>
      %c0_184 = arith.constant 0 : index
      %c0_185 = arith.constant 0 : index
      %392 = vector.load %arg7[%c0_184, %c0_185] : memref<2x64xf32, #tpu.memory_space<vmem>>, vector<2x64xf32>
      tpu.vector_store %arg7[%c0_184, %c0_185], %391 {strides = array<i32>} : memref<2x64xf32, #tpu.memory_space<vmem>>, vector<2x64xf32>,
    } else {
    }
    %c0_i32_1 = arith.constant 0 : i32
    %c0 = arith.constant 0 : index
    %c0_2 = arith.constant 0 : index
    %3 = vector.load %arg6[%c0, %c0_2] : memref<2x64xf32, #tpu.memory_space<vmem>>, vector<2x64xf32>
    %c0_3 = arith.constant 0 : index
    %c0_4 = arith.constant 0 : index
    %4 = vector.load %arg7[%c0_3, %c0_4] : memref<2x64xf32, #tpu.memory_space<vmem>>, vector<2x64xf32>
    %5 = arith.index_cast %c0_i32_1 : i32 to index
    %c0_5 = arith.constant 0 : index
    %c0_6 = arith.constant 0 : index
    %6 = vector.load %arg1[%5, %c0_5, %c0_6] : memref<8x2x256xf32, #tpu.memory_space<vmem>>, vector<1x2x256xf32>
    %7 = vector.shape_cast %6 : vector<1x2x256xf32> to vector<2x256xf32>
    %c0_7 = arith.constant 0 : index
    %c0_8 = arith.constant 0 : index
    %8 = vector.load %arg3[%c0_7, %c0_8] : memref<64x256xf32, #tpu.memory_space<vmem>>, vector<64x256xf32>
    %cst = arith.constant dense<0.000000e+00> : vector<2x256xf32>
    %9 = tpu.matmul %3, %8, %cst {dimension_numbers = #tpu.dot_dimension_numbers<[1], [0], [0], [1], [0, 0, 1, 1], [], []>} : vector<2x64xf32>, vector<64x256xf32>, vector<2x256xf32> -> vector<2x256xf32>
    %10 = arith.addf %7, %9 : vector<2x256xf32>
    %11 = vector.extract_strided_slice %10 {offsets = [0, 0], sizes = [2, 64], strides = [1, 1]} : vector<2x256xf32> to vector<2x64xf32>
    %12 = arith.negf %11 : vector<2x64xf32>
    %13 = math.exp %12 : vector<2x64xf32>
    %cst_9 = arith.constant 1.000000e+00 : f32
    %14 = vector.broadcast %cst_9 : f32 to vector<2x64xf32>
    %15 = arith.addf %14, %13 : vector<2x64xf32>
    %16 = arith.divf %14, %15 : vector<2x64xf32>
    %17 = vector.extract_strided_slice %10 {offsets = [0, 64], sizes = [2, 64], strides = [1, 1]} : vector<2x256xf32> to vector<2x64xf32>
    %18 = arith.negf %17 : vector<2x64xf32>
    %19 = math.exp %18 : vector<2x64xf32>
    %cst_10 = arith.constant 1.000000e+00 : f32
    %20 = vector.broadcast %cst_10 : f32 to vector<2x64xf32>
    %21 = arith.addf %20, %19 : vector<2x64xf32>
    %22 = arith.divf %20, %21 : vector<2x64xf32>
    %23 = vector.extract_strided_slice %10 {offsets = [0, 128], sizes = [2, 64], strides = [1, 1]} : vector<2x256xf32> to vector<2x64xf32>
    %24 = math.tanh %23 : vector<2x64xf32>
    %25 = vector.extract_strided_slice %10 {offsets = [0, 192], sizes = [2, 64], strides = [1, 1]} : vector<2x256xf32> to vector<2x64xf32>
    %26 = arith.negf %25 : vector<2x64xf32>
    %27 = math.exp %26 : vector<2x64xf32>
    %cst_11 = arith.constant 1.000000e+00 : f32
    %28 = vector.broadcast %cst_11 : f32 to vector<2x64xf32>
    %29 = arith.addf %28, %27 : vector<2x64xf32>
    %30 = arith.divf %28, %29 : vector<2x64xf32>
    %31 = arith.mulf %22, %4 : vector<2x64xf32>
    %32 = arith.mulf %16, %24 : vector<2x64xf32>
    %33 = arith.addf %31, %32 : vector<2x64xf32>
    %34 = math.tanh %33 : vector<2x64xf32>
    %35 = arith.mulf %30, %34 : vector<2x64xf32>
    %36 = arith.index_cast %c0_i32_1 : i32 to index
    %c0_12 = arith.constant 0 : index
    %c0_13 = arith.constant 0 : index
    %37 = vector.load %arg2[%36, %c0_12, %c0_13] : memref<8x2x64xf32, #tpu.memory_space<vmem>>, vector<1x2x64xf32>
    %38 = vector.shape_cast %37 : vector<1x2x64xf32> to vector<2x64xf32>
    %cst_14 = arith.constant 5.000000e-01 : f32
    %39 = vector.broadcast %cst_14 : f32 to vector<2x64xf32>
    %40 = arith.cmpf ogt, %38, %39 : vector<2x64xf32>
    %41 = arith.select %40, %35, %3 : vector<2x64xi1>, vector<2x64xf32>
    %c0_15 = arith.constant 0 : index
    %c0_16 = arith.constant 0 : index
    %42 = vector.load %arg6[%c0_15, %c0_16] : memref<2x64xf32, #tpu.memory_space<vmem>>, vector<2x64xf32>
    tpu.vector_store %arg6[%c0_15, %c0_16], %41 {strides = array<i32>} : memref<2x64xf32, #tpu.memory_space<vmem>>, vector<2x64xf32>,
    %43 = arith.select %40, %33, %4 : vector<2x64xi1>, vector<2x64xf32>
    %c0_17 = arith.constant 0 : index
    %c0_18 = arith.constant 0 : index
    %44 = vector.load %arg7[%c0_17, %c0_18] : memref<2x64xf32, #tpu.memory_space<vmem>>, vector<2x64xf32>
    tpu.vector_store %arg7[%c0_17, %c0_18], %43 {strides = array<i32>} : memref<2x64xf32, #tpu.memory_space<vmem>>, vector<2x64xf32>,
    %cst_19 = arith.constant 0.000000e+00 : f32
    %45 = vector.broadcast %cst_19 : f32 to vector<2x64xf32>
    %46 = arith.select %40, %35, %45 : vector<2x64xi1>, vector<2x64xf32>
    %47 = arith.index_cast %c0_i32_1 : i32 to index
    %c0_20 = arith.constant 0 : index
    %c0_21 = arith.constant 0 : index
    %48 = vector.load %arg4[%47, %c0_20, %c0_21] : memref<8x2x64xf32, #tpu.memory_space<vmem>>, vector<1x2x64xf32>
    %49 = vector.shape_cast %48 : vector<1x2x64xf32> to vector<2x64xf32>
    %50 = vector.shape_cast %46 : vector<2x64xf32> to vector<1x2x64xf32>
    tpu.vector_store %arg4[%47, %c0_20, %c0_21], %50 {strides = array<i32>} : memref<8x2x64xf32, #tpu.memory_space<vmem>>, vector<1x2x64xf32>,
    %c1_i32 = arith.constant 1 : i32
    %c0_22 = arith.constant 0 : index
    %c0_23 = arith.constant 0 : index
    %51 = vector.load %arg6[%c0_22, %c0_23] : memref<2x64xf32, #tpu.memory_space<vmem>>, vector<2x64xf32>
    %c0_24 = arith.constant 0 : index
    %c0_25 = arith.constant 0 : index
    %52 = vector.load %arg7[%c0_24, %c0_25] : memref<2x64xf32, #tpu.memory_space<vmem>>, vector<2x64xf32>
    %53 = arith.index_cast %c1_i32 : i32 to index
    %c0_26 = arith.constant 0 : index
    %c0_27 = arith.constant 0 : index
    %54 = vector.load %arg1[%53, %c0_26, %c0_27] : memref<8x2x256xf32, #tpu.memory_space<vmem>>, vector<1x2x256xf32>
    %55 = vector.shape_cast %54 : vector<1x2x256xf32> to vector<2x256xf32>
    %c0_28 = arith.constant 0 : index
    %c0_29 = arith.constant 0 : index
    %56 = vector.load %arg3[%c0_28, %c0_29] : memref<64x256xf32, #tpu.memory_space<vmem>>, vector<64x256xf32>
    %cst_30 = arith.constant dense<0.000000e+00> : vector<2x256xf32>
    %57 = tpu.matmul %51, %56, %cst_30 {dimension_numbers = #tpu.dot_dimension_numbers<[1], [0], [0], [1], [0, 0, 1, 1], [], []>} : vector<2x64xf32>, vector<64x256xf32>, vector<2x256xf32> -> vector<2x256xf32>
    %58 = arith.addf %55, %57 : vector<2x256xf32>
    %59 = vector.extract_strided_slice %58 {offsets = [0, 0], sizes = [2, 64], strides = [1, 1]} : vector<2x256xf32> to vector<2x64xf32>
    %60 = arith.negf %59 : vector<2x64xf32>
    %61 = math.exp %60 : vector<2x64xf32>
    %cst_31 = arith.constant 1.000000e+00 : f32
    %62 = vector.broadcast %cst_31 : f32 to vector<2x64xf32>
    %63 = arith.addf %62, %61 : vector<2x64xf32>
    %64 = arith.divf %62, %63 : vector<2x64xf32>
    %65 = vector.extract_strided_slice %58 {offsets = [0, 64], sizes = [2, 64], strides = [1, 1]} : vector<2x256xf32> to vector<2x64xf32>
    %66 = arith.negf %65 : vector<2x64xf32>
    %67 = math.exp %66 : vector<2x64xf32>
    %cst_32 = arith.constant 1.000000e+00 : f32
    %68 = vector.broadcast %cst_32 : f32 to vector<2x64xf32>
    %69 = arith.addf %68, %67 : vector<2x64xf32>
    %70 = arith.divf %68, %69 : vector<2x64xf32>
    %71 = vector.extract_strided_slice %58 {offsets = [0, 128], sizes = [2, 64], strides = [1, 1]} : vector<2x256xf32> to vector<2x64xf32>
    %72 = math.tanh %71 : vector<2x64xf32>
    %73 = vector.extract_strided_slice %58 {offsets = [0, 192], sizes = [2, 64], strides = [1, 1]} : vector<2x256xf32> to vector<2x64xf32>
    %74 = arith.negf %73 : vector<2x64xf32>
    %75 = math.exp %74 : vector<2x64xf32>
    %cst_33 = arith.constant 1.000000e+00 : f32
    %76 = vector.broadcast %cst_33 : f32 to vector<2x64xf32>
    %77 = arith.addf %76, %75 : vector<2x64xf32>
    %78 = arith.divf %76, %77 : vector<2x64xf32>
    %79 = arith.mulf %70, %52 : vector<2x64xf32>
    %80 = arith.mulf %64, %72 : vector<2x64xf32>
    %81 = arith.addf %79, %80 : vector<2x64xf32>
    %82 = math.tanh %81 : vector<2x64xf32>
    %83 = arith.mulf %78, %82 : vector<2x64xf32>
    %84 = arith.index_cast %c1_i32 : i32 to index
    %c0_34 = arith.constant 0 : index
    %c0_35 = arith.constant 0 : index
    %85 = vector.load %arg2[%84, %c0_34, %c0_35] : memref<8x2x64xf32, #tpu.memory_space<vmem>>, vector<1x2x64xf32>
    %86 = vector.shape_cast %85 : vector<1x2x64xf32> to vector<2x64xf32>
    %cst_36 = arith.constant 5.000000e-01 : f32
    %87 = vector.broadcast %cst_36 : f32 to vector<2x64xf32>
    %88 = arith.cmpf ogt, %86, %87 : vector<2x64xf32>
    %89 = arith.select %88, %83, %51 : vector<2x64xi1>, vector<2x64xf32>
    %c0_37 = arith.constant 0 : index
    %c0_38 = arith.constant 0 : index
    %90 = vector.load %arg6[%c0_37, %c0_38] : memref<2x64xf32, #tpu.memory_space<vmem>>, vector<2x64xf32>
    tpu.vector_store %arg6[%c0_37, %c0_38], %89 {strides = array<i32>} : memref<2x64xf32, #tpu.memory_space<vmem>>, vector<2x64xf32>,
    %91 = arith.select %88, %81, %52 : vector<2x64xi1>, vector<2x64xf32>
    %c0_39 = arith.constant 0 : index
    %c0_40 = arith.constant 0 : index
    %92 = vector.load %arg7[%c0_39, %c0_40] : memref<2x64xf32, #tpu.memory_space<vmem>>, vector<2x64xf32>
    tpu.vector_store %arg7[%c0_39, %c0_40], %91 {strides = array<i32>} : memref<2x64xf32, #tpu.memory_space<vmem>>, vector<2x64xf32>,
    %cst_41 = arith.constant 0.000000e+00 : f32
    %93 = vector.broadcast %cst_41 : f32 to vector<2x64xf32>
    %94 = arith.select %88, %83, %93 : vector<2x64xi1>, vector<2x64xf32>
    %95 = arith.index_cast %c1_i32 : i32 to index
    %c0_42 = arith.constant 0 : index
    %c0_43 = arith.constant 0 : index
    %96 = vector.load %arg4[%95, %c0_42, %c0_43] : memref<8x2x64xf32, #tpu.memory_space<vmem>>, vector<1x2x64xf32>
    %97 = vector.shape_cast %96 : vector<1x2x64xf32> to vector<2x64xf32>
    %98 = vector.shape_cast %94 : vector<2x64xf32> to vector<1x2x64xf32>
    tpu.vector_store %arg4[%95, %c0_42, %c0_43], %98 {strides = array<i32>} : memref<8x2x64xf32, #tpu.memory_space<vmem>>, vector<1x2x64xf32>,
    %c2_i32 = arith.constant 2 : i32
    %c0_44 = arith.constant 0 : index
    %c0_45 = arith.constant 0 : index
    %99 = vector.load %arg6[%c0_44, %c0_45] : memref<2x64xf32, #tpu.memory_space<vmem>>, vector<2x64xf32>
    %c0_46 = arith.constant 0 : index
    %c0_47 = arith.constant 0 : index
    %100 = vector.load %arg7[%c0_46, %c0_47] : memref<2x64xf32, #tpu.memory_space<vmem>>, vector<2x64xf32>
    %101 = arith.index_cast %c2_i32 : i32 to index
    %c0_48 = arith.constant 0 : index
    %c0_49 = arith.constant 0 : index
    %102 = vector.load %arg1[%101, %c0_48, %c0_49] : memref<8x2x256xf32, #tpu.memory_space<vmem>>, vector<1x2x256xf32>
    %103 = vector.shape_cast %102 : vector<1x2x256xf32> to vector<2x256xf32>
    %c0_50 = arith.constant 0 : index
    %c0_51 = arith.constant 0 : index
    %104 = vector.load %arg3[%c0_50, %c0_51] : memref<64x256xf32, #tpu.memory_space<vmem>>, vector<64x256xf32>
    %cst_52 = arith.constant dense<0.000000e+00> : vector<2x256xf32>
    %105 = tpu.matmul %99, %104, %cst_52 {dimension_numbers = #tpu.dot_dimension_numbers<[1], [0], [0], [1], [0, 0, 1, 1], [], []>} : vector<2x64xf32>, vector<64x256xf32>, vector<2x256xf32> -> vector<2x256xf32>
    %106 = arith.addf %103, %105 : vector<2x256xf32>
    %107 = vector.extract_strided_slice %106 {offsets = [0, 0], sizes = [2, 64], strides = [1, 1]} : vector<2x256xf32> to vector<2x64xf32>
    %108 = arith.negf %107 : vector<2x64xf32>
    %109 = math.exp %108 : vector<2x64xf32>
    %cst_53 = arith.constant 1.000000e+00 : f32
    %110 = vector.broadcast %cst_53 : f32 to vector<2x64xf32>
    %111 = arith.addf %110, %109 : vector<2x64xf32>
    %112 = arith.divf %110, %111 : vector<2x64xf32>
    %113 = vector.extract_strided_slice %106 {offsets = [0, 64], sizes = [2, 64], strides = [1, 1]} : vector<2x256xf32> to vector<2x64xf32>
    %114 = arith.negf %113 : vector<2x64xf32>
    %115 = math.exp %114 : vector<2x64xf32>
    %cst_54 = arith.constant 1.000000e+00 : f32
    %116 = vector.broadcast %cst_54 : f32 to vector<2x64xf32>
    %117 = arith.addf %116, %115 : vector<2x64xf32>
    %118 = arith.divf %116, %117 : vector<2x64xf32>
    %119 = vector.extract_strided_slice %106 {offsets = [0, 128], sizes = [2, 64], strides = [1, 1]} : vector<2x256xf32> to vector<2x64xf32>
    %120 = math.tanh %119 : vector<2x64xf32>
    %121 = vector.extract_strided_slice %106 {offsets = [0, 192], sizes = [2, 64], strides = [1, 1]} : vector<2x256xf32> to vector<2x64xf32>
    %122 = arith.negf %121 : vector<2x64xf32>
    %123 = math.exp %122 : vector<2x64xf32>
    %cst_55 = arith.constant 1.000000e+00 : f32
    %124 = vector.broadcast %cst_55 : f32 to vector<2x64xf32>
    %125 = arith.addf %124, %123 : vector<2x64xf32>
    %126 = arith.divf %124, %125 : vector<2x64xf32>
    %127 = arith.mulf %118, %100 : vector<2x64xf32>
    %128 = arith.mulf %112, %120 : vector<2x64xf32>
    %129 = arith.addf %127, %128 : vector<2x64xf32>
    %130 = math.tanh %129 : vector<2x64xf32>
    %131 = arith.mulf %126, %130 : vector<2x64xf32>
    %132 = arith.index_cast %c2_i32 : i32 to index
    %c0_56 = arith.constant 0 : index
    %c0_57 = arith.constant 0 : index
    %133 = vector.load %arg2[%132, %c0_56, %c0_57] : memref<8x2x64xf32, #tpu.memory_space<vmem>>, vector<1x2x64xf32>
    %134 = vector.shape_cast %133 : vector<1x2x64xf32> to vector<2x64xf32>
    %cst_58 = arith.constant 5.000000e-01 : f32
    %135 = vector.broadcast %cst_58 : f32 to vector<2x64xf32>
    %136 = arith.cmpf ogt, %134, %135 : vector<2x64xf32>
    %137 = arith.select %136, %131, %99 : vector<2x64xi1>, vector<2x64xf32>
    %c0_59 = arith.constant 0 : index
    %c0_60 = arith.constant 0 : index
    %138 = vector.load %arg6[%c0_59, %c0_60] : memref<2x64xf32, #tpu.memory_space<vmem>>, vector<2x64xf32>
    tpu.vector_store %arg6[%c0_59, %c0_60], %137 {strides = array<i32>} : memref<2x64xf32, #tpu.memory_space<vmem>>, vector<2x64xf32>,
    %139 = arith.select %136, %129, %100 : vector<2x64xi1>, vector<2x64xf32>
    %c0_61 = arith.constant 0 : index
    %c0_62 = arith.constant 0 : index
    %140 = vector.load %arg7[%c0_61, %c0_62] : memref<2x64xf32, #tpu.memory_space<vmem>>, vector<2x64xf32>
    tpu.vector_store %arg7[%c0_61, %c0_62], %139 {strides = array<i32>} : memref<2x64xf32, #tpu.memory_space<vmem>>, vector<2x64xf32>,
    %cst_63 = arith.constant 0.000000e+00 : f32
    %141 = vector.broadcast %cst_63 : f32 to vector<2x64xf32>
    %142 = arith.select %136, %131, %141 : vector<2x64xi1>, vector<2x64xf32>
    %143 = arith.index_cast %c2_i32 : i32 to index
    %c0_64 = arith.constant 0 : index
    %c0_65 = arith.constant 0 : index
    %144 = vector.load %arg4[%143, %c0_64, %c0_65] : memref<8x2x64xf32, #tpu.memory_space<vmem>>, vector<1x2x64xf32>
    %145 = vector.shape_cast %144 : vector<1x2x64xf32> to vector<2x64xf32>
    %146 = vector.shape_cast %142 : vector<2x64xf32> to vector<1x2x64xf32>
    tpu.vector_store %arg4[%143, %c0_64, %c0_65], %146 {strides = array<i32>} : memref<8x2x64xf32, #tpu.memory_space<vmem>>, vector<1x2x64xf32>,
    %c3_i32 = arith.constant 3 : i32
    %c0_66 = arith.constant 0 : index
    %c0_67 = arith.constant 0 : index
    %147 = vector.load %arg6[%c0_66, %c0_67] : memref<2x64xf32, #tpu.memory_space<vmem>>, vector<2x64xf32>
    %c0_68 = arith.constant 0 : index
    %c0_69 = arith.constant 0 : index
    %148 = vector.load %arg7[%c0_68, %c0_69] : memref<2x64xf32, #tpu.memory_space<vmem>>, vector<2x64xf32>
    %149 = arith.index_cast %c3_i32 : i32 to index
    %c0_70 = arith.constant 0 : index
    %c0_71 = arith.constant 0 : index
    %150 = vector.load %arg1[%149, %c0_70, %c0_71] : memref<8x2x256xf32, #tpu.memory_space<vmem>>, vector<1x2x256xf32>
    %151 = vector.shape_cast %150 : vector<1x2x256xf32> to vector<2x256xf32>
    %c0_72 = arith.constant 0 : index
    %c0_73 = arith.constant 0 : index
    %152 = vector.load %arg3[%c0_72, %c0_73] : memref<64x256xf32, #tpu.memory_space<vmem>>, vector<64x256xf32>
    %cst_74 = arith.constant dense<0.000000e+00> : vector<2x256xf32>
    %153 = tpu.matmul %147, %152, %cst_74 {dimension_numbers = #tpu.dot_dimension_numbers<[1], [0], [0], [1], [0, 0, 1, 1], [], []>} : vector<2x64xf32>, vector<64x256xf32>, vector<2x256xf32> -> vector<2x256xf32>
    %154 = arith.addf %151, %153 : vector<2x256xf32>
    %155 = vector.extract_strided_slice %154 {offsets = [0, 0], sizes = [2, 64], strides = [1, 1]} : vector<2x256xf32> to vector<2x64xf32>
    %156 = arith.negf %155 : vector<2x64xf32>
    %157 = math.exp %156 : vector<2x64xf32>
    %cst_75 = arith.constant 1.000000e+00 : f32
    %158 = vector.broadcast %cst_75 : f32 to vector<2x64xf32>
    %159 = arith.addf %158, %157 : vector<2x64xf32>
    %160 = arith.divf %158, %159 : vector<2x64xf32>
    %161 = vector.extract_strided_slice %154 {offsets = [0, 64], sizes = [2, 64], strides = [1, 1]} : vector<2x256xf32> to vector<2x64xf32>
    %162 = arith.negf %161 : vector<2x64xf32>
    %163 = math.exp %162 : vector<2x64xf32>
    %cst_76 = arith.constant 1.000000e+00 : f32
    %164 = vector.broadcast %cst_76 : f32 to vector<2x64xf32>
    %165 = arith.addf %164, %163 : vector<2x64xf32>
    %166 = arith.divf %164, %165 : vector<2x64xf32>
    %167 = vector.extract_strided_slice %154 {offsets = [0, 128], sizes = [2, 64], strides = [1, 1]} : vector<2x256xf32> to vector<2x64xf32>
    %168 = math.tanh %167 : vector<2x64xf32>
    %169 = vector.extract_strided_slice %154 {offsets = [0, 192], sizes = [2, 64], strides = [1, 1]} : vector<2x256xf32> to vector<2x64xf32>
    %170 = arith.negf %169 : vector<2x64xf32>
    %171 = math.exp %170 : vector<2x64xf32>
    %cst_77 = arith.constant 1.000000e+00 : f32
    %172 = vector.broadcast %cst_77 : f32 to vector<2x64xf32>
    %173 = arith.addf %172, %171 : vector<2x64xf32>
    %174 = arith.divf %172, %173 : vector<2x64xf32>
    %175 = arith.mulf %166, %148 : vector<2x64xf32>
    %176 = arith.mulf %160, %168 : vector<2x64xf32>
    %177 = arith.addf %175, %176 : vector<2x64xf32>
    %178 = math.tanh %177 : vector<2x64xf32>
    %179 = arith.mulf %174, %178 : vector<2x64xf32>
    %180 = arith.index_cast %c3_i32 : i32 to index
    %c0_78 = arith.constant 0 : index
    %c0_79 = arith.constant 0 : index
    %181 = vector.load %arg2[%180, %c0_78, %c0_79] : memref<8x2x64xf32, #tpu.memory_space<vmem>>, vector<1x2x64xf32>
    %182 = vector.shape_cast %181 : vector<1x2x64xf32> to vector<2x64xf32>
    %cst_80 = arith.constant 5.000000e-01 : f32
    %183 = vector.broadcast %cst_80 : f32 to vector<2x64xf32>
    %184 = arith.cmpf ogt, %182, %183 : vector<2x64xf32>
    %185 = arith.select %184, %179, %147 : vector<2x64xi1>, vector<2x64xf32>
    %c0_81 = arith.constant 0 : index
    %c0_82 = arith.constant 0 : index
    %186 = vector.load %arg6[%c0_81, %c0_82] : memref<2x64xf32, #tpu.memory_space<vmem>>, vector<2x64xf32>
    tpu.vector_store %arg6[%c0_81, %c0_82], %185 {strides = array<i32>} : memref<2x64xf32, #tpu.memory_space<vmem>>, vector<2x64xf32>,
    %187 = arith.select %184, %177, %148 : vector<2x64xi1>, vector<2x64xf32>
    %c0_83 = arith.constant 0 : index
    %c0_84 = arith.constant 0 : index
    %188 = vector.load %arg7[%c0_83, %c0_84] : memref<2x64xf32, #tpu.memory_space<vmem>>, vector<2x64xf32>
    tpu.vector_store %arg7[%c0_83, %c0_84], %187 {strides = array<i32>} : memref<2x64xf32, #tpu.memory_space<vmem>>, vector<2x64xf32>,
    %cst_85 = arith.constant 0.000000e+00 : f32
    %189 = vector.broadcast %cst_85 : f32 to vector<2x64xf32>
    %190 = arith.select %184, %179, %189 : vector<2x64xi1>, vector<2x64xf32>
    %191 = arith.index_cast %c3_i32 : i32 to index
    %c0_86 = arith.constant 0 : index
    %c0_87 = arith.constant 0 : index
    %192 = vector.load %arg4[%191, %c0_86, %c0_87] : memref<8x2x64xf32, #tpu.memory_space<vmem>>, vector<1x2x64xf32>
    %193 = vector.shape_cast %192 : vector<1x2x64xf32> to vector<2x64xf32>
    %194 = vector.shape_cast %190 : vector<2x64xf32> to vector<1x2x64xf32>
    tpu.vector_store %arg4[%191, %c0_86, %c0_87], %194 {strides = array<i32>} : memref<8x2x64xf32, #tpu.memory_space<vmem>>, vector<1x2x64xf32>,
    %c4_i32 = arith.constant 4 : i32
    %c0_88 = arith.constant 0 : index
    %c0_89 = arith.constant 0 : index
    %195 = vector.load %arg6[%c0_88, %c0_89] : memref<2x64xf32, #tpu.memory_space<vmem>>, vector<2x64xf32>
    %c0_90 = arith.constant 0 : index
    %c0_91 = arith.constant 0 : index
    %196 = vector.load %arg7[%c0_90, %c0_91] : memref<2x64xf32, #tpu.memory_space<vmem>>, vector<2x64xf32>
    %197 = arith.index_cast %c4_i32 : i32 to index
    %c0_92 = arith.constant 0 : index
    %c0_93 = arith.constant 0 : index
    %198 = vector.load %arg1[%197, %c0_92, %c0_93] : memref<8x2x256xf32, #tpu.memory_space<vmem>>, vector<1x2x256xf32>
    %199 = vector.shape_cast %198 : vector<1x2x256xf32> to vector<2x256xf32>
    %c0_94 = arith.constant 0 : index
    %c0_95 = arith.constant 0 : index
    %200 = vector.load %arg3[%c0_94, %c0_95] : memref<64x256xf32, #tpu.memory_space<vmem>>, vector<64x256xf32>
    %cst_96 = arith.constant dense<0.000000e+00> : vector<2x256xf32>
    %201 = tpu.matmul %195, %200, %cst_96 {dimension_numbers = #tpu.dot_dimension_numbers<[1], [0], [0], [1], [0, 0, 1, 1], [], []>} : vector<2x64xf32>, vector<64x256xf32>, vector<2x256xf32> -> vector<2x256xf32>
    %202 = arith.addf %199, %201 : vector<2x256xf32>
    %203 = vector.extract_strided_slice %202 {offsets = [0, 0], sizes = [2, 64], strides = [1, 1]} : vector<2x256xf32> to vector<2x64xf32>
    %204 = arith.negf %203 : vector<2x64xf32>
    %205 = math.exp %204 : vector<2x64xf32>
    %cst_97 = arith.constant 1.000000e+00 : f32
    %206 = vector.broadcast %cst_97 : f32 to vector<2x64xf32>
    %207 = arith.addf %206, %205 : vector<2x64xf32>
    %208 = arith.divf %206, %207 : vector<2x64xf32>
    %209 = vector.extract_strided_slice %202 {offsets = [0, 64], sizes = [2, 64], strides = [1, 1]} : vector<2x256xf32> to vector<2x64xf32>
    %210 = arith.negf %209 : vector<2x64xf32>
    %211 = math.exp %210 : vector<2x64xf32>
    %cst_98 = arith.constant 1.000000e+00 : f32
    %212 = vector.broadcast %cst_98 : f32 to vector<2x64xf32>
    %213 = arith.addf %212, %211 : vector<2x64xf32>
    %214 = arith.divf %212, %213 : vector<2x64xf32>
    %215 = vector.extract_strided_slice %202 {offsets = [0, 128], sizes = [2, 64], strides = [1, 1]} : vector<2x256xf32> to vector<2x64xf32>
    %216 = math.tanh %215 : vector<2x64xf32>
    %217 = vector.extract_strided_slice %202 {offsets = [0, 192], sizes = [2, 64], strides = [1, 1]} : vector<2x256xf32> to vector<2x64xf32>
    %218 = arith.negf %217 : vector<2x64xf32>
    %219 = math.exp %218 : vector<2x64xf32>
    %cst_99 = arith.constant 1.000000e+00 : f32
    %220 = vector.broadcast %cst_99 : f32 to vector<2x64xf32>
    %221 = arith.addf %220, %219 : vector<2x64xf32>
    %222 = arith.divf %220, %221 : vector<2x64xf32>
    %223 = arith.mulf %214, %196 : vector<2x64xf32>
    %224 = arith.mulf %208, %216 : vector<2x64xf32>
    %225 = arith.addf %223, %224 : vector<2x64xf32>
    %226 = math.tanh %225 : vector<2x64xf32>
    %227 = arith.mulf %222, %226 : vector<2x64xf32>
    %228 = arith.index_cast %c4_i32 : i32 to index
    %c0_100 = arith.constant 0 : index
    %c0_101 = arith.constant 0 : index
    %229 = vector.load %arg2[%228, %c0_100, %c0_101] : memref<8x2x64xf32, #tpu.memory_space<vmem>>, vector<1x2x64xf32>
    %230 = vector.shape_cast %229 : vector<1x2x64xf32> to vector<2x64xf32>
    %cst_102 = arith.constant 5.000000e-01 : f32
    %231 = vector.broadcast %cst_102 : f32 to vector<2x64xf32>
    %232 = arith.cmpf ogt, %230, %231 : vector<2x64xf32>
    %233 = arith.select %232, %227, %195 : vector<2x64xi1>, vector<2x64xf32>
    %c0_103 = arith.constant 0 : index
    %c0_104 = arith.constant 0 : index
    %234 = vector.load %arg6[%c0_103, %c0_104] : memref<2x64xf32, #tpu.memory_space<vmem>>, vector<2x64xf32>
    tpu.vector_store %arg6[%c0_103, %c0_104], %233 {strides = array<i32>} : memref<2x64xf32, #tpu.memory_space<vmem>>, vector<2x64xf32>,
    %235 = arith.select %232, %225, %196 : vector<2x64xi1>, vector<2x64xf32>
    %c0_105 = arith.constant 0 : index
    %c0_106 = arith.constant 0 : index
    %236 = vector.load %arg7[%c0_105, %c0_106] : memref<2x64xf32, #tpu.memory_space<vmem>>, vector<2x64xf32>
    tpu.vector_store %arg7[%c0_105, %c0_106], %235 {strides = array<i32>} : memref<2x64xf32, #tpu.memory_space<vmem>>, vector<2x64xf32>,
    %cst_107 = arith.constant 0.000000e+00 : f32
    %237 = vector.broadcast %cst_107 : f32 to vector<2x64xf32>
    %238 = arith.select %232, %227, %237 : vector<2x64xi1>, vector<2x64xf32>
    %239 = arith.index_cast %c4_i32 : i32 to index
    %c0_108 = arith.constant 0 : index
    %c0_109 = arith.constant 0 : index
    %240 = vector.load %arg4[%239, %c0_108, %c0_109] : memref<8x2x64xf32, #tpu.memory_space<vmem>>, vector<1x2x64xf32>
    %241 = vector.shape_cast %240 : vector<1x2x64xf32> to vector<2x64xf32>
    %242 = vector.shape_cast %238 : vector<2x64xf32> to vector<1x2x64xf32>
    tpu.vector_store %arg4[%239, %c0_108, %c0_109], %242 {strides = array<i32>} : memref<8x2x64xf32, #tpu.memory_space<vmem>>, vector<1x2x64xf32>,
    %c5_i32 = arith.constant 5 : i32
    %c0_110 = arith.constant 0 : index
    %c0_111 = arith.constant 0 : index
    %243 = vector.load %arg6[%c0_110, %c0_111] : memref<2x64xf32, #tpu.memory_space<vmem>>, vector<2x64xf32>
    %c0_112 = arith.constant 0 : index
    %c0_113 = arith.constant 0 : index
    %244 = vector.load %arg7[%c0_112, %c0_113] : memref<2x64xf32, #tpu.memory_space<vmem>>, vector<2x64xf32>
    %245 = arith.index_cast %c5_i32 : i32 to index
    %c0_114 = arith.constant 0 : index
    %c0_115 = arith.constant 0 : index
    %246 = vector.load %arg1[%245, %c0_114, %c0_115] : memref<8x2x256xf32, #tpu.memory_space<vmem>>, vector<1x2x256xf32>
    %247 = vector.shape_cast %246 : vector<1x2x256xf32> to vector<2x256xf32>
    %c0_116 = arith.constant 0 : index
    %c0_117 = arith.constant 0 : index
    %248 = vector.load %arg3[%c0_116, %c0_117] : memref<64x256xf32, #tpu.memory_space<vmem>>, vector<64x256xf32>
    %cst_118 = arith.constant dense<0.000000e+00> : vector<2x256xf32>
    %249 = tpu.matmul %243, %248, %cst_118 {dimension_numbers = #tpu.dot_dimension_numbers<[1], [0], [0], [1], [0, 0, 1, 1], [], []>} : vector<2x64xf32>, vector<64x256xf32>, vector<2x256xf32> -> vector<2x256xf32>
    %250 = arith.addf %247, %249 : vector<2x256xf32>
    %251 = vector.extract_strided_slice %250 {offsets = [0, 0], sizes = [2, 64], strides = [1, 1]} : vector<2x256xf32> to vector<2x64xf32>
    %252 = arith.negf %251 : vector<2x64xf32>
    %253 = math.exp %252 : vector<2x64xf32>
    %cst_119 = arith.constant 1.000000e+00 : f32
    %254 = vector.broadcast %cst_119 : f32 to vector<2x64xf32>
    %255 = arith.addf %254, %253 : vector<2x64xf32>
    %256 = arith.divf %254, %255 : vector<2x64xf32>
    %257 = vector.extract_strided_slice %250 {offsets = [0, 64], sizes = [2, 64], strides = [1, 1]} : vector<2x256xf32> to vector<2x64xf32>
    %258 = arith.negf %257 : vector<2x64xf32>
    %259 = math.exp %258 : vector<2x64xf32>
    %cst_120 = arith.constant 1.000000e+00 : f32
    %260 = vector.broadcast %cst_120 : f32 to vector<2x64xf32>
    %261 = arith.addf %260, %259 : vector<2x64xf32>
    %262 = arith.divf %260, %261 : vector<2x64xf32>
    %263 = vector.extract_strided_slice %250 {offsets = [0, 128], sizes = [2, 64], strides = [1, 1]} : vector<2x256xf32> to vector<2x64xf32>
    %264 = math.tanh %263 : vector<2x64xf32>
    %265 = vector.extract_strided_slice %250 {offsets = [0, 192], sizes = [2, 64], strides = [1, 1]} : vector<2x256xf32> to vector<2x64xf32>
    %266 = arith.negf %265 : vector<2x64xf32>
    %267 = math.exp %266 : vector<2x64xf32>
    %cst_121 = arith.constant 1.000000e+00 : f32
    %268 = vector.broadcast %cst_121 : f32 to vector<2x64xf32>
    %269 = arith.addf %268, %267 : vector<2x64xf32>
    %270 = arith.divf %268, %269 : vector<2x64xf32>
    %271 = arith.mulf %262, %244 : vector<2x64xf32>
    %272 = arith.mulf %256, %264 : vector<2x64xf32>
    %273 = arith.addf %271, %272 : vector<2x64xf32>
    %274 = math.tanh %273 : vector<2x64xf32>
    %275 = arith.mulf %270, %274 : vector<2x64xf32>
    %276 = arith.index_cast %c5_i32 : i32 to index
    %c0_122 = arith.constant 0 : index
    %c0_123 = arith.constant 0 : index
    %277 = vector.load %arg2[%276, %c0_122, %c0_123] : memref<8x2x64xf32, #tpu.memory_space<vmem>>, vector<1x2x64xf32>
    %278 = vector.shape_cast %277 : vector<1x2x64xf32> to vector<2x64xf32>
    %cst_124 = arith.constant 5.000000e-01 : f32
    %279 = vector.broadcast %cst_124 : f32 to vector<2x64xf32>
    %280 = arith.cmpf ogt, %278, %279 : vector<2x64xf32>
    %281 = arith.select %280, %275, %243 : vector<2x64xi1>, vector<2x64xf32>
    %c0_125 = arith.constant 0 : index
    %c0_126 = arith.constant 0 : index
    %282 = vector.load %arg6[%c0_125, %c0_126] : memref<2x64xf32, #tpu.memory_space<vmem>>, vector<2x64xf32>
    tpu.vector_store %arg6[%c0_125, %c0_126], %281 {strides = array<i32>} : memref<2x64xf32, #tpu.memory_space<vmem>>, vector<2x64xf32>,
    %283 = arith.select %280, %273, %244 : vector<2x64xi1>, vector<2x64xf32>
    %c0_127 = arith.constant 0 : index
    %c0_128 = arith.constant 0 : index
    %284 = vector.load %arg7[%c0_127, %c0_128] : memref<2x64xf32, #tpu.memory_space<vmem>>, vector<2x64xf32>
    tpu.vector_store %arg7[%c0_127, %c0_128], %283 {strides = array<i32>} : memref<2x64xf32, #tpu.memory_space<vmem>>, vector<2x64xf32>,
    %cst_129 = arith.constant 0.000000e+00 : f32
    %285 = vector.broadcast %cst_129 : f32 to vector<2x64xf32>
    %286 = arith.select %280, %275, %285 : vector<2x64xi1>, vector<2x64xf32>
    %287 = arith.index_cast %c5_i32 : i32 to index
    %c0_130 = arith.constant 0 : index
    %c0_131 = arith.constant 0 : index
    %288 = vector.load %arg4[%287, %c0_130, %c0_131] : memref<8x2x64xf32, #tpu.memory_space<vmem>>, vector<1x2x64xf32>
    %289 = vector.shape_cast %288 : vector<1x2x64xf32> to vector<2x64xf32>
    %290 = vector.shape_cast %286 : vector<2x64xf32> to vector<1x2x64xf32>
    tpu.vector_store %arg4[%287, %c0_130, %c0_131], %290 {strides = array<i32>} : memref<8x2x64xf32, #tpu.memory_space<vmem>>, vector<1x2x64xf32>,
    %c6_i32 = arith.constant 6 : i32
    %c0_132 = arith.constant 0 : index
    %c0_133 = arith.constant 0 : index
    %291 = vector.load %arg6[%c0_132, %c0_133] : memref<2x64xf32, #tpu.memory_space<vmem>>, vector<2x64xf32>
    %c0_134 = arith.constant 0 : index
    %c0_135 = arith.constant 0 : index
    %292 = vector.load %arg7[%c0_134, %c0_135] : memref<2x64xf32, #tpu.memory_space<vmem>>, vector<2x64xf32>
    %293 = arith.index_cast %c6_i32 : i32 to index
    %c0_136 = arith.constant 0 : index
    %c0_137 = arith.constant 0 : index
    %294 = vector.load %arg1[%293, %c0_136, %c0_137] : memref<8x2x256xf32, #tpu.memory_space<vmem>>, vector<1x2x256xf32>
    %295 = vector.shape_cast %294 : vector<1x2x256xf32> to vector<2x256xf32>
    %c0_138 = arith.constant 0 : index
    %c0_139 = arith.constant 0 : index
    %296 = vector.load %arg3[%c0_138, %c0_139] : memref<64x256xf32, #tpu.memory_space<vmem>>, vector<64x256xf32>
    %cst_140 = arith.constant dense<0.000000e+00> : vector<2x256xf32>
    %297 = tpu.matmul %291, %296, %cst_140 {dimension_numbers = #tpu.dot_dimension_numbers<[1], [0], [0], [1], [0, 0, 1, 1], [], []>} : vector<2x64xf32>, vector<64x256xf32>, vector<2x256xf32> -> vector<2x256xf32>
    %298 = arith.addf %295, %297 : vector<2x256xf32>
    %299 = vector.extract_strided_slice %298 {offsets = [0, 0], sizes = [2, 64], strides = [1, 1]} : vector<2x256xf32> to vector<2x64xf32>
    %300 = arith.negf %299 : vector<2x64xf32>
    %301 = math.exp %300 : vector<2x64xf32>
    %cst_141 = arith.constant 1.000000e+00 : f32
    %302 = vector.broadcast %cst_141 : f32 to vector<2x64xf32>
    %303 = arith.addf %302, %301 : vector<2x64xf32>
    %304 = arith.divf %302, %303 : vector<2x64xf32>
    %305 = vector.extract_strided_slice %298 {offsets = [0, 64], sizes = [2, 64], strides = [1, 1]} : vector<2x256xf32> to vector<2x64xf32>
    %306 = arith.negf %305 : vector<2x64xf32>
    %307 = math.exp %306 : vector<2x64xf32>
    %cst_142 = arith.constant 1.000000e+00 : f32
    %308 = vector.broadcast %cst_142 : f32 to vector<2x64xf32>
    %309 = arith.addf %308, %307 : vector<2x64xf32>
    %310 = arith.divf %308, %309 : vector<2x64xf32>
    %311 = vector.extract_strided_slice %298 {offsets = [0, 128], sizes = [2, 64], strides = [1, 1]} : vector<2x256xf32> to vector<2x64xf32>
    %312 = math.tanh %311 : vector<2x64xf32>
    %313 = vector.extract_strided_slice %298 {offsets = [0, 192], sizes = [2, 64], strides = [1, 1]} : vector<2x256xf32> to vector<2x64xf32>
    %314 = arith.negf %313 : vector<2x64xf32>
    %315 = math.exp %314 : vector<2x64xf32>
    %cst_143 = arith.constant 1.000000e+00 : f32
    %316 = vector.broadcast %cst_143 : f32 to vector<2x64xf32>
    %317 = arith.addf %316, %315 : vector<2x64xf32>
    %318 = arith.divf %316, %317 : vector<2x64xf32>
    %319 = arith.mulf %310, %292 : vector<2x64xf32>
    %320 = arith.mulf %304, %312 : vector<2x64xf32>
    %321 = arith.addf %319, %320 : vector<2x64xf32>
    %322 = math.tanh %321 : vector<2x64xf32>
    %323 = arith.mulf %318, %322 : vector<2x64xf32>
    %324 = arith.index_cast %c6_i32 : i32 to index
    %c0_144 = arith.constant 0 : index
    %c0_145 = arith.constant 0 : index
    %325 = vector.load %arg2[%324, %c0_144, %c0_145] : memref<8x2x64xf32, #tpu.memory_space<vmem>>, vector<1x2x64xf32>
    %326 = vector.shape_cast %325 : vector<1x2x64xf32> to vector<2x64xf32>
    %cst_146 = arith.constant 5.000000e-01 : f32
    %327 = vector.broadcast %cst_146 : f32 to vector<2x64xf32>
    %328 = arith.cmpf ogt, %326, %327 : vector<2x64xf32>
    %329 = arith.select %328, %323, %291 : vector<2x64xi1>, vector<2x64xf32>
    %c0_147 = arith.constant 0 : index
    %c0_148 = arith.constant 0 : index
    %330 = vector.load %arg6[%c0_147, %c0_148] : memref<2x64xf32, #tpu.memory_space<vmem>>, vector<2x64xf32>
    tpu.vector_store %arg6[%c0_147, %c0_148], %329 {strides = array<i32>} : memref<2x64xf32, #tpu.memory_space<vmem>>, vector<2x64xf32>,
    %331 = arith.select %328, %321, %292 : vector<2x64xi1>, vector<2x64xf32>
    %c0_149 = arith.constant 0 : index
    %c0_150 = arith.constant 0 : index
    %332 = vector.load %arg7[%c0_149, %c0_150] : memref<2x64xf32, #tpu.memory_space<vmem>>, vector<2x64xf32>
    tpu.vector_store %arg7[%c0_149, %c0_150], %331 {strides = array<i32>} : memref<2x64xf32, #tpu.memory_space<vmem>>, vector<2x64xf32>,
    %cst_151 = arith.constant 0.000000e+00 : f32
    %333 = vector.broadcast %cst_151 : f32 to vector<2x64xf32>
    %334 = arith.select %328, %323, %333 : vector<2x64xi1>, vector<2x64xf32>
    %335 = arith.index_cast %c6_i32 : i32 to index
    %c0_152 = arith.constant 0 : index
    %c0_153 = arith.constant 0 : index
    %336 = vector.load %arg4[%335, %c0_152, %c0_153] : memref<8x2x64xf32, #tpu.memory_space<vmem>>, vector<1x2x64xf32>
    %337 = vector.shape_cast %336 : vector<1x2x64xf32> to vector<2x64xf32>
    %338 = vector.shape_cast %334 : vector<2x64xf32> to vector<1x2x64xf32>
    tpu.vector_store %arg4[%335, %c0_152, %c0_153], %338 {strides = array<i32>} : memref<8x2x64xf32, #tpu.memory_space<vmem>>, vector<1x2x64xf32>,
    %c7_i32 = arith.constant 7 : i32
    %c0_154 = arith.constant 0 : index
    %c0_155 = arith.constant 0 : index
    %339 = vector.load %arg6[%c0_154, %c0_155] : memref<2x64xf32, #tpu.memory_space<vmem>>, vector<2x64xf32>
    %c0_156 = arith.constant 0 : index
    %c0_157 = arith.constant 0 : index
    %340 = vector.load %arg7[%c0_156, %c0_157] : memref<2x64xf32, #tpu.memory_space<vmem>>, vector<2x64xf32>
    %341 = arith.index_cast %c7_i32 : i32 to index
    %c0_158 = arith.constant 0 : index
    %c0_159 = arith.constant 0 : index
    %342 = vector.load %arg1[%341, %c0_158, %c0_159] : memref<8x2x256xf32, #tpu.memory_space<vmem>>, vector<1x2x256xf32>
    %343 = vector.shape_cast %342 : vector<1x2x256xf32> to vector<2x256xf32>
    %c0_160 = arith.constant 0 : index
    %c0_161 = arith.constant 0 : index
    %344 = vector.load %arg3[%c0_160, %c0_161] : memref<64x256xf32, #tpu.memory_space<vmem>>, vector<64x256xf32>
    %cst_162 = arith.constant dense<0.000000e+00> : vector<2x256xf32>
    %345 = tpu.matmul %339, %344, %cst_162 {dimension_numbers = #tpu.dot_dimension_numbers<[1], [0], [0], [1], [0, 0, 1, 1], [], []>} : vector<2x64xf32>, vector<64x256xf32>, vector<2x256xf32> -> vector<2x256xf32>
    %346 = arith.addf %343, %345 : vector<2x256xf32>
    %347 = vector.extract_strided_slice %346 {offsets = [0, 0], sizes = [2, 64], strides = [1, 1]} : vector<2x256xf32> to vector<2x64xf32>
    %348 = arith.negf %347 : vector<2x64xf32>
    %349 = math.exp %348 : vector<2x64xf32>
    %cst_163 = arith.constant 1.000000e+00 : f32
    %350 = vector.broadcast %cst_163 : f32 to vector<2x64xf32>
    %351 = arith.addf %350, %349 : vector<2x64xf32>
    %352 = arith.divf %350, %351 : vector<2x64xf32>
    %353 = vector.extract_strided_slice %346 {offsets = [0, 64], sizes = [2, 64], strides = [1, 1]} : vector<2x256xf32> to vector<2x64xf32>
    %354 = arith.negf %353 : vector<2x64xf32>
    %355 = math.exp %354 : vector<2x64xf32>
    %cst_164 = arith.constant 1.000000e+00 : f32
    %356 = vector.broadcast %cst_164 : f32 to vector<2x64xf32>
    %357 = arith.addf %356, %355 : vector<2x64xf32>
    %358 = arith.divf %356, %357 : vector<2x64xf32>
    %359 = vector.extract_strided_slice %346 {offsets = [0, 128], sizes = [2, 64], strides = [1, 1]} : vector<2x256xf32> to vector<2x64xf32>
    %360 = math.tanh %359 : vector<2x64xf32>
    %361 = vector.extract_strided_slice %346 {offsets = [0, 192], sizes = [2, 64], strides = [1, 1]} : vector<2x256xf32> to vector<2x64xf32>
    %362 = arith.negf %361 : vector<2x64xf32>
    %363 = math.exp %362 : vector<2x64xf32>
    %cst_165 = arith.constant 1.000000e+00 : f32
    %364 = vector.broadcast %cst_165 : f32 to vector<2x64xf32>
    %365 = arith.addf %364, %363 : vector<2x64xf32>
    %366 = arith.divf %364, %365 : vector<2x64xf32>
    %367 = arith.mulf %358, %340 : vector<2x64xf32>
    %368 = arith.mulf %352, %360 : vector<2x64xf32>
    %369 = arith.addf %367, %368 : vector<2x64xf32>
    %370 = math.tanh %369 : vector<2x64xf32>
    %371 = arith.mulf %366, %370 : vector<2x64xf32>
    %372 = arith.index_cast %c7_i32 : i32 to index
    %c0_166 = arith.constant 0 : index
    %c0_167 = arith.constant 0 : index
    %373 = vector.load %arg2[%372, %c0_166, %c0_167] : memref<8x2x64xf32, #tpu.memory_space<vmem>>, vector<1x2x64xf32>
    %374 = vector.shape_cast %373 : vector<1x2x64xf32> to vector<2x64xf32>
    %cst_168 = arith.constant 5.000000e-01 : f32
    %375 = vector.broadcast %cst_168 : f32 to vector<2x64xf32>
    %376 = arith.cmpf ogt, %374, %375 : vector<2x64xf32>
    %377 = arith.select %376, %371, %339 : vector<2x64xi1>, vector<2x64xf32>
    %c0_169 = arith.constant 0 : index
    %c0_170 = arith.constant 0 : index
    %378 = vector.load %arg6[%c0_169, %c0_170] : memref<2x64xf32, #tpu.memory_space<vmem>>, vector<2x64xf32>
    tpu.vector_store %arg6[%c0_169, %c0_170], %377 {strides = array<i32>} : memref<2x64xf32, #tpu.memory_space<vmem>>, vector<2x64xf32>,
    %379 = arith.select %376, %369, %340 : vector<2x64xi1>, vector<2x64xf32>
    %c0_171 = arith.constant 0 : index
    %c0_172 = arith.constant 0 : index
    %380 = vector.load %arg7[%c0_171, %c0_172] : memref<2x64xf32, #tpu.memory_space<vmem>>, vector<2x64xf32>
    tpu.vector_store %arg7[%c0_171, %c0_172], %379 {strides = array<i32>} : memref<2x64xf32, #tpu.memory_space<vmem>>, vector<2x64xf32>,
    %cst_173 = arith.constant 0.000000e+00 : f32
    %381 = vector.broadcast %cst_173 : f32 to vector<2x64xf32>
    %382 = arith.select %376, %371, %381 : vector<2x64xi1>, vector<2x64xf32>
    %383 = arith.index_cast %c7_i32 : i32 to index
    %c0_174 = arith.constant 0 : index
    %c0_175 = arith.constant 0 : index
    %384 = vector.load %arg4[%383, %c0_174, %c0_175] : memref<8x2x64xf32, #tpu.memory_space<vmem>>, vector<1x2x64xf32>
    %385 = vector.shape_cast %384 : vector<1x2x64xf32> to vector<2x64xf32>
    %386 = vector.shape_cast %382 : vector<2x64xf32> to vector<1x2x64xf32>
    tpu.vector_store %arg4[%383, %c0_174, %c0_175], %386 {strides = array<i32>} : memref<8x2x64xf32, #tpu.memory_space<vmem>>, vector<1x2x64xf32>,
    %c8_i32 = arith.constant 8 : i32
    %c0_176 = arith.constant 0 : index
    %c0_177 = arith.constant 0 : index
    %387 = vector.load %arg6[%c0_176, %c0_177] : memref<2x64xf32, #tpu.memory_space<vmem>>, vector<2x64xf32>
    %c0_178 = arith.constant 0 : index
    %c0_179 = arith.constant 0 : index
    %388 = vector.load %arg5[%c0_178, %c0_179] : memref<2x64xf32, #tpu.memory_space<vmem>>, vector<2x64xf32>
    tpu.vector_store %arg5[%c0_178, %c0_179], %387 {strides = array<i32>} : memref<2x64xf32, #tpu.memory_space<vmem>>, vector<2x64xf32>,
    return
  }
  func.func @transform_0(%arg0: i32) -> (i32, i32, i32) {
    %c0_i32 = arith.constant 0 : i32
    %c0_i32_0 = arith.constant 0 : i32
    %c0_i32_1 = arith.constant 0 : i32
    return %arg0, %c0_i32, %c0_i32_0 : i32, i32, i32
  }
  func.func @transform_1(%arg0: i32) -> (i32, i32, i32) {
    %c0_i32 = arith.constant 0 : i32
    %c0_i32_0 = arith.constant 0 : i32
    %c0_i32_1 = arith.constant 0 : i32
    return %arg0, %c0_i32, %c0_i32_0 : i32, i32, i32
  }
  func.func @transform_2(%arg0: i32) -> (i32, i32) {
    %c0_i32 = arith.constant 0 : i32
    %c0_i32_0 = arith.constant 0 : i32
    %c0_i32_1 = arith.constant 0 : i32
    return %c0_i32, %c0_i32_0 : i32, i32
  }
  func.func @transform_3(%arg0: i32) -> (i32, i32, i32) {
    %c0_i32 = arith.constant 0 : i32
    %c0_i32_0 = arith.constant 0 : i32
    %c0_i32_1 = arith.constant 0 : i32
    return %arg0, %c0_i32, %c0_i32_0 : i32, i32, i32
  }
  func.func @transform_4(%arg0: i32) -> (i32, i32) {
    %c0_i32 = arith.constant 0 : i32
    %c0_i32_0 = arith.constant 0 : i32
    %c0_i32_1 = arith.constant 0 : i32
    return %c0_i32, %c0_i32_0 : i32, i32
  }
}

module attributes {stable_mosaic.version = 11 : i64} {
  func.func @_bilstm_layer_kernel(%arg0: i32, %arg1: memref<8x2x256xf32, #tpu.memory_space<vmem>>, %arg2: memref<8x2x64xf32, #tpu.memory_space<vmem>>, %arg3: memref<64x256xf32, #tpu.memory_space<vmem>>, %arg4: memref<8x2x64xf32, #tpu.memory_space<vmem>>, %arg5: memref<2x64xf32, #tpu.memory_space<vmem>>, %arg6: memref<2x64xf32, #tpu.memory_space<vmem>>, %arg7: memref<2x64xf32, #tpu.memory_space<vmem>>) attributes {dimension_semantics = [#tpu.dimension_semantics<arbitrary>], iteration_bounds = array<i64: 1>, scalar_prefetch = 0 : i64, scratch_operands = 2 : i64, tpu.core_type = #tpu.core_type<tc>, window_params = [{transform_indices = @transform_0, window_bounds = array<i64: 8, 2, 256>}, {transform_indices = @transform_1, window_bounds = array<i64: 8, 2, 64>}, {pipeline_mode = #tpu.pipeline_mode<synchronous>, transform_indices = @transform_2, window_bounds = array<i64: 64, 256>}, {transform_indices = @transform_3, window_bounds = array<i64: 8, 2, 64>}, {pipeline_mode = #tpu.pipeline_mode<synchronous>, transform_indices = @transform_4, window_bounds = array<i64: 2, 64>}]} {
    %c0_i32 = arith.constant 0 : i32
    %0 = arith.cmpi eq, %arg0, %c0_i32 : i32
    %1 = arith.extui %0 : i1 to i32
    %c0_i32_0 = arith.constant 0 : i32
    %2 = arith.cmpi ne, %1, %c0_i32_0 : i32
    scf.if %2 {
      %cst_180 = arith.constant 0.000000e+00 : f32
      %389 = vector.broadcast %cst_180 : f32 to vector<2x64xf32>
      %c0_181 = arith.constant 0 : index
      %c0_182 = arith.constant 0 : index
      %390 = vector.load %arg6[%c0_181, %c0_182] : memref<2x64xf32, #tpu.memory_space<vmem>>, vector<2x64xf32>
      tpu.vector_store %arg6[%c0_181, %c0_182], %389 {strides = array<i32>} : memref<2x64xf32, #tpu.memory_space<vmem>>, vector<2x64xf32>,
      %cst_183 = arith.constant 0.000000e+00 : f32
      %391 = vector.broadcast %cst_183 : f32 to vector<2x64xf32>
      %c0_184 = arith.constant 0 : index
      %c0_185 = arith.constant 0 : index
      %392 = vector.load %arg7[%c0_184, %c0_185] : memref<2x64xf32, #tpu.memory_space<vmem>>, vector<2x64xf32>
      tpu.vector_store %arg7[%c0_184, %c0_185], %391 {strides = array<i32>} : memref<2x64xf32, #tpu.memory_space<vmem>>, vector<2x64xf32>,
    } else {
    }
    %c0_i32_1 = arith.constant 0 : i32
    %c0 = arith.constant 0 : index
    %c0_2 = arith.constant 0 : index
    %3 = vector.load %arg6[%c0, %c0_2] : memref<2x64xf32, #tpu.memory_space<vmem>>, vector<2x64xf32>
    %c0_3 = arith.constant 0 : index
    %c0_4 = arith.constant 0 : index
    %4 = vector.load %arg7[%c0_3, %c0_4] : memref<2x64xf32, #tpu.memory_space<vmem>>, vector<2x64xf32>
    %5 = arith.index_cast %c0_i32_1 : i32 to index
    %c0_5 = arith.constant 0 : index
    %c0_6 = arith.constant 0 : index
    %6 = vector.load %arg1[%5, %c0_5, %c0_6] : memref<8x2x256xf32, #tpu.memory_space<vmem>>, vector<1x2x256xf32>
    %7 = vector.shape_cast %6 : vector<1x2x256xf32> to vector<2x256xf32>
    %c0_7 = arith.constant 0 : index
    %c0_8 = arith.constant 0 : index
    %8 = vector.load %arg3[%c0_7, %c0_8] : memref<64x256xf32, #tpu.memory_space<vmem>>, vector<64x256xf32>
    %cst = arith.constant dense<0.000000e+00> : vector<2x256xf32>
    %9 = tpu.matmul %3, %8, %cst {dimension_numbers = #tpu.dot_dimension_numbers<[1], [0], [0], [1], [0, 0, 1, 1], [], []>} : vector<2x64xf32>, vector<64x256xf32>, vector<2x256xf32> -> vector<2x256xf32>
    %10 = arith.addf %7, %9 : vector<2x256xf32>
    %11 = vector.extract_strided_slice %10 {offsets = [0, 0], sizes = [2, 64], strides = [1, 1]} : vector<2x256xf32> to vector<2x64xf32>
    %12 = arith.negf %11 : vector<2x64xf32>
    %13 = math.exp %12 : vector<2x64xf32>
    %cst_9 = arith.constant 1.000000e+00 : f32
    %14 = vector.broadcast %cst_9 : f32 to vector<2x64xf32>
    %15 = arith.addf %14, %13 : vector<2x64xf32>
    %16 = arith.divf %14, %15 : vector<2x64xf32>
    %17 = vector.extract_strided_slice %10 {offsets = [0, 64], sizes = [2, 64], strides = [1, 1]} : vector<2x256xf32> to vector<2x64xf32>
    %18 = arith.negf %17 : vector<2x64xf32>
    %19 = math.exp %18 : vector<2x64xf32>
    %cst_10 = arith.constant 1.000000e+00 : f32
    %20 = vector.broadcast %cst_10 : f32 to vector<2x64xf32>
    %21 = arith.addf %20, %19 : vector<2x64xf32>
    %22 = arith.divf %20, %21 : vector<2x64xf32>
    %23 = vector.extract_strided_slice %10 {offsets = [0, 128], sizes = [2, 64], strides = [1, 1]} : vector<2x256xf32> to vector<2x64xf32>
    %24 = math.tanh %23 : vector<2x64xf32>
    %25 = vector.extract_strided_slice %10 {offsets = [0, 192], sizes = [2, 64], strides = [1, 1]} : vector<2x256xf32> to vector<2x64xf32>
    %26 = arith.negf %25 : vector<2x64xf32>
    %27 = math.exp %26 : vector<2x64xf32>
    %cst_11 = arith.constant 1.000000e+00 : f32
    %28 = vector.broadcast %cst_11 : f32 to vector<2x64xf32>
    %29 = arith.addf %28, %27 : vector<2x64xf32>
    %30 = arith.divf %28, %29 : vector<2x64xf32>
    %31 = arith.mulf %22, %4 : vector<2x64xf32>
    %32 = arith.mulf %16, %24 : vector<2x64xf32>
    %33 = arith.addf %31, %32 : vector<2x64xf32>
    %34 = math.tanh %33 : vector<2x64xf32>
    %35 = arith.mulf %30, %34 : vector<2x64xf32>
    %36 = arith.index_cast %c0_i32_1 : i32 to index
    %c0_12 = arith.constant 0 : index
    %c0_13 = arith.constant 0 : index
    %37 = vector.load %arg2[%36, %c0_12, %c0_13] : memref<8x2x64xf32, #tpu.memory_space<vmem>>, vector<1x2x64xf32>
    %38 = vector.shape_cast %37 : vector<1x2x64xf32> to vector<2x64xf32>
    %cst_14 = arith.constant 5.000000e-01 : f32
    %39 = vector.broadcast %cst_14 : f32 to vector<2x64xf32>
    %40 = arith.cmpf ogt, %38, %39 : vector<2x64xf32>
    %41 = arith.select %40, %35, %3 : vector<2x64xi1>, vector<2x64xf32>
    %c0_15 = arith.constant 0 : index
    %c0_16 = arith.constant 0 : index
    %42 = vector.load %arg6[%c0_15, %c0_16] : memref<2x64xf32, #tpu.memory_space<vmem>>, vector<2x64xf32>
    tpu.vector_store %arg6[%c0_15, %c0_16], %41 {strides = array<i32>} : memref<2x64xf32, #tpu.memory_space<vmem>>, vector<2x64xf32>,
    %43 = arith.select %40, %33, %4 : vector<2x64xi1>, vector<2x64xf32>
    %c0_17 = arith.constant 0 : index
    %c0_18 = arith.constant 0 : index
    %44 = vector.load %arg7[%c0_17, %c0_18] : memref<2x64xf32, #tpu.memory_space<vmem>>, vector<2x64xf32>
    tpu.vector_store %arg7[%c0_17, %c0_18], %43 {strides = array<i32>} : memref<2x64xf32, #tpu.memory_space<vmem>>, vector<2x64xf32>,
    %cst_19 = arith.constant 0.000000e+00 : f32
    %45 = vector.broadcast %cst_19 : f32 to vector<2x64xf32>
    %46 = arith.select %40, %35, %45 : vector<2x64xi1>, vector<2x64xf32>
    %47 = arith.index_cast %c0_i32_1 : i32 to index
    %c0_20 = arith.constant 0 : index
    %c0_21 = arith.constant 0 : index
    %48 = vector.load %arg4[%47, %c0_20, %c0_21] : memref<8x2x64xf32, #tpu.memory_space<vmem>>, vector<1x2x64xf32>
    %49 = vector.shape_cast %48 : vector<1x2x64xf32> to vector<2x64xf32>
    %50 = vector.shape_cast %46 : vector<2x64xf32> to vector<1x2x64xf32>
    tpu.vector_store %arg4[%47, %c0_20, %c0_21], %50 {strides = array<i32>} : memref<8x2x64xf32, #tpu.memory_space<vmem>>, vector<1x2x64xf32>,
    %c1_i32 = arith.constant 1 : i32
    %c0_22 = arith.constant 0 : index
    %c0_23 = arith.constant 0 : index
    %51 = vector.load %arg6[%c0_22, %c0_23] : memref<2x64xf32, #tpu.memory_space<vmem>>, vector<2x64xf32>
    %c0_24 = arith.constant 0 : index
    %c0_25 = arith.constant 0 : index
    %52 = vector.load %arg7[%c0_24, %c0_25] : memref<2x64xf32, #tpu.memory_space<vmem>>, vector<2x64xf32>
    %53 = arith.index_cast %c1_i32 : i32 to index
    %c0_26 = arith.constant 0 : index
    %c0_27 = arith.constant 0 : index
    %54 = vector.load %arg1[%53, %c0_26, %c0_27] : memref<8x2x256xf32, #tpu.memory_space<vmem>>, vector<1x2x256xf32>
    %55 = vector.shape_cast %54 : vector<1x2x256xf32> to vector<2x256xf32>
    %c0_28 = arith.constant 0 : index
    %c0_29 = arith.constant 0 : index
    %56 = vector.load %arg3[%c0_28, %c0_29] : memref<64x256xf32, #tpu.memory_space<vmem>>, vector<64x256xf32>
    %cst_30 = arith.constant dense<0.000000e+00> : vector<2x256xf32>
    %57 = tpu.matmul %51, %56, %cst_30 {dimension_numbers = #tpu.dot_dimension_numbers<[1], [0], [0], [1], [0, 0, 1, 1], [], []>} : vector<2x64xf32>, vector<64x256xf32>, vector<2x256xf32> -> vector<2x256xf32>
    %58 = arith.addf %55, %57 : vector<2x256xf32>
    %59 = vector.extract_strided_slice %58 {offsets = [0, 0], sizes = [2, 64], strides = [1, 1]} : vector<2x256xf32> to vector<2x64xf32>
    %60 = arith.negf %59 : vector<2x64xf32>
    %61 = math.exp %60 : vector<2x64xf32>
    %cst_31 = arith.constant 1.000000e+00 : f32
    %62 = vector.broadcast %cst_31 : f32 to vector<2x64xf32>
    %63 = arith.addf %62, %61 : vector<2x64xf32>
    %64 = arith.divf %62, %63 : vector<2x64xf32>
    %65 = vector.extract_strided_slice %58 {offsets = [0, 64], sizes = [2, 64], strides = [1, 1]} : vector<2x256xf32> to vector<2x64xf32>
    %66 = arith.negf %65 : vector<2x64xf32>
    %67 = math.exp %66 : vector<2x64xf32>
    %cst_32 = arith.constant 1.000000e+00 : f32
    %68 = vector.broadcast %cst_32 : f32 to vector<2x64xf32>
    %69 = arith.addf %68, %67 : vector<2x64xf32>
    %70 = arith.divf %68, %69 : vector<2x64xf32>
    %71 = vector.extract_strided_slice %58 {offsets = [0, 128], sizes = [2, 64], strides = [1, 1]} : vector<2x256xf32> to vector<2x64xf32>
    %72 = math.tanh %71 : vector<2x64xf32>
    %73 = vector.extract_strided_slice %58 {offsets = [0, 192], sizes = [2, 64], strides = [1, 1]} : vector<2x256xf32> to vector<2x64xf32>
    %74 = arith.negf %73 : vector<2x64xf32>
    %75 = math.exp %74 : vector<2x64xf32>
    %cst_33 = arith.constant 1.000000e+00 : f32
    %76 = vector.broadcast %cst_33 : f32 to vector<2x64xf32>
    %77 = arith.addf %76, %75 : vector<2x64xf32>
    %78 = arith.divf %76, %77 : vector<2x64xf32>
    %79 = arith.mulf %70, %52 : vector<2x64xf32>
    %80 = arith.mulf %64, %72 : vector<2x64xf32>
    %81 = arith.addf %79, %80 : vector<2x64xf32>
    %82 = math.tanh %81 : vector<2x64xf32>
    %83 = arith.mulf %78, %82 : vector<2x64xf32>
    %84 = arith.index_cast %c1_i32 : i32 to index
    %c0_34 = arith.constant 0 : index
    %c0_35 = arith.constant 0 : index
    %85 = vector.load %arg2[%84, %c0_34, %c0_35] : memref<8x2x64xf32, #tpu.memory_space<vmem>>, vector<1x2x64xf32>
    %86 = vector.shape_cast %85 : vector<1x2x64xf32> to vector<2x64xf32>
    %cst_36 = arith.constant 5.000000e-01 : f32
    %87 = vector.broadcast %cst_36 : f32 to vector<2x64xf32>
    %88 = arith.cmpf ogt, %86, %87 : vector<2x64xf32>
    %89 = arith.select %88, %83, %51 : vector<2x64xi1>, vector<2x64xf32>
    %c0_37 = arith.constant 0 : index
    %c0_38 = arith.constant 0 : index
    %90 = vector.load %arg6[%c0_37, %c0_38] : memref<2x64xf32, #tpu.memory_space<vmem>>, vector<2x64xf32>
    tpu.vector_store %arg6[%c0_37, %c0_38], %89 {strides = array<i32>} : memref<2x64xf32, #tpu.memory_space<vmem>>, vector<2x64xf32>,
    %91 = arith.select %88, %81, %52 : vector<2x64xi1>, vector<2x64xf32>
    %c0_39 = arith.constant 0 : index
    %c0_40 = arith.constant 0 : index
    %92 = vector.load %arg7[%c0_39, %c0_40] : memref<2x64xf32, #tpu.memory_space<vmem>>, vector<2x64xf32>
    tpu.vector_store %arg7[%c0_39, %c0_40], %91 {strides = array<i32>} : memref<2x64xf32, #tpu.memory_space<vmem>>, vector<2x64xf32>,
    %cst_41 = arith.constant 0.000000e+00 : f32
    %93 = vector.broadcast %cst_41 : f32 to vector<2x64xf32>
    %94 = arith.select %88, %83, %93 : vector<2x64xi1>, vector<2x64xf32>
    %95 = arith.index_cast %c1_i32 : i32 to index
    %c0_42 = arith.constant 0 : index
    %c0_43 = arith.constant 0 : index
    %96 = vector.load %arg4[%95, %c0_42, %c0_43] : memref<8x2x64xf32, #tpu.memory_space<vmem>>, vector<1x2x64xf32>
    %97 = vector.shape_cast %96 : vector<1x2x64xf32> to vector<2x64xf32>
    %98 = vector.shape_cast %94 : vector<2x64xf32> to vector<1x2x64xf32>
    tpu.vector_store %arg4[%95, %c0_42, %c0_43], %98 {strides = array<i32>} : memref<8x2x64xf32, #tpu.memory_space<vmem>>, vector<1x2x64xf32>,
    %c2_i32 = arith.constant 2 : i32
    %c0_44 = arith.constant 0 : index
    %c0_45 = arith.constant 0 : index
    %99 = vector.load %arg6[%c0_44, %c0_45] : memref<2x64xf32, #tpu.memory_space<vmem>>, vector<2x64xf32>
    %c0_46 = arith.constant 0 : index
    %c0_47 = arith.constant 0 : index
    %100 = vector.load %arg7[%c0_46, %c0_47] : memref<2x64xf32, #tpu.memory_space<vmem>>, vector<2x64xf32>
    %101 = arith.index_cast %c2_i32 : i32 to index
    %c0_48 = arith.constant 0 : index
    %c0_49 = arith.constant 0 : index
    %102 = vector.load %arg1[%101, %c0_48, %c0_49] : memref<8x2x256xf32, #tpu.memory_space<vmem>>, vector<1x2x256xf32>
    %103 = vector.shape_cast %102 : vector<1x2x256xf32> to vector<2x256xf32>
    %c0_50 = arith.constant 0 : index
    %c0_51 = arith.constant 0 : index
    %104 = vector.load %arg3[%c0_50, %c0_51] : memref<64x256xf32, #tpu.memory_space<vmem>>, vector<64x256xf32>
    %cst_52 = arith.constant dense<0.000000e+00> : vector<2x256xf32>
    %105 = tpu.matmul %99, %104, %cst_52 {dimension_numbers = #tpu.dot_dimension_numbers<[1], [0], [0], [1], [0, 0, 1, 1], [], []>} : vector<2x64xf32>, vector<64x256xf32>, vector<2x256xf32> -> vector<2x256xf32>
    %106 = arith.addf %103, %105 : vector<2x256xf32>
    %107 = vector.extract_strided_slice %106 {offsets = [0, 0], sizes = [2, 64], strides = [1, 1]} : vector<2x256xf32> to vector<2x64xf32>
    %108 = arith.negf %107 : vector<2x64xf32>
    %109 = math.exp %108 : vector<2x64xf32>
    %cst_53 = arith.constant 1.000000e+00 : f32
    %110 = vector.broadcast %cst_53 : f32 to vector<2x64xf32>
    %111 = arith.addf %110, %109 : vector<2x64xf32>
    %112 = arith.divf %110, %111 : vector<2x64xf32>
    %113 = vector.extract_strided_slice %106 {offsets = [0, 64], sizes = [2, 64], strides = [1, 1]} : vector<2x256xf32> to vector<2x64xf32>
    %114 = arith.negf %113 : vector<2x64xf32>
    %115 = math.exp %114 : vector<2x64xf32>
    %cst_54 = arith.constant 1.000000e+00 : f32
    %116 = vector.broadcast %cst_54 : f32 to vector<2x64xf32>
    %117 = arith.addf %116, %115 : vector<2x64xf32>
    %118 = arith.divf %116, %117 : vector<2x64xf32>
    %119 = vector.extract_strided_slice %106 {offsets = [0, 128], sizes = [2, 64], strides = [1, 1]} : vector<2x256xf32> to vector<2x64xf32>
    %120 = math.tanh %119 : vector<2x64xf32>
    %121 = vector.extract_strided_slice %106 {offsets = [0, 192], sizes = [2, 64], strides = [1, 1]} : vector<2x256xf32> to vector<2x64xf32>
    %122 = arith.negf %121 : vector<2x64xf32>
    %123 = math.exp %122 : vector<2x64xf32>
    %cst_55 = arith.constant 1.000000e+00 : f32
    %124 = vector.broadcast %cst_55 : f32 to vector<2x64xf32>
    %125 = arith.addf %124, %123 : vector<2x64xf32>
    %126 = arith.divf %124, %125 : vector<2x64xf32>
    %127 = arith.mulf %118, %100 : vector<2x64xf32>
    %128 = arith.mulf %112, %120 : vector<2x64xf32>
    %129 = arith.addf %127, %128 : vector<2x64xf32>
    %130 = math.tanh %129 : vector<2x64xf32>
    %131 = arith.mulf %126, %130 : vector<2x64xf32>
    %132 = arith.index_cast %c2_i32 : i32 to index
    %c0_56 = arith.constant 0 : index
    %c0_57 = arith.constant 0 : index
    %133 = vector.load %arg2[%132, %c0_56, %c0_57] : memref<8x2x64xf32, #tpu.memory_space<vmem>>, vector<1x2x64xf32>
    %134 = vector.shape_cast %133 : vector<1x2x64xf32> to vector<2x64xf32>
    %cst_58 = arith.constant 5.000000e-01 : f32
    %135 = vector.broadcast %cst_58 : f32 to vector<2x64xf32>
    %136 = arith.cmpf ogt, %134, %135 : vector<2x64xf32>
    %137 = arith.select %136, %131, %99 : vector<2x64xi1>, vector<2x64xf32>
    %c0_59 = arith.constant 0 : index
    %c0_60 = arith.constant 0 : index
    %138 = vector.load %arg6[%c0_59, %c0_60] : memref<2x64xf32, #tpu.memory_space<vmem>>, vector<2x64xf32>
    tpu.vector_store %arg6[%c0_59, %c0_60], %137 {strides = array<i32>} : memref<2x64xf32, #tpu.memory_space<vmem>>, vector<2x64xf32>,
    %139 = arith.select %136, %129, %100 : vector<2x64xi1>, vector<2x64xf32>
    %c0_61 = arith.constant 0 : index
    %c0_62 = arith.constant 0 : index
    %140 = vector.load %arg7[%c0_61, %c0_62] : memref<2x64xf32, #tpu.memory_space<vmem>>, vector<2x64xf32>
    tpu.vector_store %arg7[%c0_61, %c0_62], %139 {strides = array<i32>} : memref<2x64xf32, #tpu.memory_space<vmem>>, vector<2x64xf32>,
    %cst_63 = arith.constant 0.000000e+00 : f32
    %141 = vector.broadcast %cst_63 : f32 to vector<2x64xf32>
    %142 = arith.select %136, %131, %141 : vector<2x64xi1>, vector<2x64xf32>
    %143 = arith.index_cast %c2_i32 : i32 to index
    %c0_64 = arith.constant 0 : index
    %c0_65 = arith.constant 0 : index
    %144 = vector.load %arg4[%143, %c0_64, %c0_65] : memref<8x2x64xf32, #tpu.memory_space<vmem>>, vector<1x2x64xf32>
    %145 = vector.shape_cast %144 : vector<1x2x64xf32> to vector<2x64xf32>
    %146 = vector.shape_cast %142 : vector<2x64xf32> to vector<1x2x64xf32>
    tpu.vector_store %arg4[%143, %c0_64, %c0_65], %146 {strides = array<i32>} : memref<8x2x64xf32, #tpu.memory_space<vmem>>, vector<1x2x64xf32>,
    %c3_i32 = arith.constant 3 : i32
    %c0_66 = arith.constant 0 : index
    %c0_67 = arith.constant 0 : index
    %147 = vector.load %arg6[%c0_66, %c0_67] : memref<2x64xf32, #tpu.memory_space<vmem>>, vector<2x64xf32>
    %c0_68 = arith.constant 0 : index
    %c0_69 = arith.constant 0 : index
    %148 = vector.load %arg7[%c0_68, %c0_69] : memref<2x64xf32, #tpu.memory_space<vmem>>, vector<2x64xf32>
    %149 = arith.index_cast %c3_i32 : i32 to index
    %c0_70 = arith.constant 0 : index
    %c0_71 = arith.constant 0 : index
    %150 = vector.load %arg1[%149, %c0_70, %c0_71] : memref<8x2x256xf32, #tpu.memory_space<vmem>>, vector<1x2x256xf32>
    %151 = vector.shape_cast %150 : vector<1x2x256xf32> to vector<2x256xf32>
    %c0_72 = arith.constant 0 : index
    %c0_73 = arith.constant 0 : index
    %152 = vector.load %arg3[%c0_72, %c0_73] : memref<64x256xf32, #tpu.memory_space<vmem>>, vector<64x256xf32>
    %cst_74 = arith.constant dense<0.000000e+00> : vector<2x256xf32>
    %153 = tpu.matmul %147, %152, %cst_74 {dimension_numbers = #tpu.dot_dimension_numbers<[1], [0], [0], [1], [0, 0, 1, 1], [], []>} : vector<2x64xf32>, vector<64x256xf32>, vector<2x256xf32> -> vector<2x256xf32>
    %154 = arith.addf %151, %153 : vector<2x256xf32>
    %155 = vector.extract_strided_slice %154 {offsets = [0, 0], sizes = [2, 64], strides = [1, 1]} : vector<2x256xf32> to vector<2x64xf32>
    %156 = arith.negf %155 : vector<2x64xf32>
    %157 = math.exp %156 : vector<2x64xf32>
    %cst_75 = arith.constant 1.000000e+00 : f32
    %158 = vector.broadcast %cst_75 : f32 to vector<2x64xf32>
    %159 = arith.addf %158, %157 : vector<2x64xf32>
    %160 = arith.divf %158, %159 : vector<2x64xf32>
    %161 = vector.extract_strided_slice %154 {offsets = [0, 64], sizes = [2, 64], strides = [1, 1]} : vector<2x256xf32> to vector<2x64xf32>
    %162 = arith.negf %161 : vector<2x64xf32>
    %163 = math.exp %162 : vector<2x64xf32>
    %cst_76 = arith.constant 1.000000e+00 : f32
    %164 = vector.broadcast %cst_76 : f32 to vector<2x64xf32>
    %165 = arith.addf %164, %163 : vector<2x64xf32>
    %166 = arith.divf %164, %165 : vector<2x64xf32>
    %167 = vector.extract_strided_slice %154 {offsets = [0, 128], sizes = [2, 64], strides = [1, 1]} : vector<2x256xf32> to vector<2x64xf32>
    %168 = math.tanh %167 : vector<2x64xf32>
    %169 = vector.extract_strided_slice %154 {offsets = [0, 192], sizes = [2, 64], strides = [1, 1]} : vector<2x256xf32> to vector<2x64xf32>
    %170 = arith.negf %169 : vector<2x64xf32>
    %171 = math.exp %170 : vector<2x64xf32>
    %cst_77 = arith.constant 1.000000e+00 : f32
    %172 = vector.broadcast %cst_77 : f32 to vector<2x64xf32>
    %173 = arith.addf %172, %171 : vector<2x64xf32>
    %174 = arith.divf %172, %173 : vector<2x64xf32>
    %175 = arith.mulf %166, %148 : vector<2x64xf32>
    %176 = arith.mulf %160, %168 : vector<2x64xf32>
    %177 = arith.addf %175, %176 : vector<2x64xf32>
    %178 = math.tanh %177 : vector<2x64xf32>
    %179 = arith.mulf %174, %178 : vector<2x64xf32>
    %180 = arith.index_cast %c3_i32 : i32 to index
    %c0_78 = arith.constant 0 : index
    %c0_79 = arith.constant 0 : index
    %181 = vector.load %arg2[%180, %c0_78, %c0_79] : memref<8x2x64xf32, #tpu.memory_space<vmem>>, vector<1x2x64xf32>
    %182 = vector.shape_cast %181 : vector<1x2x64xf32> to vector<2x64xf32>
    %cst_80 = arith.constant 5.000000e-01 : f32
    %183 = vector.broadcast %cst_80 : f32 to vector<2x64xf32>
    %184 = arith.cmpf ogt, %182, %183 : vector<2x64xf32>
    %185 = arith.select %184, %179, %147 : vector<2x64xi1>, vector<2x64xf32>
    %c0_81 = arith.constant 0 : index
    %c0_82 = arith.constant 0 : index
    %186 = vector.load %arg6[%c0_81, %c0_82] : memref<2x64xf32, #tpu.memory_space<vmem>>, vector<2x64xf32>
    tpu.vector_store %arg6[%c0_81, %c0_82], %185 {strides = array<i32>} : memref<2x64xf32, #tpu.memory_space<vmem>>, vector<2x64xf32>,
    %187 = arith.select %184, %177, %148 : vector<2x64xi1>, vector<2x64xf32>
    %c0_83 = arith.constant 0 : index
    %c0_84 = arith.constant 0 : index
    %188 = vector.load %arg7[%c0_83, %c0_84] : memref<2x64xf32, #tpu.memory_space<vmem>>, vector<2x64xf32>
    tpu.vector_store %arg7[%c0_83, %c0_84], %187 {strides = array<i32>} : memref<2x64xf32, #tpu.memory_space<vmem>>, vector<2x64xf32>,
    %cst_85 = arith.constant 0.000000e+00 : f32
    %189 = vector.broadcast %cst_85 : f32 to vector<2x64xf32>
    %190 = arith.select %184, %179, %189 : vector<2x64xi1>, vector<2x64xf32>
    %191 = arith.index_cast %c3_i32 : i32 to index
    %c0_86 = arith.constant 0 : index
    %c0_87 = arith.constant 0 : index
    %192 = vector.load %arg4[%191, %c0_86, %c0_87] : memref<8x2x64xf32, #tpu.memory_space<vmem>>, vector<1x2x64xf32>
    %193 = vector.shape_cast %192 : vector<1x2x64xf32> to vector<2x64xf32>
    %194 = vector.shape_cast %190 : vector<2x64xf32> to vector<1x2x64xf32>
    tpu.vector_store %arg4[%191, %c0_86, %c0_87], %194 {strides = array<i32>} : memref<8x2x64xf32, #tpu.memory_space<vmem>>, vector<1x2x64xf32>,
    %c4_i32 = arith.constant 4 : i32
    %c0_88 = arith.constant 0 : index
    %c0_89 = arith.constant 0 : index
    %195 = vector.load %arg6[%c0_88, %c0_89] : memref<2x64xf32, #tpu.memory_space<vmem>>, vector<2x64xf32>
    %c0_90 = arith.constant 0 : index
    %c0_91 = arith.constant 0 : index
    %196 = vector.load %arg7[%c0_90, %c0_91] : memref<2x64xf32, #tpu.memory_space<vmem>>, vector<2x64xf32>
    %197 = arith.index_cast %c4_i32 : i32 to index
    %c0_92 = arith.constant 0 : index
    %c0_93 = arith.constant 0 : index
    %198 = vector.load %arg1[%197, %c0_92, %c0_93] : memref<8x2x256xf32, #tpu.memory_space<vmem>>, vector<1x2x256xf32>
    %199 = vector.shape_cast %198 : vector<1x2x256xf32> to vector<2x256xf32>
    %c0_94 = arith.constant 0 : index
    %c0_95 = arith.constant 0 : index
    %200 = vector.load %arg3[%c0_94, %c0_95] : memref<64x256xf32, #tpu.memory_space<vmem>>, vector<64x256xf32>
    %cst_96 = arith.constant dense<0.000000e+00> : vector<2x256xf32>
    %201 = tpu.matmul %195, %200, %cst_96 {dimension_numbers = #tpu.dot_dimension_numbers<[1], [0], [0], [1], [0, 0, 1, 1], [], []>} : vector<2x64xf32>, vector<64x256xf32>, vector<2x256xf32> -> vector<2x256xf32>
    %202 = arith.addf %199, %201 : vector<2x256xf32>
    %203 = vector.extract_strided_slice %202 {offsets = [0, 0], sizes = [2, 64], strides = [1, 1]} : vector<2x256xf32> to vector<2x64xf32>
    %204 = arith.negf %203 : vector<2x64xf32>
    %205 = math.exp %204 : vector<2x64xf32>
    %cst_97 = arith.constant 1.000000e+00 : f32
    %206 = vector.broadcast %cst_97 : f32 to vector<2x64xf32>
    %207 = arith.addf %206, %205 : vector<2x64xf32>
    %208 = arith.divf %206, %207 : vector<2x64xf32>
    %209 = vector.extract_strided_slice %202 {offsets = [0, 64], sizes = [2, 64], strides = [1, 1]} : vector<2x256xf32> to vector<2x64xf32>
    %210 = arith.negf %209 : vector<2x64xf32>
    %211 = math.exp %210 : vector<2x64xf32>
    %cst_98 = arith.constant 1.000000e+00 : f32
    %212 = vector.broadcast %cst_98 : f32 to vector<2x64xf32>
    %213 = arith.addf %212, %211 : vector<2x64xf32>
    %214 = arith.divf %212, %213 : vector<2x64xf32>
    %215 = vector.extract_strided_slice %202 {offsets = [0, 128], sizes = [2, 64], strides = [1, 1]} : vector<2x256xf32> to vector<2x64xf32>
    %216 = math.tanh %215 : vector<2x64xf32>
    %217 = vector.extract_strided_slice %202 {offsets = [0, 192], sizes = [2, 64], strides = [1, 1]} : vector<2x256xf32> to vector<2x64xf32>
    %218 = arith.negf %217 : vector<2x64xf32>
    %219 = math.exp %218 : vector<2x64xf32>
    %cst_99 = arith.constant 1.000000e+00 : f32
    %220 = vector.broadcast %cst_99 : f32 to vector<2x64xf32>
    %221 = arith.addf %220, %219 : vector<2x64xf32>
    %222 = arith.divf %220, %221 : vector<2x64xf32>
    %223 = arith.mulf %214, %196 : vector<2x64xf32>
    %224 = arith.mulf %208, %216 : vector<2x64xf32>
    %225 = arith.addf %223, %224 : vector<2x64xf32>
    %226 = math.tanh %225 : vector<2x64xf32>
    %227 = arith.mulf %222, %226 : vector<2x64xf32>
    %228 = arith.index_cast %c4_i32 : i32 to index
    %c0_100 = arith.constant 0 : index
    %c0_101 = arith.constant 0 : index
    %229 = vector.load %arg2[%228, %c0_100, %c0_101] : memref<8x2x64xf32, #tpu.memory_space<vmem>>, vector<1x2x64xf32>
    %230 = vector.shape_cast %229 : vector<1x2x64xf32> to vector<2x64xf32>
    %cst_102 = arith.constant 5.000000e-01 : f32
    %231 = vector.broadcast %cst_102 : f32 to vector<2x64xf32>
    %232 = arith.cmpf ogt, %230, %231 : vector<2x64xf32>
    %233 = arith.select %232, %227, %195 : vector<2x64xi1>, vector<2x64xf32>
    %c0_103 = arith.constant 0 : index
    %c0_104 = arith.constant 0 : index
    %234 = vector.load %arg6[%c0_103, %c0_104] : memref<2x64xf32, #tpu.memory_space<vmem>>, vector<2x64xf32>
    tpu.vector_store %arg6[%c0_103, %c0_104], %233 {strides = array<i32>} : memref<2x64xf32, #tpu.memory_space<vmem>>, vector<2x64xf32>,
    %235 = arith.select %232, %225, %196 : vector<2x64xi1>, vector<2x64xf32>
    %c0_105 = arith.constant 0 : index
    %c0_106 = arith.constant 0 : index
    %236 = vector.load %arg7[%c0_105, %c0_106] : memref<2x64xf32, #tpu.memory_space<vmem>>, vector<2x64xf32>
    tpu.vector_store %arg7[%c0_105, %c0_106], %235 {strides = array<i32>} : memref<2x64xf32, #tpu.memory_space<vmem>>, vector<2x64xf32>,
    %cst_107 = arith.constant 0.000000e+00 : f32
    %237 = vector.broadcast %cst_107 : f32 to vector<2x64xf32>
    %238 = arith.select %232, %227, %237 : vector<2x64xi1>, vector<2x64xf32>
    %239 = arith.index_cast %c4_i32 : i32 to index
    %c0_108 = arith.constant 0 : index
    %c0_109 = arith.constant 0 : index
    %240 = vector.load %arg4[%239, %c0_108, %c0_109] : memref<8x2x64xf32, #tpu.memory_space<vmem>>, vector<1x2x64xf32>
    %241 = vector.shape_cast %240 : vector<1x2x64xf32> to vector<2x64xf32>
    %242 = vector.shape_cast %238 : vector<2x64xf32> to vector<1x2x64xf32>
    tpu.vector_store %arg4[%239, %c0_108, %c0_109], %242 {strides = array<i32>} : memref<8x2x64xf32, #tpu.memory_space<vmem>>, vector<1x2x64xf32>,
    %c5_i32 = arith.constant 5 : i32
    %c0_110 = arith.constant 0 : index
    %c0_111 = arith.constant 0 : index
    %243 = vector.load %arg6[%c0_110, %c0_111] : memref<2x64xf32, #tpu.memory_space<vmem>>, vector<2x64xf32>
    %c0_112 = arith.constant 0 : index
    %c0_113 = arith.constant 0 : index
    %244 = vector.load %arg7[%c0_112, %c0_113] : memref<2x64xf32, #tpu.memory_space<vmem>>, vector<2x64xf32>
    %245 = arith.index_cast %c5_i32 : i32 to index
    %c0_114 = arith.constant 0 : index
    %c0_115 = arith.constant 0 : index
    %246 = vector.load %arg1[%245, %c0_114, %c0_115] : memref<8x2x256xf32, #tpu.memory_space<vmem>>, vector<1x2x256xf32>
    %247 = vector.shape_cast %246 : vector<1x2x256xf32> to vector<2x256xf32>
    %c0_116 = arith.constant 0 : index
    %c0_117 = arith.constant 0 : index
    %248 = vector.load %arg3[%c0_116, %c0_117] : memref<64x256xf32, #tpu.memory_space<vmem>>, vector<64x256xf32>
    %cst_118 = arith.constant dense<0.000000e+00> : vector<2x256xf32>
    %249 = tpu.matmul %243, %248, %cst_118 {dimension_numbers = #tpu.dot_dimension_numbers<[1], [0], [0], [1], [0, 0, 1, 1], [], []>} : vector<2x64xf32>, vector<64x256xf32>, vector<2x256xf32> -> vector<2x256xf32>
    %250 = arith.addf %247, %249 : vector<2x256xf32>
    %251 = vector.extract_strided_slice %250 {offsets = [0, 0], sizes = [2, 64], strides = [1, 1]} : vector<2x256xf32> to vector<2x64xf32>
    %252 = arith.negf %251 : vector<2x64xf32>
    %253 = math.exp %252 : vector<2x64xf32>
    %cst_119 = arith.constant 1.000000e+00 : f32
    %254 = vector.broadcast %cst_119 : f32 to vector<2x64xf32>
    %255 = arith.addf %254, %253 : vector<2x64xf32>
    %256 = arith.divf %254, %255 : vector<2x64xf32>
    %257 = vector.extract_strided_slice %250 {offsets = [0, 64], sizes = [2, 64], strides = [1, 1]} : vector<2x256xf32> to vector<2x64xf32>
    %258 = arith.negf %257 : vector<2x64xf32>
    %259 = math.exp %258 : vector<2x64xf32>
    %cst_120 = arith.constant 1.000000e+00 : f32
    %260 = vector.broadcast %cst_120 : f32 to vector<2x64xf32>
    %261 = arith.addf %260, %259 : vector<2x64xf32>
    %262 = arith.divf %260, %261 : vector<2x64xf32>
    %263 = vector.extract_strided_slice %250 {offsets = [0, 128], sizes = [2, 64], strides = [1, 1]} : vector<2x256xf32> to vector<2x64xf32>
    %264 = math.tanh %263 : vector<2x64xf32>
    %265 = vector.extract_strided_slice %250 {offsets = [0, 192], sizes = [2, 64], strides = [1, 1]} : vector<2x256xf32> to vector<2x64xf32>
    %266 = arith.negf %265 : vector<2x64xf32>
    %267 = math.exp %266 : vector<2x64xf32>
    %cst_121 = arith.constant 1.000000e+00 : f32
    %268 = vector.broadcast %cst_121 : f32 to vector<2x64xf32>
    %269 = arith.addf %268, %267 : vector<2x64xf32>
    %270 = arith.divf %268, %269 : vector<2x64xf32>
    %271 = arith.mulf %262, %244 : vector<2x64xf32>
    %272 = arith.mulf %256, %264 : vector<2x64xf32>
    %273 = arith.addf %271, %272 : vector<2x64xf32>
    %274 = math.tanh %273 : vector<2x64xf32>
    %275 = arith.mulf %270, %274 : vector<2x64xf32>
    %276 = arith.index_cast %c5_i32 : i32 to index
    %c0_122 = arith.constant 0 : index
    %c0_123 = arith.constant 0 : index
    %277 = vector.load %arg2[%276, %c0_122, %c0_123] : memref<8x2x64xf32, #tpu.memory_space<vmem>>, vector<1x2x64xf32>
    %278 = vector.shape_cast %277 : vector<1x2x64xf32> to vector<2x64xf32>
    %cst_124 = arith.constant 5.000000e-01 : f32
    %279 = vector.broadcast %cst_124 : f32 to vector<2x64xf32>
    %280 = arith.cmpf ogt, %278, %279 : vector<2x64xf32>
    %281 = arith.select %280, %275, %243 : vector<2x64xi1>, vector<2x64xf32>
    %c0_125 = arith.constant 0 : index
    %c0_126 = arith.constant 0 : index
    %282 = vector.load %arg6[%c0_125, %c0_126] : memref<2x64xf32, #tpu.memory_space<vmem>>, vector<2x64xf32>
    tpu.vector_store %arg6[%c0_125, %c0_126], %281 {strides = array<i32>} : memref<2x64xf32, #tpu.memory_space<vmem>>, vector<2x64xf32>,
    %283 = arith.select %280, %273, %244 : vector<2x64xi1>, vector<2x64xf32>
    %c0_127 = arith.constant 0 : index
    %c0_128 = arith.constant 0 : index
    %284 = vector.load %arg7[%c0_127, %c0_128] : memref<2x64xf32, #tpu.memory_space<vmem>>, vector<2x64xf32>
    tpu.vector_store %arg7[%c0_127, %c0_128], %283 {strides = array<i32>} : memref<2x64xf32, #tpu.memory_space<vmem>>, vector<2x64xf32>,
    %cst_129 = arith.constant 0.000000e+00 : f32
    %285 = vector.broadcast %cst_129 : f32 to vector<2x64xf32>
    %286 = arith.select %280, %275, %285 : vector<2x64xi1>, vector<2x64xf32>
    %287 = arith.index_cast %c5_i32 : i32 to index
    %c0_130 = arith.constant 0 : index
    %c0_131 = arith.constant 0 : index
    %288 = vector.load %arg4[%287, %c0_130, %c0_131] : memref<8x2x64xf32, #tpu.memory_space<vmem>>, vector<1x2x64xf32>
    %289 = vector.shape_cast %288 : vector<1x2x64xf32> to vector<2x64xf32>
    %290 = vector.shape_cast %286 : vector<2x64xf32> to vector<1x2x64xf32>
    tpu.vector_store %arg4[%287, %c0_130, %c0_131], %290 {strides = array<i32>} : memref<8x2x64xf32, #tpu.memory_space<vmem>>, vector<1x2x64xf32>,
    %c6_i32 = arith.constant 6 : i32
    %c0_132 = arith.constant 0 : index
    %c0_133 = arith.constant 0 : index
    %291 = vector.load %arg6[%c0_132, %c0_133] : memref<2x64xf32, #tpu.memory_space<vmem>>, vector<2x64xf32>
    %c0_134 = arith.constant 0 : index
    %c0_135 = arith.constant 0 : index
    %292 = vector.load %arg7[%c0_134, %c0_135] : memref<2x64xf32, #tpu.memory_space<vmem>>, vector<2x64xf32>
    %293 = arith.index_cast %c6_i32 : i32 to index
    %c0_136 = arith.constant 0 : index
    %c0_137 = arith.constant 0 : index
    %294 = vector.load %arg1[%293, %c0_136, %c0_137] : memref<8x2x256xf32, #tpu.memory_space<vmem>>, vector<1x2x256xf32>
    %295 = vector.shape_cast %294 : vector<1x2x256xf32> to vector<2x256xf32>
    %c0_138 = arith.constant 0 : index
    %c0_139 = arith.constant 0 : index
    %296 = vector.load %arg3[%c0_138, %c0_139] : memref<64x256xf32, #tpu.memory_space<vmem>>, vector<64x256xf32>
    %cst_140 = arith.constant dense<0.000000e+00> : vector<2x256xf32>
    %297 = tpu.matmul %291, %296, %cst_140 {dimension_numbers = #tpu.dot_dimension_numbers<[1], [0], [0], [1], [0, 0, 1, 1], [], []>} : vector<2x64xf32>, vector<64x256xf32>, vector<2x256xf32> -> vector<2x256xf32>
    %298 = arith.addf %295, %297 : vector<2x256xf32>
    %299 = vector.extract_strided_slice %298 {offsets = [0, 0], sizes = [2, 64], strides = [1, 1]} : vector<2x256xf32> to vector<2x64xf32>
    %300 = arith.negf %299 : vector<2x64xf32>
    %301 = math.exp %300 : vector<2x64xf32>
    %cst_141 = arith.constant 1.000000e+00 : f32
    %302 = vector.broadcast %cst_141 : f32 to vector<2x64xf32>
    %303 = arith.addf %302, %301 : vector<2x64xf32>
    %304 = arith.divf %302, %303 : vector<2x64xf32>
    %305 = vector.extract_strided_slice %298 {offsets = [0, 64], sizes = [2, 64], strides = [1, 1]} : vector<2x256xf32> to vector<2x64xf32>
    %306 = arith.negf %305 : vector<2x64xf32>
    %307 = math.exp %306 : vector<2x64xf32>
    %cst_142 = arith.constant 1.000000e+00 : f32
    %308 = vector.broadcast %cst_142 : f32 to vector<2x64xf32>
    %309 = arith.addf %308, %307 : vector<2x64xf32>
    %310 = arith.divf %308, %309 : vector<2x64xf32>
    %311 = vector.extract_strided_slice %298 {offsets = [0, 128], sizes = [2, 64], strides = [1, 1]} : vector<2x256xf32> to vector<2x64xf32>
    %312 = math.tanh %311 : vector<2x64xf32>
    %313 = vector.extract_strided_slice %298 {offsets = [0, 192], sizes = [2, 64], strides = [1, 1]} : vector<2x256xf32> to vector<2x64xf32>
    %314 = arith.negf %313 : vector<2x64xf32>
    %315 = math.exp %314 : vector<2x64xf32>
    %cst_143 = arith.constant 1.000000e+00 : f32
    %316 = vector.broadcast %cst_143 : f32 to vector<2x64xf32>
    %317 = arith.addf %316, %315 : vector<2x64xf32>
    %318 = arith.divf %316, %317 : vector<2x64xf32>
    %319 = arith.mulf %310, %292 : vector<2x64xf32>
    %320 = arith.mulf %304, %312 : vector<2x64xf32>
    %321 = arith.addf %319, %320 : vector<2x64xf32>
    %322 = math.tanh %321 : vector<2x64xf32>
    %323 = arith.mulf %318, %322 : vector<2x64xf32>
    %324 = arith.index_cast %c6_i32 : i32 to index
    %c0_144 = arith.constant 0 : index
    %c0_145 = arith.constant 0 : index
    %325 = vector.load %arg2[%324, %c0_144, %c0_145] : memref<8x2x64xf32, #tpu.memory_space<vmem>>, vector<1x2x64xf32>
    %326 = vector.shape_cast %325 : vector<1x2x64xf32> to vector<2x64xf32>
    %cst_146 = arith.constant 5.000000e-01 : f32
    %327 = vector.broadcast %cst_146 : f32 to vector<2x64xf32>
    %328 = arith.cmpf ogt, %326, %327 : vector<2x64xf32>
    %329 = arith.select %328, %323, %291 : vector<2x64xi1>, vector<2x64xf32>
    %c0_147 = arith.constant 0 : index
    %c0_148 = arith.constant 0 : index
    %330 = vector.load %arg6[%c0_147, %c0_148] : memref<2x64xf32, #tpu.memory_space<vmem>>, vector<2x64xf32>
    tpu.vector_store %arg6[%c0_147, %c0_148], %329 {strides = array<i32>} : memref<2x64xf32, #tpu.memory_space<vmem>>, vector<2x64xf32>,
    %331 = arith.select %328, %321, %292 : vector<2x64xi1>, vector<2x64xf32>
    %c0_149 = arith.constant 0 : index
    %c0_150 = arith.constant 0 : index
    %332 = vector.load %arg7[%c0_149, %c0_150] : memref<2x64xf32, #tpu.memory_space<vmem>>, vector<2x64xf32>
    tpu.vector_store %arg7[%c0_149, %c0_150], %331 {strides = array<i32>} : memref<2x64xf32, #tpu.memory_space<vmem>>, vector<2x64xf32>,
    %cst_151 = arith.constant 0.000000e+00 : f32
    %333 = vector.broadcast %cst_151 : f32 to vector<2x64xf32>
    %334 = arith.select %328, %323, %333 : vector<2x64xi1>, vector<2x64xf32>
    %335 = arith.index_cast %c6_i32 : i32 to index
    %c0_152 = arith.constant 0 : index
    %c0_153 = arith.constant 0 : index
    %336 = vector.load %arg4[%335, %c0_152, %c0_153] : memref<8x2x64xf32, #tpu.memory_space<vmem>>, vector<1x2x64xf32>
    %337 = vector.shape_cast %336 : vector<1x2x64xf32> to vector<2x64xf32>
    %338 = vector.shape_cast %334 : vector<2x64xf32> to vector<1x2x64xf32>
    tpu.vector_store %arg4[%335, %c0_152, %c0_153], %338 {strides = array<i32>} : memref<8x2x64xf32, #tpu.memory_space<vmem>>, vector<1x2x64xf32>,
    %c7_i32 = arith.constant 7 : i32
    %c0_154 = arith.constant 0 : index
    %c0_155 = arith.constant 0 : index
    %339 = vector.load %arg6[%c0_154, %c0_155] : memref<2x64xf32, #tpu.memory_space<vmem>>, vector<2x64xf32>
    %c0_156 = arith.constant 0 : index
    %c0_157 = arith.constant 0 : index
    %340 = vector.load %arg7[%c0_156, %c0_157] : memref<2x64xf32, #tpu.memory_space<vmem>>, vector<2x64xf32>
    %341 = arith.index_cast %c7_i32 : i32 to index
    %c0_158 = arith.constant 0 : index
    %c0_159 = arith.constant 0 : index
    %342 = vector.load %arg1[%341, %c0_158, %c0_159] : memref<8x2x256xf32, #tpu.memory_space<vmem>>, vector<1x2x256xf32>
    %343 = vector.shape_cast %342 : vector<1x2x256xf32> to vector<2x256xf32>
    %c0_160 = arith.constant 0 : index
    %c0_161 = arith.constant 0 : index
    %344 = vector.load %arg3[%c0_160, %c0_161] : memref<64x256xf32, #tpu.memory_space<vmem>>, vector<64x256xf32>
    %cst_162 = arith.constant dense<0.000000e+00> : vector<2x256xf32>
    %345 = tpu.matmul %339, %344, %cst_162 {dimension_numbers = #tpu.dot_dimension_numbers<[1], [0], [0], [1], [0, 0, 1, 1], [], []>} : vector<2x64xf32>, vector<64x256xf32>, vector<2x256xf32> -> vector<2x256xf32>
    %346 = arith.addf %343, %345 : vector<2x256xf32>
    %347 = vector.extract_strided_slice %346 {offsets = [0, 0], sizes = [2, 64], strides = [1, 1]} : vector<2x256xf32> to vector<2x64xf32>
    %348 = arith.negf %347 : vector<2x64xf32>
    %349 = math.exp %348 : vector<2x64xf32>
    %cst_163 = arith.constant 1.000000e+00 : f32
    %350 = vector.broadcast %cst_163 : f32 to vector<2x64xf32>
    %351 = arith.addf %350, %349 : vector<2x64xf32>
    %352 = arith.divf %350, %351 : vector<2x64xf32>
    %353 = vector.extract_strided_slice %346 {offsets = [0, 64], sizes = [2, 64], strides = [1, 1]} : vector<2x256xf32> to vector<2x64xf32>
    %354 = arith.negf %353 : vector<2x64xf32>
    %355 = math.exp %354 : vector<2x64xf32>
    %cst_164 = arith.constant 1.000000e+00 : f32
    %356 = vector.broadcast %cst_164 : f32 to vector<2x64xf32>
    %357 = arith.addf %356, %355 : vector<2x64xf32>
    %358 = arith.divf %356, %357 : vector<2x64xf32>
    %359 = vector.extract_strided_slice %346 {offsets = [0, 128], sizes = [2, 64], strides = [1, 1]} : vector<2x256xf32> to vector<2x64xf32>
    %360 = math.tanh %359 : vector<2x64xf32>
    %361 = vector.extract_strided_slice %346 {offsets = [0, 192], sizes = [2, 64], strides = [1, 1]} : vector<2x256xf32> to vector<2x64xf32>
    %362 = arith.negf %361 : vector<2x64xf32>
    %363 = math.exp %362 : vector<2x64xf32>
    %cst_165 = arith.constant 1.000000e+00 : f32
    %364 = vector.broadcast %cst_165 : f32 to vector<2x64xf32>
    %365 = arith.addf %364, %363 : vector<2x64xf32>
    %366 = arith.divf %364, %365 : vector<2x64xf32>
    %367 = arith.mulf %358, %340 : vector<2x64xf32>
    %368 = arith.mulf %352, %360 : vector<2x64xf32>
    %369 = arith.addf %367, %368 : vector<2x64xf32>
    %370 = math.tanh %369 : vector<2x64xf32>
    %371 = arith.mulf %366, %370 : vector<2x64xf32>
    %372 = arith.index_cast %c7_i32 : i32 to index
    %c0_166 = arith.constant 0 : index
    %c0_167 = arith.constant 0 : index
    %373 = vector.load %arg2[%372, %c0_166, %c0_167] : memref<8x2x64xf32, #tpu.memory_space<vmem>>, vector<1x2x64xf32>
    %374 = vector.shape_cast %373 : vector<1x2x64xf32> to vector<2x64xf32>
    %cst_168 = arith.constant 5.000000e-01 : f32
    %375 = vector.broadcast %cst_168 : f32 to vector<2x64xf32>
    %376 = arith.cmpf ogt, %374, %375 : vector<2x64xf32>
    %377 = arith.select %376, %371, %339 : vector<2x64xi1>, vector<2x64xf32>
    %c0_169 = arith.constant 0 : index
    %c0_170 = arith.constant 0 : index
    %378 = vector.load %arg6[%c0_169, %c0_170] : memref<2x64xf32, #tpu.memory_space<vmem>>, vector<2x64xf32>
    tpu.vector_store %arg6[%c0_169, %c0_170], %377 {strides = array<i32>} : memref<2x64xf32, #tpu.memory_space<vmem>>, vector<2x64xf32>,
    %379 = arith.select %376, %369, %340 : vector<2x64xi1>, vector<2x64xf32>
    %c0_171 = arith.constant 0 : index
    %c0_172 = arith.constant 0 : index
    %380 = vector.load %arg7[%c0_171, %c0_172] : memref<2x64xf32, #tpu.memory_space<vmem>>, vector<2x64xf32>
    tpu.vector_store %arg7[%c0_171, %c0_172], %379 {strides = array<i32>} : memref<2x64xf32, #tpu.memory_space<vmem>>, vector<2x64xf32>,
    %cst_173 = arith.constant 0.000000e+00 : f32
    %381 = vector.broadcast %cst_173 : f32 to vector<2x64xf32>
    %382 = arith.select %376, %371, %381 : vector<2x64xi1>, vector<2x64xf32>
    %383 = arith.index_cast %c7_i32 : i32 to index
    %c0_174 = arith.constant 0 : index
    %c0_175 = arith.constant 0 : index
    %384 = vector.load %arg4[%383, %c0_174, %c0_175] : memref<8x2x64xf32, #tpu.memory_space<vmem>>, vector<1x2x64xf32>
    %385 = vector.shape_cast %384 : vector<1x2x64xf32> to vector<2x64xf32>
    %386 = vector.shape_cast %382 : vector<2x64xf32> to vector<1x2x64xf32>
    tpu.vector_store %arg4[%383, %c0_174, %c0_175], %386 {strides = array<i32>} : memref<8x2x64xf32, #tpu.memory_space<vmem>>, vector<1x2x64xf32>,
    %c8_i32 = arith.constant 8 : i32
    %c0_176 = arith.constant 0 : index
    %c0_177 = arith.constant 0 : index
    %387 = vector.load %arg6[%c0_176, %c0_177] : memref<2x64xf32, #tpu.memory_space<vmem>>, vector<2x64xf32>
    %c0_178 = arith.constant 0 : index
    %c0_179 = arith.constant 0 : index
    %388 = vector.load %arg5[%c0_178, %c0_179] : memref<2x64xf32, #tpu.memory_space<vmem>>, vector<2x64xf32>
    tpu.vector_store %arg5[%c0_178, %c0_179], %387 {strides = array<i32>} : memref<2x64xf32, #tpu.memory_space<vmem>>, vector<2x64xf32>,
    return
  }
  func.func @transform_0(%arg0: i32) -> (i32, i32, i32) {
    %c0_i32 = arith.constant 0 : i32
    %c0_i32_0 = arith.constant 0 : i32
    %c0_i32_1 = arith.constant 0 : i32
    return %arg0, %c0_i32, %c0_i32_0 : i32, i32, i32
  }
  func.func @transform_1(%arg0: i32) -> (i32, i32, i32) {
    %c0_i32 = arith.constant 0 : i32
    %c0_i32_0 = arith.constant 0 : i32
    %c0_i32_1 = arith.constant 0 : i32
    return %arg0, %c0_i32, %c0_i32_0 : i32, i32, i32
  }
  func.func @transform_2(%arg0: i32) -> (i32, i32) {
    %c0_i32 = arith.constant 0 : i32
    %c0_i32_0 = arith.constant 0 : i32
    %c0_i32_1 = arith.constant 0 : i32
    return %c0_i32, %c0_i32_0 : i32, i32
  }
  func.func @transform_3(%arg0: i32) -> (i32, i32, i32) {
    %c0_i32 = arith.constant 0 : i32
    %c0_i32_0 = arith.constant 0 : i32
    %c0_i32_1 = arith.constant 0 : i32
    return %arg0, %c0_i32, %c0_i32_0 : i32, i32, i32
  }
  func.func @transform_4(%arg0: i32) -> (i32, i32) {
    %c0_i32 = arith.constant 0 : i32
    %c0_i32_0 = arith.constant 0 : i32
    %c0_i32_1 = arith.constant 0 : i32
    return %c0_i32, %c0_i32_0 : i32, i32
  }
}

</mosaic_0001>

<llo_original>
// kernel: reverse
$region0: #{reverse}
  %s0 = inlined_call_operand.vmem [shape: f32[8,2], index: 0, kind: input, shape index: {}]
  %s1 = inlined_call_operand.vmem [shape: f32[8,2], index: 1, kind: output, shape index: {}]
  %v2 = vlaneseq
  %v3 = vsub.s32 7, %v2
  %4 = vset.pattern.permute.xlu0 %v3
  $region1: #{reverse} parent=0
    #allocation0 [shape = 'u8[4096]{0}', space=vmem, size = 0x1000, scoped, tag = 'operand span for operand 0']
    #allocation1 [shape = 'u8[1024]{0}', space=vmem, size = 0x400, scoped, tag = 'packed  for operand 0']
    #allocation2 [shape = 'u8[4096]{0}', space=vmem, size = 0x1000, scoped, tag = 'operand span for operand 1']
    #allocation3 [shape = 'u8[1024]{0}', space=vmem, size = 0x400, scoped, tag = 'packed  for operand 1']
    // Predicated region
    $region2: #{reverse} parent=1 // pred_check
      _
    $region3: #{reverse} parent=1 // pred_check_branch
      %6 = sbr.rel (0) target = $region5
    $region4: #{reverse} parent=1 // pred_region
      // Predicated region
      $region6: #{reverse} parent=4 // pred_check
        _
      $region7: #{reverse} parent=4 // pred_check_branch
        %8 = sbr.rel target = $region9
      $region8: #{reverse} parent=4 // pred_region
        // Predicated region
        $region21: #{reverse} parent=8 // pred_check
          _
        $region22: #{reverse} parent=8 // pred_check_branch
          %23 = sbr.rel (0) target = $region24
        $region23: #{reverse} parent=8 // pred_region
          loop: start=0, step=1, limit=1
          $region25: #{reverse} parent=23 // loop_pre_header
            _
          $region26: #{reverse} parent=23 // loop_header
            %s26 = sphi 0, %s30
            %p27 = scmp.ge.s32.totalorder %s26, 1
            %s31 = sphi %s0, %s0
            %s32 = sphi [#allocation1], [#allocation1]
          $region27: #{reverse} parent=23 // loop_header_branch
            %29 = sbr.rel (%p27) target = $region31
          $region28: #{reverse} parent=23 // loop_body
            %v33 = vld [vmem:[%s31] sm:$0x3]
            %34 = vst [vmem:[%s32] sm:$0x3] %v33
          $region29: #{reverse} parent=23 // loop_footer
            %s30 = sadd.s32 1, %s26
          $region30: #{reverse} parent=23 // loop_footer_branch
            %25 = sbr.rel target = $region26
          $region31: #{reverse} parent=23 // loop_exit
            _
        $region24: #{reverse} parent=8 // pred_fallthru
          _
      $region9: #{reverse} parent=4 // pred_fallthru
        _
      // Predicated region
      $region10: #{reverse} parent=4 // pred_check
        _
      $region11: #{reverse} parent=4 // pred_check_branch
        %10 = sbr.rel (0) target = $region13
      $region12: #{reverse} parent=4 // pred_region
        loop: start=0, step=1, limit=1
        $region14: #{reverse} parent=12 // loop_pre_header
          _
        $region15: #{reverse} parent=12 // loop_header
          %s13 = sphi 0, %s17
          %p14 = scmp.ge.s32.totalorder %s13, 1
          %s18 = sphi %s0, %s0
          %s19 = sphi [#allocation1], [#allocation1]
        $region16: #{reverse} parent=12 // loop_header_branch
          %16 = sbr.rel (%p14) target = $region20
        $region17: #{reverse} parent=12 // loop_body
          %v20 = vld [vmem:[%s18] sm:$0x3]
          %21 = vst [vmem:[%s19] sm:$0x3] %v20
        $region18: #{reverse} parent=12 // loop_footer
          %s17 = sadd.s32 1, %s13
        $region19: #{reverse} parent=12 // loop_footer_branch
          %12 = sbr.rel target = $region15
        $region20: #{reverse} parent=12 // loop_exit
          _
      $region13: #{reverse} parent=4 // pred_fallthru
        _
    $region5: #{reverse} parent=1 // pred_fallthru
      _
    %35 = vnop
    %s37 = sshllo.u32 0, 2
    %v38 = vld [vmem:[#allocation1] sm:%s37]
    %39 = vst [vmem:[#allocation0] sm:%s37] %v38
    %v40 = vld [vmem:[#allocation0] sm:$0xff]
    %41 = vperm.xlu0 %4, %v40
    %v42 = vpop.permute.xlu0 %41
    %43 = vst [vmem:[#allocation2] sm:$0xff] %v42
    %s45 = sshllo.u32 0, 2
    %v47 = vld [vmem:[#allocation2] sm:%s45]
    %s48 = sshllo.u32 0, 2
    %49 = vst [vmem:[#allocation3] sm:%s48] %v47
    // Predicated region
    $region32: #{reverse} parent=1 // pred_check
      _
    $region33: #{reverse} parent=1 // pred_check_branch
      %51 = sbr.rel (0) target = $region35
    $region34: #{reverse} parent=1 // pred_region
      // Predicated region
      $region36: #{reverse} parent=34 // pred_check
        _
      $region37: #{reverse} parent=34 // pred_check_branch
        %53 = sbr.rel target = $region39
      $region38: #{reverse} parent=34 // pred_region
        // Predicated region
        $region51: #{reverse} parent=38 // pred_check
          _
        $region52: #{reverse} parent=38 // pred_check_branch
          %68 = sbr.rel (0) target = $region54
        $region53: #{reverse} parent=38 // pred_region
          loop: start=0, step=1, limit=1
          $region55: #{reverse} parent=53 // loop_pre_header
            _
          $region56: #{reverse} parent=53 // loop_header
            %s71 = sphi 0, %s75
            %p72 = scmp.ge.s32.totalorder %s71, 1
            %s76 = sphi [#allocation3], [#allocation3]
            %s77 = sphi %s1, %s1
          $region57: #{reverse} parent=53 // loop_header_branch
            %74 = sbr.rel (%p72) target = $region61
          $region58: #{reverse} parent=53 // loop_body
            %v78 = vld [vmem:[%s76] sm:$0x3]
            %79 = vst [vmem:[%s77] sm:$0x3] %v78
          $region59: #{reverse} parent=53 // loop_footer
            %s75 = sadd.s32 1, %s71
          $region60: #{reverse} parent=53 // loop_footer_branch
            %70 = sbr.rel target = $region56
          $region61: #{reverse} parent=53 // loop_exit
            _
        $region54: #{reverse} parent=38 // pred_fallthru
          _
      $region39: #{reverse} parent=34 // pred_fallthru
        _
      // Predicated region
      $region40: #{reverse} parent=34 // pred_check
        _
      $region41: #{reverse} parent=34 // pred_check_branch
        %55 = sbr.rel (0) target = $region43
      $region42: #{reverse} parent=34 // pred_region
        loop: start=0, step=1, limit=1
        $region44: #{reverse} parent=42 // loop_pre_header
          _
        $region45: #{reverse} parent=42 // loop_header
          %s58 = sphi 0, %s62
          %p59 = scmp.ge.s32.totalorder %s58, 1
          %s63 = sphi [#allocation3], [#allocation3]
          %s64 = sphi %s1, %s1
        $region46: #{reverse} parent=42 // loop_header_branch
          %61 = sbr.rel (%p59) target = $region50
        $region47: #{reverse} parent=42 // loop_body
          %v65 = vld [vmem:[%s63] sm:$0x3]
          %66 = vst [vmem:[%s64] sm:$0x3] %v65
        $region48: #{reverse} parent=42 // loop_footer
          %s62 = sadd.s32 1, %s58
        $region49: #{reverse} parent=42 // loop_footer_branch
          %57 = sbr.rel target = $region45
        $region50: #{reverse} parent=42 // loop_exit
          _
      $region43: #{reverse} parent=34 // pred_fallthru
        _
    $region35: #{reverse} parent=1 // pred_fallthru
      _
    %80 = vnop

// kernel: bilstm_sequence_to_vector.3
$region0: #{bilstm_sequence_to_vector.3}
  #allocation0 [shape = 'u32[]', space=smem, size = 0x4, offset = 0x4, fixed_abs, tag = 'smem constant byte address 0x4 - core index']
  #allocation1 [shape = 'u32[144,128]{1,0:T(1,128)}', space=vmem, size = 0x12000, scoped, tag = 'internal scratch']
  #allocation2 [shape = 'f32[2,64]{1,0:T(2,128)}', space=vmem, size = 0x400, scoped, tag = 'scratch operand']
  #allocation3 [shape = 'f32[2,64]{1,0:T(2,128)}', space=vmem, size = 0x400, scoped, tag = 'scratch operand']
  %s0 = inlined_call_operand.vmem [shape: f32[8,2,256], index: 0, kind: input, shape index: {}]
  %s1 = inlined_call_operand.vmem [shape: f32[8,2,64], index: 1, kind: input, shape index: {}]
  %s2 = inlined_call_operand.vmem [shape: f32[64,256], index: 2, kind: input, shape index: {}]
  %s3 = inlined_call_operand.hbm [shape: f32[8,2,64], index: 3, kind: output, shape index: {0}]
  %s4 = inlined_call_operand.vmem [shape: f32[2,64], index: 4, kind: output, shape index: {1}]
  %5 = xla_tuple %s3, %s4
  %s6 = sld [smem:[#allocation0]]
  $region34: #{bilstm_sequence_to_vector.3} parent=0
    _
  %s8 = ssub.s32 1, %s6
  %s9 = scalar_select 0, %s8, %s6
  $region1: #{bilstm_sequence_to_vector.3} parent=0
    #allocation4 [shape = 'u8[8192]{0}', space=vmem, size = 0x2000, scoped, tag = 'output window, operand 0, single buffered']
    #allocation5 [shape = 's32[1]{0}', space=sflag, size = 0x4, scoped, tag = 'scoped memory for bilstm_sequence_to_vector.3']
    %10 = vsyncpa [#allocation5], 0
    // Predicated region
    $region2: #{bilstm_sequence_to_vector.3} parent=1 // pred_check
      _
    $region3: #{bilstm_sequence_to_vector.3} parent=1 // pred_check_branch
      %12 = sbr.rel (0) target = $region5
    $region4: #{bilstm_sequence_to_vector.3} parent=1 // pred_region
      _
    $region5: #{bilstm_sequence_to_vector.3} parent=1 // pred_fallthru
      _
    // Predicated region
    $region6: #{bilstm_sequence_to_vector.3} parent=1 // pred_check
      _
    $region7: #{bilstm_sequence_to_vector.3} parent=1 // pred_check_branch
      %14 = sbr.rel (0) target = $region9
    $region8: #{bilstm_sequence_to_vector.3} parent=1 // pred_region
      _
    $region9: #{bilstm_sequence_to_vector.3} parent=1 // pred_fallthru
      _
    // Predicated region
    $region10: #{bilstm_sequence_to_vector.3} parent=1 // pred_check
      _
    $region11: #{bilstm_sequence_to_vector.3} parent=1 // pred_check_branch
      %16 = sbr.rel (0) target = $region13
    $region12: #{bilstm_sequence_to_vector.3} parent=1 // pred_region
      _
    $region13: #{bilstm_sequence_to_vector.3} parent=1 // pred_fallthru
      _
    %p17 = scmp.eq.s32.totalorder 0, 0
    // Predicated region
    $region14: #{bilstm_sequence_to_vector.3} parent=1 // pred_check
      %p18 = pneg %p17
    $region15: #{bilstm_sequence_to_vector.3} parent=1 // pred_check_branch
      %20 = sbr.rel (%p18) target = $region17
    $region16: #{bilstm_sequence_to_vector.3} parent=1 // pred_region
      %vm21 = vcmask 517120
      %22 = vst.msk [vmem:[#allocation2] sm:$0x3] %vm21, 0.0
      %23 = vst.msk [vmem:[#allocation3] sm:$0x3] %vm21, 0.0
    $region17: #{bilstm_sequence_to_vector.3} parent=1 // pred_fallthru
      _
    %v24 = vld [vmem:[#allocation2] sm:$0x3]
    %v25 = vld [vmem:[#allocation3] sm:$0x3]
    %v26 = vld [vmem:[%s0] sm:$0xf]
    %v27 = vld [vmem:[%s2] sm:$0xff]
    %v28 = vld [vmem:[%s2 + $0x8] sm:$0xff]
    %v29 = vld [vmem:[%s2 + $0x10] sm:$0xff]
    %v30 = vld [vmem:[%s2 + $0x18] sm:$0xff]
    %v31 = vld [vmem:[%s2 + $0x20] sm:$0xff]
    %v32 = vld [vmem:[%s2 + $0x28] sm:$0xff]
    %v33 = vld [vmem:[%s2 + $0x30] sm:$0xff]
    %v34 = vld [vmem:[%s2 + $0x38] sm:$0xff]
    %v35 = vld [vmem:[%s2 + $0x40] sm:$0xff]
    %v36 = vld [vmem:[%s2 + $0x48] sm:$0xff]
    %v37 = vld [vmem:[%s2 + $0x50] sm:$0xff]
    %v38 = vld [vmem:[%s2 + $0x58] sm:$0xff]
    %v39 = vld [vmem:[%s2 + $0x60] sm:$0xff]
    %v40 = vld [vmem:[%s2 + $0x68] sm:$0xff]
    %v41 = vld [vmem:[%s2 + $0x70] sm:$0xff]
    %v42 = vld [vmem:[%s2 + $0x78] sm:$0xff]
    %vm43 = vcmask 523264
    %v45 = vsel %vm43, %v24, 0
    %47 = vmatprep.subr.mxu0 %v28
    %48 = vmatpush1.msra.mxu0 %v27
    %49 = vmatprep.subr.mxu0 %v30
    %50 = vmatpush1.msra.mxu0 %v29
    %51 = vmatprep.subr.mxu0 %v32
    %52 = vmatpush1.msra.mxu0 %v31
    %53 = vmatprep.subr.mxu0 %v34
    %54 = vmatpush1.msra.mxu0 %v33
    %55 = vmatprep.subr.mxu0 %v36
    %56 = vmatpush1.msra.mxu0 %v35
    %57 = vmatprep.subr.mxu0 %v38
    %58 = vmatpush1.msra.mxu0 %v37
    %59 = vmatprep.subr.mxu0 %v40
    %60 = vmatpush1.msra.mxu0 %v39
    %61 = vmatprep.subr.mxu0 %v42
    %62 = vmatpush1.msra.mxu0 %v41
    %63 = vmatprep.subr.mxu0 0.0
    %64 = vmatpush1.msra.mxu0 0.0
    %65 = vmatprep.subr.mxu0 0.0
    %66 = vmatpush1.msra.mxu0 0.0
    %67 = vmatprep.subr.mxu0 0.0
    %68 = vmatpush1.msra.mxu0 0.0
    %69 = vmatprep.subr.mxu0 0.0
    %70 = vmatpush1.msra.mxu0 0.0
    %71 = vmatprep.subr.mxu0 0.0
    %72 = vmatpush1.msra.mxu0 0.0
    %73 = vmatprep.subr.mxu0 0.0
    %74 = vmatpush1.msra.mxu0 0.0
    %75 = vmatprep.subr.mxu0 0.0
    %76 = vmatpush1.msra.mxu0 0.0
    %77 = vmatprep.subr.mxu0 0.0
    %78 = vmatpush1.msra.mxu0 0.0
    %79 = vmatprep.subr.mxu0 0.0
    %80 = vmatpush1.msra.mxu0 0.0
    %81 = vmatprep.subr.mxu0 0.0
    %82 = vmatpush1.msra.mxu0 0.0
    %83 = vmatprep.subr.mxu0 0.0
    %84 = vmatpush1.msra.mxu0 0.0
    %85 = vmatprep.subr.mxu0 0.0
    %86 = vmatpush1.msra.mxu0 0.0
    %87 = vmatprep.subr.mxu0 0.0
    %88 = vmatpush1.msra.mxu0 0.0
    %89 = vmatprep.subr.mxu0 0.0
    %90 = vmatpush1.msra.mxu0 0.0
    %91 = vmatprep.subr.mxu0 0.0
    %92 = vmatpush1.msra.mxu0 0.0
    %93 = vmatprep.subr.mxu0 0.0
    %94 = vmatpush1.msra.mxu0 0.0
    %95 = vmatprep.subr.mxu0 0.0
    %96 = vmatpush1.msra.mxu0 0.0
    %97 = vmatprep.subr.mxu0 0.0
    %98 = vmatpush1.msra.mxu0 0.0
    %99 = vmatprep.subr.mxu0 0.0
    %100 = vmatpush1.msra.mxu0 0.0
    %101 = vmatprep.subr.mxu0 0.0
    %102 = vmatpush1.msra.mxu0 0.0
    %103 = vmatprep.subr.mxu0 0.0
    %104 = vmatpush1.msra.mxu0 0.0
    %105 = vmatprep.subr.mxu0 0.0
    %106 = vmatpush1.msra.mxu0 0.0
    %107 = vmatprep.subr.mxu0 0.0
    %108 = vmatpush1.msra.mxu0 0.0
    %109 = vmatprep.subr.mxu0 0.0
    %110 = vmatpush1.msra.mxu0 0.0
    %111 = vmatprep.mubr.f32.mxu0 0.0
    %112 = vmatmul.mubr.f32.gmra.mrb[0].mxu0 %v45
    %v113 = vpop.f32.mrb[0].mxu0
    %v114 = vadd.f32 0.0, %v113
    %v115 = vpop.f32.mrb[0].mxu0
    %v116 = vadd.f32 0.0, %v115
    %117 = vdwg.mxu0
    %v120 = vcombine.low %v114, %v116
    %v122 = vunpack.c.l.s4 1983009808
    %v123 = vunpack.c.0.s8 %v122
    %v124 = vlaneseq
    %v125 = vshrl.u32 %v124, 7
    %v126 = vsub.s32 %v123, %v125
    %v127 = vrot.slane %v120, %v126
    %v129 = vadd.f32 %v26, %v127
    %v130 = vxor.u32 %v129, 2147483648
    %v131 = vmul.f32 %v130, 1.442695
    %v132 = vpow.pop %v131
    %v133 = vadd.f32 %v132, 1.0
    %v134 = vrcp.pop %v133
    %v135 = vmul.f32 1.0, %v134
    %v137 = vrot.slane %v129, 2
    %v139 = vtanh.pop %v137
    %140 = vrot.lane.b32.xlu0 %v129, 64
    %v141 = vpop.permute.xlu0 %140
    %v142 = vrot.slane %v141, 2
    %v144 = vxor.u32 %v142, 2147483648
    %v145 = vmul.f32 %v144, 1.442695
    %v146 = vpow.pop %v145
    %v147 = vadd.f32 %v146, 1.0
    %v148 = vrcp.pop %v147
    %v149 = vmul.f32 1.0, %v148
    %v152 = vunpack.c.l.s4 1983009808
    %v153 = vunpack.c.0.s8 %v152
    %v154 = vlaneseq
    %v155 = vshrl.u32 %v154, 7
    %v156 = vsub.s32 %v153, %v155
    %v157 = vrot.slane %v25, %v156
    %158 = vrot.lane.b32.xlu0 %v157, 64
    %v159 = vpop.permute.xlu0 %158
    %v161 = vmul.f32 %v135, %v159
    %v162 = vmul.f32 %v135, %v139
    %164 = vrot.lane.b32.xlu0 %v162, 64
    %v165 = vpop.permute.xlu0 %164
    %v167 = vadd.f32 %v161, %v165
    %v168 = vtanh.pop %v167
    %170 = vrot.lane.b32.xlu0 %v168, 64
    %v171 = vpop.permute.xlu0 %170
    %v173 = vmul.f32 %v149, %v171
    %v174 = vld [vmem:[%s1] sm:$0x3]
    %vm175 = vcmp.gt.f32.partialorder %v174, 0.5
    %v176 = vsel %vm175, %v173, %v24
    %vm177 = vcmask 517120
    %178 = vst.msk [vmem:[#allocation2] sm:$0x3] %vm177, %v176
    %v181 = vunpack.c.l.s4 1983009808
    %v182 = vunpack.c.0.s8 %v181
    %v183 = vlaneseq
    %v184 = vshrl.u32 %v183, 7
    %v185 = vsub.s32 %v182, %v184
    %v186 = vrot.slane %v167, %v185
    %187 = vrot.lane.b32.xlu0 %v186, 64
    %v188 = vpop.permute.xlu0 %187
    %v190 = vsel %vm175, %v188, %v25
    %191 = vst.msk [vmem:[#allocation3] sm:$0x3] %vm177, %v190
    %v192 = vsel %vm175, %v173, 0.0
    %193 = vst.msk [vmem:[#allocation4] sm:$0x3] %vm177, %v192
    %v194 = vld [vmem:[#allocation2] sm:$0x3]
    %v195 = vld [vmem:[#allocation3] sm:$0x3]
    %s196 = scalar_lea.vmem %s0, 4
    %v197 = vld [vmem:[%s196] sm:$0xf]
    %v198 = vld [vmem:[%s2] sm:$0xff]
    %v199 = vld [vmem:[%s2 + $0x8] sm:$0xff]
    %v200 = vld [vmem:[%s2 + $0x10] sm:$0xff]
    %v201 = vld [vmem:[%s2 + $0x18] sm:$0xff]
    %v202 = vld [vmem:[%s2 + $0x20] sm:$0xff]
    %v203 = vld [vmem:[%s2 + $0x28] sm:$0xff]
    %v204 = vld [vmem:[%s2 + $0x30] sm:$0xff]
    %v205 = vld [vmem:[%s2 + $0x38] sm:$0xff]
    %v206 = vld [vmem:[%s2 + $0x40] sm:$0xff]
    %v207 = vld [vmem:[%s2 + $0x48] sm:$0xff]
    %v208 = vld [vmem:[%s2 + $0x50] sm:$0xff]
    %v209 = vld [vmem:[%s2 + $0x58] sm:$0xff]
    %v210 = vld [vmem:[%s2 + $0x60] sm:$0xff]
    %v211 = vld [vmem:[%s2 + $0x68] sm:$0xff]
    %v212 = vld [vmem:[%s2 + $0x70] sm:$0xff]
    %v213 = vld [vmem:[%s2 + $0x78] sm:$0xff]
    %v215 = vsel %vm43, %v194, 0
    %217 = vmatprep.subr.mxu0 %v199
    %218 = vmatpush1.msra.mxu0 %v198
    %219 = vmatprep.subr.mxu0 %v201
    %220 = vmatpush1.msra.mxu0 %v200
    %221 = vmatprep.subr.mxu0 %v203
    %222 = vmatpush1.msra.mxu0 %v202
    %223 = vmatprep.subr.mxu0 %v205
    %224 = vmatpush1.msra.mxu0 %v204
    %225 = vmatprep.subr.mxu0 %v207
    %226 = vmatpush1.msra.mxu0 %v206
    %227 = vmatprep.subr.mxu0 %v209
    %228 = vmatpush1.msra.mxu0 %v208
    %229 = vmatprep.subr.mxu0 %v211
    %230 = vmatpush1.msra.mxu0 %v210
    %231 = vmatprep.subr.mxu0 %v213
    %232 = vmatpush1.msra.mxu0 %v212
    %233 = vmatprep.subr.mxu0 0.0
    %234 = vmatpush1.msra.mxu0 0.0
    %235 = vmatprep.subr.mxu0 0.0
    %236 = vmatpush1.msra.mxu0 0.0
    %237 = vmatprep.subr.mxu0 0.0
    %238 = vmatpush1.msra.mxu0 0.0
    %239 = vmatprep.subr.mxu0 0.0
    %240 = vmatpush1.msra.mxu0 0.0
    %241 = vmatprep.subr.mxu0 0.0
    %242 = vmatpush1.msra.mxu0 0.0
    %243 = vmatprep.subr.mxu0 0.0
    %244 = vmatpush1.msra.mxu0 0.0
    %245 = vmatprep.subr.mxu0 0.0
    %246 = vmatpush1.msra.mxu0 0.0
    %247 = vmatprep.subr.mxu0 0.0
    %248 = vmatpush1.msra.mxu0 0.0
    %249 = vmatprep.subr.mxu0 0.0
    %250 = vmatpush1.msra.mxu0 0.0
    %251 = vmatprep.subr.mxu0 0.0
    %252 = vmatpush1.msra.mxu0 0.0
    %253 = vmatprep.subr.mxu0 0.0
    %254 = vmatpush1.msra.mxu0 0.0
    %255 = vmatprep.subr.mxu0 0.0
    %256 = vmatpush1.msra.mxu0 0.0
    %257 = vmatprep.subr.mxu0 0.0
    %258 = vmatpush1.msra.mxu0 0.0
    %259 = vmatprep.subr.mxu0 0.0
    %260 = vmatpush1.msra.mxu0 0.0
    %261 = vmatprep.subr.mxu0 0.0
    %262 = vmatpush1.msra.mxu0 0.0
    %263 = vmatprep.subr.mxu0 0.0
    %264 = vmatpush1.msra.mxu0 0.0
    %265 = vmatprep.subr.mxu0 0.0
    %266 = vmatpush1.msra.mxu0 0.0
    %267 = vmatprep.subr.mxu0 0.0
    %268 = vmatpush1.msra.mxu0 0.0
    %269 = vmatprep.subr.mxu0 0.0
    %270 = vmatpush1.msra.mxu0 0.0
    %271 = vmatprep.subr.mxu0 0.0
    %272 = vmatpush1.msra.mxu0 0.0
    %273 = vmatprep.subr.mxu0 0.0
    %274 = vmatpush1.msra.mxu0 0.0
    %275 = vmatprep.subr.mxu0 0.0
    %276 = vmatpush1.msra.mxu0 0.0
    %277 = vmatprep.subr.mxu0 0.0
    %278 = vmatpush1.msra.mxu0 0.0
    %279 = vmatprep.subr.mxu0 0.0
    %280 = vmatpush1.msra.mxu0 0.0
    %281 = vmatprep.mubr.f32.mxu0 0.0
    %282 = vmatmul.mubr.f32.gmra.mrb[0].mxu0 %v215
    %v283 = vpop.f32.mrb[0].mxu0
    %v284 = vadd.f32 0.0, %v283
    %v285 = vpop.f32.mrb[0].mxu0
    %v286 = vadd.f32 0.0, %v285
    %287 = vdwg.mxu0
    %v290 = vcombine.low %v284, %v286
    %v292 = vunpack.c.l.s4 1983009808
    %v293 = vunpack.c.0.s8 %v292
    %v294 = vlaneseq
    %v295 = vshrl.u32 %v294, 7
    %v296 = vsub.s32 %v293, %v295
    %v297 = vrot.slane %v290, %v296
    %v299 = vadd.f32 %v197, %v297
    %v300 = vxor.u32 %v299, 2147483648
    %v301 = vmul.f32 %v300, 1.442695
    %v302 = vpow.pop %v301
    %v303 = vadd.f32 %v302, 1.0
    %v304 = vrcp.pop %v303
    %v305 = vmul.f32 1.0, %v304
    %v307 = vrot.slane %v299, 2
    %v309 = vtanh.pop %v307
    %310 = vrot.lane.b32.xlu0 %v299, 64
    %v311 = vpop.permute.xlu0 %310
    %v312 = vrot.slane %v311, 2
    %v314 = vxor.u32 %v312, 2147483648
    %v315 = vmul.f32 %v314, 1.442695
    %v316 = vpow.pop %v315
    %v317 = vadd.f32 %v316, 1.0
    %v318 = vrcp.pop %v317
    %v319 = vmul.f32 1.0, %v318
    %v322 = vunpack.c.l.s4 1983009808
    %v323 = vunpack.c.0.s8 %v322
    %v324 = vlaneseq
    %v325 = vshrl.u32 %v324, 7
    %v326 = vsub.s32 %v323, %v325
    %v327 = vrot.slane %v195, %v326
    %328 = vrot.lane.b32.xlu0 %v327, 64
    %v329 = vpop.permute.xlu0 %328
    %v331 = vmul.f32 %v305, %v329
    %v332 = vmul.f32 %v305, %v309
    %334 = vrot.lane.b32.xlu0 %v332, 64
    %v335 = vpop.permute.xlu0 %334
    %v337 = vadd.f32 %v331, %v335
    %v338 = vtanh.pop %v337
    %340 = vrot.lane.b32.xlu0 %v338, 64
    %v341 = vpop.permute.xlu0 %340
    %v343 = vmul.f32 %v319, %v341
    %s344 = scalar_lea.vmem %s1, 2
    %v345 = vld [vmem:[%s344] sm:$0x3]
    %vm346 = vcmp.gt.f32.partialorder %v345, 0.5
    %v347 = vsel %vm346, %v343, %v194
    %348 = vst.msk [vmem:[#allocation2] sm:$0x3] %vm177, %v347
    %v351 = vunpack.c.l.s4 1983009808
    %v352 = vunpack.c.0.s8 %v351
    %v353 = vlaneseq
    %v354 = vshrl.u32 %v353, 7
    %v355 = vsub.s32 %v352, %v354
    %v356 = vrot.slane %v337, %v355
    %357 = vrot.lane.b32.xlu0 %v356, 64
    %v358 = vpop.permute.xlu0 %357
    %v360 = vsel %vm346, %v358, %v195
    %361 = vst.msk [vmem:[#allocation3] sm:$0x3] %vm177, %v360
    %v362 = vsel %vm346, %v343, 0.0
    %s363 = scalar_lea.vmem [#allocation4], 2
    %364 = vst.msk [vmem:[%s363] sm:$0x3] %vm177, %v362
    %v365 = vld [vmem:[#allocation2] sm:$0x3]
    %v366 = vld [vmem:[#allocation3] sm:$0x3]
    %s367 = scalar_lea.vmem %s0, 8
    %v368 = vld [vmem:[%s367] sm:$0xf]
    %v369 = vld [vmem:[%s2] sm:$0xff]
    %v370 = vld [vmem:[%s2 + $0x8] sm:$0xff]
    %v371 = vld [vmem:[%s2 + $0x10] sm:$0xff]
    %v372 = vld [vmem:[%s2 + $0x18] sm:$0xff]
    %v373 = vld [vmem:[%s2 + $0x20] sm:$0xff]
    %v374 = vld [vmem:[%s2 + $0x28] sm:$0xff]
    %v375 = vld [vmem:[%s2 + $0x30] sm:$0xff]
    %v376 = vld [vmem:[%s2 + $0x38] sm:$0xff]
    %v377 = vld [vmem:[%s2 + $0x40] sm:$0xff]
    %v378 = vld [vmem:[%s2 + $0x48] sm:$0xff]
    %v379 = vld [vmem:[%s2 + $0x50] sm:$0xff]
    %v380 = vld [vmem:[%s2 + $0x58] sm:$0xff]
    %v381 = vld [vmem:[%s2 + $0x60] sm:$0xff]
    %v382 = vld [vmem:[%s2 + $0x68] sm:$0xff]
    %v383 = vld [vmem:[%s2 + $0x70] sm:$0xff]
    %v384 = vld [vmem:[%s2 + $0x78] sm:$0xff]
    %v386 = vsel %vm43, %v365, 0
    %388 = vmatprep.subr.mxu0 %v370
    %389 = vmatpush1.msra.mxu0 %v369
    %390 = vmatprep.subr.mxu0 %v372
    %391 = vmatpush1.msra.mxu0 %v371
    %392 = vmatprep.subr.mxu0 %v374
    %393 = vmatpush1.msra.mxu0 %v373
    %394 = vmatprep.subr.mxu0 %v376
    %395 = vmatpush1.msra.mxu0 %v375
    %396 = vmatprep.subr.mxu0 %v378
    %397 = vmatpush1.msra.mxu0 %v377
    %398 = vmatprep.subr.mxu0 %v380
    %399 = vmatpush1.msra.mxu0 %v379
    %400 = vmatprep.subr.mxu0 %v382
    %401 = vmatpush1.msra.mxu0 %v381
    %402 = vmatprep.subr.mxu0 %v384
    %403 = vmatpush1.msra.mxu0 %v383
    %404 = vmatprep.subr.mxu0 0.0
    %405 = vmatpush1.msra.mxu0 0.0
    %406 = vmatprep.subr.mxu0 0.0
    %407 = vmatpush1.msra.mxu0 0.0
    %408 = vmatprep.subr.mxu0 0.0
    %409 = vmatpush1.msra.mxu0 0.0
    %410 = vmatprep.subr.mxu0 0.0
    %411 = vmatpush1.msra.mxu0 0.0
    %412 = vmatprep.subr.mxu0 0.0
    %413 = vmatpush1.msra.mxu0 0.0
    %414 = vmatprep.subr.mxu0 0.0
    %415 = vmatpush1.msra.mxu0 0.0
    %416 = vmatprep.subr.mxu0 0.0
    %417 = vmatpush1.msra.mxu0 0.0
    %418 = vmatprep.subr.mxu0 0.0
    %419 = vmatpush1.msra.mxu0 0.0
    %420 = vmatprep.subr.mxu0 0.0
    %421 = vmatpush1.msra.mxu0 0.0
    %422 = vmatprep.subr.mxu0 0.0
    %423 = vmatpush1.msra.mxu0 0.0
    %424 = vmatprep.subr.mxu0 0.0
    %425 = vmatpush1.msra.mxu0 0.0
    %426 = vmatprep.subr.mxu0 0.0
    %427 = vmatpush1.msra.mxu0 0.0
    %428 = vmatprep.subr.mxu0 0.0
    %429 = vmatpush1.msra.mxu0 0.0
    %430 = vmatprep.subr.mxu0 0.0
    %431 = vmatpush1.msra.mxu0 0.0
    %432 = vmatprep.subr.mxu0 0.0
    %433 = vmatpush1.msra.mxu0 0.0
    %434 = vmatprep.subr.mxu0 0.0
    %435 = vmatpush1.msra.mxu0 0.0
    %436 = vmatprep.subr.mxu0 0.0
    %437 = vmatpush1.msra.mxu0 0.0
    %438 = vmatprep.subr.mxu0 0.0
    %439 = vmatpush1.msra.mxu0 0.0
    %440 = vmatprep.subr.mxu0 0.0
    %441 = vmatpush1.msra.mxu0 0.0
    %442 = vmatprep.subr.mxu0 0.0
    %443 = vmatpush1.msra.mxu0 0.0
    %444 = vmatprep.subr.mxu0 0.0
    %445 = vmatpush1.msra.mxu0 0.0
    %446 = vmatprep.subr.mxu0 0.0
    %447 = vmatpush1.msra.mxu0 0.0
    %448 = vmatprep.subr.mxu0 0.0
    %449 = vmatpush1.msra.mxu0 0.0
    %450 = vmatprep.subr.mxu0 0.0
    %451 = vmatpush1.msra.mxu0 0.0
    %452 = vmatprep.mubr.f32.mxu0 0.0
    %453 = vmatmul.mubr.f32.gmra.mrb[0].mxu0 %v386
    %v454 = vpop.f32.mrb[0].mxu0
    %v455 = vadd.f32 0.0, %v454
    %v456 = vpop.f32.mrb[0].mxu0
    %v457 = vadd.f32 0.0, %v456
    %458 = vdwg.mxu0
    %v461 = vcombine.low %v455, %v457
    %v463 = vunpack.c.l.s4 1983009808
    %v464 = vunpack.c.0.s8 %v463
    %v465 = vlaneseq
    %v466 = vshrl.u32 %v465, 7
    %v467 = vsub.s32 %v464, %v466
    %v468 = vrot.slane %v461, %v467
    %v470 = vadd.f32 %v368, %v468
    %v471 = vxor.u32 %v470, 2147483648
    %v472 = vmul.f32 %v471, 1.442695
    %v473 = vpow.pop %v472
    %v474 = vadd.f32 %v473, 1.0
    %v475 = vrcp.pop %v474
    %v476 = vmul.f32 1.0, %v475
    %v478 = vrot.slane %v470, 2
    %v480 = vtanh.pop %v478
    %481 = vrot.lane.b32.xlu0 %v470, 64
    %v482 = vpop.permute.xlu0 %481
    %v483 = vrot.slane %v482, 2
    %v485 = vxor.u32 %v483, 2147483648
    %v486 = vmul.f32 %v485, 1.442695
    %v487 = vpow.pop %v486
    %v488 = vadd.f32 %v487, 1.0
    %v489 = vrcp.pop %v488
    %v490 = vmul.f32 1.0, %v489
    %v493 = vunpack.c.l.s4 1983009808
    %v494 = vunpack.c.0.s8 %v493
    %v495 = vlaneseq
    %v496 = vshrl.u32 %v495, 7
    %v497 = vsub.s32 %v494, %v496
    %v498 = vrot.slane %v366, %v497
    %499 = vrot.lane.b32.xlu0 %v498, 64
    %v500 = vpop.permute.xlu0 %499
    %v502 = vmul.f32 %v476, %v500
    %v503 = vmul.f32 %v476, %v480
    %505 = vrot.lane.b32.xlu0 %v503, 64
    %v506 = vpop.permute.xlu0 %505
    %v508 = vadd.f32 %v502, %v506
    %v509 = vtanh.pop %v508
    %511 = vrot.lane.b32.xlu0 %v509, 64
    %v512 = vpop.permute.xlu0 %511
    %v514 = vmul.f32 %v490, %v512
    %s515 = scalar_lea.vmem %s1, 4
    %v516 = vld [vmem:[%s515] sm:$0x3]
    %vm517 = vcmp.gt.f32.partialorder %v516, 0.5
    %v518 = vsel %vm517, %v514, %v365
    %519 = vst.msk [vmem:[#allocation2] sm:$0x3] %vm177, %v518
    %v522 = vunpack.c.l.s4 1983009808
    %v523 = vunpack.c.0.s8 %v522
    %v524 = vlaneseq
    %v525 = vshrl.u32 %v524, 7
    %v526 = vsub.s32 %v523, %v525
    %v527 = vrot.slane %v508, %v526
    %528 = vrot.lane.b32.xlu0 %v527, 64
    %v529 = vpop.permute.xlu0 %528
    %v531 = vsel %vm517, %v529, %v366
    %532 = vst.msk [vmem:[#allocation3] sm:$0x3] %vm177, %v531
    %v533 = vsel %vm517, %v514, 0.0
    %s534 = scalar_lea.vmem [#allocation4], 4
    %535 = vst.msk [vmem:[%s534] sm:$0x3] %vm177, %v533
    %v536 = vld [vmem:[#allocation2] sm:$0x3]
    %v537 = vld [vmem:[#allocation3] sm:$0x3]
    %s538 = scalar_lea.vmem %s0, 12
    %v539 = vld [vmem:[%s538] sm:$0xf]
    %v540 = vld [vmem:[%s2] sm:$0xff]
    %v541 = vld [vmem:[%s2 + $0x8] sm:$0xff]
    %v542 = vld [vmem:[%s2 + $0x10] sm:$0xff]
    %v543 = vld [vmem:[%s2 + $0x18] sm:$0xff]
    %v544 = vld [vmem:[%s2 + $0x20] sm:$0xff]
    %v545 = vld [vmem:[%s2 + $0x28] sm:$0xff]
    %v546 = vld [vmem:[%s2 + $0x30] sm:$0xff]
    %v547 = vld [vmem:[%s2 + $0x38] sm:$0xff]
    %v548 = vld [vmem:[%s2 + $0x40] sm:$0xff]
    %v549 = vld [vmem:[%s2 + $0x48] sm:$0xff]
    %v550 = vld [vmem:[%s2 + $0x50] sm:$0xff]
    %v551 = vld [vmem:[%s2 + $0x58] sm:$0xff]
    %v552 = vld [vmem:[%s2 + $0x60] sm:$0xff]
    %v553 = vld [vmem:[%s2 + $0x68] sm:$0xff]
    %v554 = vld [vmem:[%s2 + $0x70] sm:$0xff]
    %v555 = vld [vmem:[%s2 + $0x78] sm:$0xff]
    %v557 = vsel %vm43, %v536, 0
    %559 = vmatprep.subr.mxu0 %v541
    %560 = vmatpush1.msra.mxu0 %v540
    %561 = vmatprep.subr.mxu0 %v543
    %562 = vmatpush1.msra.mxu0 %v542
    %563 = vmatprep.subr.mxu0 %v545
    %564 = vmatpush1.msra.mxu0 %v544
    %565 = vmatprep.subr.mxu0 %v547
    %566 = vmatpush1.msra.mxu0 %v546
    %567 = vmatprep.subr.mxu0 %v549
    %568 = vmatpush1.msra.mxu0 %v548
    %569 = vmatprep.subr.mxu0 %v551
    %570 = vmatpush1.msra.mxu0 %v550
    %571 = vmatprep.subr.mxu0 %v553
    %572 = vmatpush1.msra.mxu0 %v552
    %573 = vmatprep.subr.mxu0 %v555
    %574 = vmatpush1.msra.mxu0 %v554
    %575 = vmatprep.subr.mxu0 0.0
    %576 = vmatpush1.msra.mxu0 0.0
    %577 = vmatprep.subr.mxu0 0.0
    %578 = vmatpush1.msra.mxu0 0.0
    %579 = vmatprep.subr.mxu0 0.0
    %580 = vmatpush1.msra.mxu0 0.0
    %581 = vmatprep.subr.mxu0 0.0
    %582 = vmatpush1.msra.mxu0 0.0
    %583 = vmatprep.subr.mxu0 0.0
    %584 = vmatpush1.msra.mxu0 0.0
    %585 = vmatprep.subr.mxu0 0.0
    %586 = vmatpush1.msra.mxu0 0.0
    %587 = vmatprep.subr.mxu0 0.0
    %588 = vmatpush1.msra.mxu0 0.0
    %589 = vmatprep.subr.mxu0 0.0
    %590 = vmatpush1.msra.mxu0 0.0
    %591 = vmatprep.subr.mxu0 0.0
    %592 = vmatpush1.msra.mxu0 0.0
    %593 = vmatprep.subr.mxu0 0.0
    %594 = vmatpush1.msra.mxu0 0.0
    %595 = vmatprep.subr.mxu0 0.0
    %596 = vmatpush1.msra.mxu0 0.0
    %597 = vmatprep.subr.mxu0 0.0
    %598 = vmatpush1.msra.mxu0 0.0
    %599 = vmatprep.subr.mxu0 0.0
    %600 = vmatpush1.msra.mxu0 0.0
    %601 = vmatprep.subr.mxu0 0.0
    %602 = vmatpush1.msra.mxu0 0.0
    %603 = vmatprep.subr.mxu0 0.0
    %604 = vmatpush1.msra.mxu0 0.0
    %605 = vmatprep.subr.mxu0 0.0
    %606 = vmatpush1.msra.mxu0 0.0
    %607 = vmatprep.subr.mxu0 0.0
    %608 = vmatpush1.msra.mxu0 0.0
    %609 = vmatprep.subr.mxu0 0.0
    %610 = vmatpush1.msra.mxu0 0.0
    %611 = vmatprep.subr.mxu0 0.0
    %612 = vmatpush1.msra.mxu0 0.0
    %613 = vmatprep.subr.mxu0 0.0
    %614 = vmatpush1.msra.mxu0 0.0
    %615 = vmatprep.subr.mxu0 0.0
    %616 = vmatpush1.msra.mxu0 0.0
    %617 = vmatprep.subr.mxu0 0.0
    %618 = vmatpush1.msra.mxu0 0.0
    %619 = vmatprep.subr.mxu0 0.0
    %620 = vmatpush1.msra.mxu0 0.0
    %621 = vmatprep.subr.mxu0 0.0
    %622 = vmatpush1.msra.mxu0 0.0
    %623 = vmatprep.mubr.f32.mxu0 0.0
    %624 = vmatmul.mubr.f32.gmra.mrb[0].mxu0 %v557
    %v625 = vpop.f32.mrb[0].mxu0
    %v626 = vadd.f32 0.0, %v625
    %v627 = vpop.f32.mrb[0].mxu0
    %v628 = vadd.f32 0.0, %v627
    %629 = vdwg.mxu0
    %v632 = vcombine.low %v626, %v628
    %v634 = vunpack.c.l.s4 1983009808
    %v635 = vunpack.c.0.s8 %v634
    %v636 = vlaneseq
    %v637 = vshrl.u32 %v636, 7
    %v638 = vsub.s32 %v635, %v637
    %v639 = vrot.slane %v632, %v638
    %v641 = vadd.f32 %v539, %v639
    %v642 = vxor.u32 %v641, 2147483648
    %v643 = vmul.f32 %v642, 1.442695
    %v644 = vpow.pop %v643
    %v645 = vadd.f32 %v644, 1.0
    %v646 = vrcp.pop %v645
    %v647 = vmul.f32 1.0, %v646
    %v649 = vrot.slane %v641, 2
    %v651 = vtanh.pop %v649
    %652 = vrot.lane.b32.xlu0 %v641, 64
    %v653 = vpop.permute.xlu0 %652
    %v654 = vrot.slane %v653, 2
    %v656 = vxor.u32 %v654, 2147483648
    %v657 = vmul.f32 %v656, 1.442695
    %v658 = vpow.pop %v657
    %v659 = vadd.f32 %v658, 1.0
    %v660 = vrcp.pop %v659
    %v661 = vmul.f32 1.0, %v660
    %v664 = vunpack.c.l.s4 1983009808
    %v665 = vunpack.c.0.s8 %v664
    %v666 = vlaneseq
    %v667 = vshrl.u32 %v666, 7
    %v668 = vsub.s32 %v665, %v667
    %v669 = vrot.slane %v537, %v668
    %670 = vrot.lane.b32.xlu0 %v669, 64
    %v671 = vpop.permute.xlu0 %670
    %v673 = vmul.f32 %v647, %v671
    %v674 = vmul.f32 %v647, %v651
    %676 = vrot.lane.b32.xlu0 %v674, 64
    %v677 = vpop.permute.xlu0 %676
    %v679 = vadd.f32 %v673, %v677
    %v680 = vtanh.pop %v679
    %682 = vrot.lane.b32.xlu0 %v680, 64
    %v683 = vpop.permute.xlu0 %682
    %v685 = vmul.f32 %v661, %v683
    %s686 = scalar_lea.vmem %s1, 6
    %v687 = vld [vmem:[%s686] sm:$0x3]
    %vm688 = vcmp.gt.f32.partialorder %v687, 0.5
    %v689 = vsel %vm688, %v685, %v536
    %690 = vst.msk [vmem:[#allocation2] sm:$0x3] %vm177, %v689
    %v693 = vunpack.c.l.s4 1983009808
    %v694 = vunpack.c.0.s8 %v693
    %v695 = vlaneseq
    %v696 = vshrl.u32 %v695, 7
    %v697 = vsub.s32 %v694, %v696
    %v698 = vrot.slane %v679, %v697
    %699 = vrot.lane.b32.xlu0 %v698, 64
    %v700 = vpop.permute.xlu0 %699
    %v702 = vsel %vm688, %v700, %v537
    %703 = vst.msk [vmem:[#allocation3] sm:$0x3] %vm177, %v702
    %v704 = vsel %vm688, %v685, 0.0
    %s705 = scalar_lea.vmem [#allocation4], 6
    %706 = vst.msk [vmem:[%s705] sm:$0x3] %vm177, %v704
    %v707 = vld [vmem:[#allocation2] sm:$0x3]
    %v708 = vld [vmem:[#allocation3] sm:$0x3]
    %s709 = scalar_lea.vmem %s0, 16
    %v710 = vld [vmem:[%s709] sm:$0xf]
    %v711 = vld [vmem:[%s2] sm:$0xff]
    %v712 = vld [vmem:[%s2 + $0x8] sm:$0xff]
    %v713 = vld [vmem:[%s2 + $0x10] sm:$0xff]
    %v714 = vld [vmem:[%s2 + $0x18] sm:$0xff]
    %v715 = vld [vmem:[%s2 + $0x20] sm:$0xff]
    %v716 = vld [vmem:[%s2 + $0x28] sm:$0xff]
    %v717 = vld [vmem:[%s2 + $0x30] sm:$0xff]
    %v718 = vld [vmem:[%s2 + $0x38] sm:$0xff]
    %v719 = vld [vmem:[%s2 + $0x40] sm:$0xff]
    %v720 = vld [vmem:[%s2 + $0x48] sm:$0xff]
    %v721 = vld [vmem:[%s2 + $0x50] sm:$0xff]
    %v722 = vld [vmem:[%s2 + $0x58] sm:$0xff]
    %v723 = vld [vmem:[%s2 + $0x60] sm:$0xff]
    %v724 = vld [vmem:[%s2 + $0x68] sm:$0xff]
    %v725 = vld [vmem:[%s2 + $0x70] sm:$0xff]
    %v726 = vld [vmem:[%s2 + $0x78] sm:$0xff]
    %v728 = vsel %vm43, %v707, 0
    %730 = vmatprep.subr.mxu0 %v712
    %731 = vmatpush1.msra.mxu0 %v711
    %732 = vmatprep.subr.mxu0 %v714
    %733 = vmatpush1.msra.mxu0 %v713
    %734 = vmatprep.subr.mxu0 %v716
    %735 = vmatpush1.msra.mxu0 %v715
    %736 = vmatprep.subr.mxu0 %v718
    %737 = vmatpush1.msra.mxu0 %v717
    %738 = vmatprep.subr.mxu0 %v720
    %739 = vmatpush1.msra.mxu0 %v719
    %740 = vmatprep.subr.mxu0 %v722
    %741 = vmatpush1.msra.mxu0 %v721
    %742 = vmatprep.subr.mxu0 %v724
    %743 = vmatpush1.msra.mxu0 %v723
    %744 = vmatprep.subr.mxu0 %v726
    %745 = vmatpush1.msra.mxu0 %v725
    %746 = vmatprep.subr.mxu0 0.0
    %747 = vmatpush1.msra.mxu0 0.0
    %748 = vmatprep.subr.mxu0 0.0
    %749 = vmatpush1.msra.mxu0 0.0
    %750 = vmatprep.subr.mxu0 0.0
    %751 = vmatpush1.msra.mxu0 0.0
    %752 = vmatprep.subr.mxu0 0.0
    %753 = vmatpush1.msra.mxu0 0.0
    %754 = vmatprep.subr.mxu0 0.0
    %755 = vmatpush1.msra.mxu0 0.0
    %756 = vmatprep.subr.mxu0 0.0
    %757 = vmatpush1.msra.mxu0 0.0
    %758 = vmatprep.subr.mxu0 0.0
    %759 = vmatpush1.msra.mxu0 0.0
    %760 = vmatprep.subr.mxu0 0.0
    %761 = vmatpush1.msra.mxu0 0.0
    %762 = vmatprep.subr.mxu0 0.0
    %763 = vmatpush1.msra.mxu0 0.0
    %764 = vmatprep.subr.mxu0 0.0
    %765 = vmatpush1.msra.mxu0 0.0
    %766 = vmatprep.subr.mxu0 0.0
    %767 = vmatpush1.msra.mxu0 0.0
    %768 = vmatprep.subr.mxu0 0.0
    %769 = vmatpush1.msra.mxu0 0.0
    %770 = vmatprep.subr.mxu0 0.0
    %771 = vmatpush1.msra.mxu0 0.0
    %772 = vmatprep.subr.mxu0 0.0
    %773 = vmatpush1.msra.mxu0 0.0
    %774 = vmatprep.subr.mxu0 0.0
    %775 = vmatpush1.msra.mxu0 0.0
    %776 = vmatprep.subr.mxu0 0.0
    %777 = vmatpush1.msra.mxu0 0.0
    %778 = vmatprep.subr.mxu0 0.0
    %779 = vmatpush1.msra.mxu0 0.0
    %780 = vmatprep.subr.mxu0 0.0
    %781 = vmatpush1.msra.mxu0 0.0
    %782 = vmatprep.subr.mxu0 0.0
    %783 = vmatpush1.msra.mxu0 0.0
    %784 = vmatprep.subr.mxu0 0.0
    %785 = vmatpush1.msra.mxu0 0.0
    %786 = vmatprep.subr.mxu0 0.0
    %787 = vmatpush1.msra.mxu0 0.0
    %788 = vmatprep.subr.mxu0 0.0
    %789 = vmatpush1.msra.mxu0 0.0
    %790 = vmatprep.subr.mxu0 0.0
    %791 = vmatpush1.msra.mxu0 0.0
    %792 = vmatprep.subr.mxu0 0.0
    %793 = vmatpush1.msra.mxu0 0.0
    %794 = vmatprep.mubr.f32.mxu0 0.0
    %795 = vmatmul.mubr.f32.gmra.mrb[0].mxu0 %v728
    %v796 = vpop.f32.mrb[0].mxu0
    %v797 = vadd.f32 0.0, %v796
    %v798 = vpop.f32.mrb[0].mxu0
    %v799 = vadd.f32 0.0, %v798
    %800 = vdwg.mxu0
    %v803 = vcombine.low %v797, %v799
    %v805 = vunpack.c.l.s4 1983009808
    %v806 = vunpack.c.0.s8 %v805
    %v807 = vlaneseq
    %v808 = vshrl.u32 %v807, 7
    %v809 = vsub.s32 %v806, %v808
    %v810 = vrot.slane %v803, %v809
    %v812 = vadd.f32 %v710, %v810
    %v813 = vxor.u32 %v812, 2147483648
    %v814 = vmul.f32 %v813, 1.442695
    %v815 = vpow.pop %v814
    %v816 = vadd.f32 %v815, 1.0
    %v817 = vrcp.pop %v816
    %v818 = vmul.f32 1.0, %v817
    %v820 = vrot.slane %v812, 2
    %v822 = vtanh.pop %v820
    %823 = vrot.lane.b32.xlu0 %v812, 64
    %v824 = vpop.permute.xlu0 %823
    %v825 = vrot.slane %v824, 2
    %v827 = vxor.u32 %v825, 2147483648
    %v828 = vmul.f32 %v827, 1.442695
    %v829 = vpow.pop %v828
    %v830 = vadd.f32 %v829, 1.0
    %v831 = vrcp.pop %v830
    %v832 = vmul.f32 1.0, %v831
    %v835 = vunpack.c.l.s4 1983009808
    %v836 = vunpack.c.0.s8 %v835
    %v837 = vlaneseq
    %v838 = vshrl.u32 %v837, 7
    %v839 = vsub.s32 %v836, %v838
    %v840 = vrot.slane %v708, %v839
    %841 = vrot.lane.b32.xlu0 %v840, 64
    %v842 = vpop.permute.xlu0 %841
    %v844 = vmul.f32 %v818, %v842
    %v845 = vmul.f32 %v818, %v822
    %847 = vrot.lane.b32.xlu0 %v845, 64
    %v848 = vpop.permute.xlu0 %847
    %v850 = vadd.f32 %v844, %v848
    %v851 = vtanh.pop %v850
    %853 = vrot.lane.b32.xlu0 %v851, 64
    %v854 = vpop.permute.xlu0 %853
    %v856 = vmul.f32 %v832, %v854
    %s857 = scalar_lea.vmem %s1, 8
    %v858 = vld [vmem:[%s857] sm:$0x3]
    %vm859 = vcmp.gt.f32.partialorder %v858, 0.5
    %v860 = vsel %vm859, %v856, %v707
    %861 = vst.msk [vmem:[#allocation2] sm:$0x3] %vm177, %v860
    %v864 = vunpack.c.l.s4 1983009808
    %v865 = vunpack.c.0.s8 %v864
    %v866 = vlaneseq
    %v867 = vshrl.u32 %v866, 7
    %v868 = vsub.s32 %v865, %v867
    %v869 = vrot.slane %v850, %v868
    %870 = vrot.lane.b32.xlu0 %v869, 64
    %v871 = vpop.permute.xlu0 %870
    %v873 = vsel %vm859, %v871, %v708
    %874 = vst.msk [vmem:[#allocation3] sm:$0x3] %vm177, %v873
    %v875 = vsel %vm859, %v856, 0.0
    %s876 = scalar_lea.vmem [#allocation4], 8
    %877 = vst.msk [vmem:[%s876] sm:$0x3] %vm177, %v875
    %v878 = vld [vmem:[#allocation2] sm:$0x3]
    %v879 = vld [vmem:[#allocation3] sm:$0x3]
    %s880 = scalar_lea.vmem %s0, 20
    %v881 = vld [vmem:[%s880] sm:$0xf]
    %v882 = vld [vmem:[%s2] sm:$0xff]
    %v883 = vld [vmem:[%s2 + $0x8] sm:$0xff]
    %v884 = vld [vmem:[%s2 + $0x10] sm:$0xff]
    %v885 = vld [vmem:[%s2 + $0x18] sm:$0xff]
    %v886 = vld [vmem:[%s2 + $0x20] sm:$0xff]
    %v887 = vld [vmem:[%s2 + $0x28] sm:$0xff]
    %v888 = vld [vmem:[%s2 + $0x30] sm:$0xff]
    %v889 = vld [vmem:[%s2 + $0x38] sm:$0xff]
    %v890 = vld [vmem:[%s2 + $0x40] sm:$0xff]
    %v891 = vld [vmem:[%s2 + $0x48] sm:$0xff]
    %v892 = vld [vmem:[%s2 + $0x50] sm:$0xff]
    %v893 = vld [vmem:[%s2 + $0x58] sm:$0xff]
    %v894 = vld [vmem:[%s2 + $0x60] sm:$0xff]
    %v895 = vld [vmem:[%s2 + $0x68] sm:$0xff]
    %v896 = vld [vmem:[%s2 + $0x70] sm:$0xff]
    %v897 = vld [vmem:[%s2 + $0x78] sm:$0xff]
    %v899 = vsel %vm43, %v878, 0
    %901 = vmatprep.subr.mxu0 %v883
    %902 = vmatpush1.msra.mxu0 %v882
    %903 = vmatprep.subr.mxu0 %v885
    %904 = vmatpush1.msra.mxu0 %v884
    %905 = vmatprep.subr.mxu0 %v887
    %906 = vmatpush1.msra.mxu0 %v886
    %907 = vmatprep.subr.mxu0 %v889
    %908 = vmatpush1.msra.mxu0 %v888
    %909 = vmatprep.subr.mxu0 %v891
    %910 = vmatpush1.msra.mxu0 %v890
    %911 = vmatprep.subr.mxu0 %v893
    %912 = vmatpush1.msra.mxu0 %v892
    %913 = vmatprep.subr.mxu0 %v895
    %914 = vmatpush1.msra.mxu0 %v894
    %915 = vmatprep.subr.mxu0 %v897
    %916 = vmatpush1.msra.mxu0 %v896
    %917 = vmatprep.subr.mxu0 0.0
    %918 = vmatpush1.msra.mxu0 0.0
    %919 = vmatprep.subr.mxu0 0.0
    %920 = vmatpush1.msra.mxu0 0.0
    %921 = vmatprep.subr.mxu0 0.0
    %922 = vmatpush1.msra.mxu0 0.0
    %923 = vmatprep.subr.mxu0 0.0
    %924 = vmatpush1.msra.mxu0 0.0
    %925 = vmatprep.subr.mxu0 0.0
    %926 = vmatpush1.msra.mxu0 0.0
    %927 = vmatprep.subr.mxu0 0.0
    %928 = vmatpush1.msra.mxu0 0.0
    %929 = vmatprep.subr.mxu0 0.0
    %930 = vmatpush1.msra.mxu0 0.0
    %931 = vmatprep.subr.mxu0 0.0
    %932 = vmatpush1.msra.mxu0 0.0
    %933 = vmatprep.subr.mxu0 0.0
    %934 = vmatpush1.msra.mxu0 0.0
    %935 = vmatprep.subr.mxu0 0.0
    %936 = vmatpush1.msra.mxu0 0.0
    %937 = vmatprep.subr.mxu0 0.0
    %938 = vmatpush1.msra.mxu0 0.0
    %939 = vmatprep.subr.mxu0 0.0
    %940 = vmatpush1.msra.mxu0 0.0
    %941 = vmatprep.subr.mxu0 0.0
    %942 = vmatpush1.msra.mxu0 0.0
    %943 = vmatprep.subr.mxu0 0.0
    %944 = vmatpush1.msra.mxu0 0.0
    %945 = vmatprep.subr.mxu0 0.0
    %946 = vmatpush1.msra.mxu0 0.0
    %947 = vmatprep.subr.mxu0 0.0
    %948 = vmatpush1.msra.mxu0 0.0
    %949 = vmatprep.subr.mxu0 0.0
    %950 = vmatpush1.msra.mxu0 0.0
    %951 = vmatprep.subr.mxu0 0.0
    %952 = vmatpush1.msra.mxu0 0.0
    %953 = vmatprep.subr.mxu0 0.0
    %954 = vmatpush1.msra.mxu0 0.0
    %955 = vmatprep.subr.mxu0 0.0
    %956 = vmatpush1.msra.mxu0 0.0
    %957 = vmatprep.subr.mxu0 0.0
    %958 = vmatpush1.msra.mxu0 0.0
    %959 = vmatprep.subr.mxu0 0.0
    %960 = vmatpush1.msra.mxu0 0.0
    %961 = vmatprep.subr.mxu0 0.0
    %962 = vmatpush1.msra.mxu0 0.0
    %963 = vmatprep.subr.mxu0 0.0
    %964 = vmatpush1.msra.mxu0 0.0
    %965 = vmatprep.mubr.f32.mxu0 0.0
    %966 = vmatmul.mubr.f32.gmra.mrb[0].mxu0 %v899
    %v967 = vpop.f32.mrb[0].mxu0
    %v968 = vadd.f32 0.0, %v967
    %v969 = vpop.f32.mrb[0].mxu0
    %v970 = vadd.f32 0.0, %v969
    %971 = vdwg.mxu0
    %v974 = vcombine.low %v968, %v970
    %v976 = vunpack.c.l.s4 1983009808
    %v977 = vunpack.c.0.s8 %v976
    %v978 = vlaneseq
    %v979 = vshrl.u32 %v978, 7
    %v980 = vsub.s32 %v977, %v979
    %v981 = vrot.slane %v974, %v980
    %v983 = vadd.f32 %v881, %v981
    %v984 = vxor.u32 %v983, 2147483648
    %v985 = vmul.f32 %v984, 1.442695
    %v986 = vpow.pop %v985
    %v987 = vadd.f32 %v986, 1.0
    %v988 = vrcp.pop %v987
    %v989 = vmul.f32 1.0, %v988
    %v991 = vrot.slane %v983, 2
    %v993 = vtanh.pop %v991
    %994 = vrot.lane.b32.xlu0 %v983, 64
    %v995 = vpop.permute.xlu0 %994
    %v996 = vrot.slane %v995, 2
    %v998 = vxor.u32 %v996, 2147483648
    %v999 = vmul.f32 %v998, 1.442695
    %v1000 = vpow.pop %v999
    %v1001 = vadd.f32 %v1000, 1.0
    %v1002 = vrcp.pop %v1001
    %v1003 = vmul.f32 1.0, %v1002
    %v1006 = vunpack.c.l.s4 1983009808
    %v1007 = vunpack.c.0.s8 %v1006
    %v1008 = vlaneseq
    %v1009 = vshrl.u32 %v1008, 7
    %v1010 = vsub.s32 %v1007, %v1009
    %v1011 = vrot.slane %v879, %v1010
    %1012 = vrot.lane.b32.xlu0 %v1011, 64
    %v1013 = vpop.permute.xlu0 %1012
    %v1015 = vmul.f32 %v989, %v1013
    %v1016 = vmul.f32 %v989, %v993
    %1018 = vrot.lane.b32.xlu0 %v1016, 64
    %v1019 = vpop.permute.xlu0 %1018
    %v1021 = vadd.f32 %v1015, %v1019
    %v1022 = vtanh.pop %v1021
    %1024 = vrot.lane.b32.xlu0 %v1022, 64
    %v1025 = vpop.permute.xlu0 %1024
    %v1027 = vmul.f32 %v1003, %v1025
    %s1028 = scalar_lea.vmem %s1, 10
    %v1029 = vld [vmem:[%s1028] sm:$0x3]
    %vm1030 = vcmp.gt.f32.partialorder %v1029, 0.5
    %v1031 = vsel %vm1030, %v1027, %v878
    %1032 = vst.msk [vmem:[#allocation2] sm:$0x3] %vm177, %v1031
    %v1035 = vunpack.c.l.s4 1983009808
    %v1036 = vunpack.c.0.s8 %v1035
    %v1037 = vlaneseq
    %v1038 = vshrl.u32 %v1037, 7
    %v1039 = vsub.s32 %v1036, %v1038
    %v1040 = vrot.slane %v1021, %v1039
    %1041 = vrot.lane.b32.xlu0 %v1040, 64
    %v1042 = vpop.permute.xlu0 %1041
    %v1044 = vsel %vm1030, %v1042, %v879
    %1045 = vst.msk [vmem:[#allocation3] sm:$0x3] %vm177, %v1044
    %v1046 = vsel %vm1030, %v1027, 0.0
    %s1047 = scalar_lea.vmem [#allocation4], 10
    %1048 = vst.msk [vmem:[%s1047] sm:$0x3] %vm177, %v1046
    %v1049 = vld [vmem:[#allocation2] sm:$0x3]
    %v1050 = vld [vmem:[#allocation3] sm:$0x3]
    %s1051 = scalar_lea.vmem %s0, 24
    %v1052 = vld [vmem:[%s1051] sm:$0xf]
    %v1053 = vld [vmem:[%s2] sm:$0xff]
    %v1054 = vld [vmem:[%s2 + $0x8] sm:$0xff]
    %v1055 = vld [vmem:[%s2 + $0x10] sm:$0xff]
    %v1056 = vld [vmem:[%s2 + $0x18] sm:$0xff]
    %v1057 = vld [vmem:[%s2 + $0x20] sm:$0xff]
    %v1058 = vld [vmem:[%s2 + $0x28] sm:$0xff]
    %v1059 = vld [vmem:[%s2 + $0x30] sm:$0xff]
    %v1060 = vld [vmem:[%s2 + $0x38] sm:$0xff]
    %v1061 = vld [vmem:[%s2 + $0x40] sm:$0xff]
    %v1062 = vld [vmem:[%s2 + $0x48] sm:$0xff]
    %v1063 = vld [vmem:[%s2 + $0x50] sm:$0xff]
    %v1064 = vld [vmem:[%s2 + $0x58] sm:$0xff]
    %v1065 = vld [vmem:[%s2 + $0x60] sm:$0xff]
    %v1066 = vld [vmem:[%s2 + $0x68] sm:$0xff]
    %v1067 = vld [vmem:[%s2 + $0x70] sm:$0xff]
    %v1068 = vld [vmem:[%s2 + $0x78] sm:$0xff]
    %v1070 = vsel %vm43, %v1049, 0
    %1072 = vmatprep.subr.mxu0 %v1054
    %1073 = vmatpush1.msra.mxu0 %v1053
    %1074 = vmatprep.subr.mxu0 %v1056
    %1075 = vmatpush1.msra.mxu0 %v1055
    %1076 = vmatprep.subr.mxu0 %v1058
    %1077 = vmatpush1.msra.mxu0 %v1057
    %1078 = vmatprep.subr.mxu0 %v1060
    %1079 = vmatpush1.msra.mxu0 %v1059
    %1080 = vmatprep.subr.mxu0 %v1062
    %1081 = vmatpush1.msra.mxu0 %v1061
    %1082 = vmatprep.subr.mxu0 %v1064
    %1083 = vmatpush1.msra.mxu0 %v1063
    %1084 = vmatprep.subr.mxu0 %v1066
    %1085 = vmatpush1.msra.mxu0 %v1065
    %1086 = vmatprep.subr.mxu0 %v1068
    %1087 = vmatpush1.msra.mxu0 %v1067
    %1088 = vmatprep.subr.mxu0 0.0
    %1089 = vmatpush1.msra.mxu0 0.0
    %1090 = vmatprep.subr.mxu0 0.0
    %1091 = vmatpush1.msra.mxu0 0.0
    %1092 = vmatprep.subr.mxu0 0.0
    %1093 = vmatpush1.msra.mxu0 0.0
    %1094 = vmatprep.subr.mxu0 0.0
    %1095 = vmatpush1.msra.mxu0 0.0
    %1096 = vmatprep.subr.mxu0 0.0
    %1097 = vmatpush1.msra.mxu0 0.0
    %1098 = vmatprep.subr.mxu0 0.0
    %1099 = vmatpush1.msra.mxu0 0.0
    %1100 = vmatprep.subr.mxu0 0.0
    %1101 = vmatpush1.msra.mxu0 0.0
    %1102 = vmatprep.subr.mxu0 0.0
    %1103 = vmatpush1.msra.mxu0 0.0
    %1104 = vmatprep.subr.mxu0 0.0
    %1105 = vmatpush1.msra.mxu0 0.0
    %1106 = vmatprep.subr.mxu0 0.0
    %1107 = vmatpush1.msra.mxu0 0.0
    %1108 = vmatprep.subr.mxu0 0.0
    %1109 = vmatpush1.msra.mxu0 0.0
    %1110 = vmatprep.subr.mxu0 0.0
    %1111 = vmatpush1.msra.mxu0 0.0
    %1112 = vmatprep.subr.mxu0 0.0
    %1113 = vmatpush1.msra.mxu0 0.0
    %1114 = vmatprep.subr.mxu0 0.0
    %1115 = vmatpush1.msra.mxu0 0.0
    %1116 = vmatprep.subr.mxu0 0.0
    %1117 = vmatpush1.msra.mxu0 0.0
    %1118 = vmatprep.subr.mxu0 0.0
    %1119 = vmatpush1.msra.mxu0 0.0
    %1120 = vmatprep.subr.mxu0 0.0
    %1121 = vmatpush1.msra.mxu0 0.0
    %1122 = vmatprep.subr.mxu0 0.0
    %1123 = vmatpush1.msra.mxu0 0.0
    %1124 = vmatprep.subr.mxu0 0.0
    %1125 = vmatpush1.msra.mxu0 0.0
    %1126 = vmatprep.subr.mxu0 0.0
    %1127 = vmatpush1.msra.mxu0 0.0
    %1128 = vmatprep.subr.mxu0 0.0
    %1129 = vmatpush1.msra.mxu0 0.0
    %1130 = vmatprep.subr.mxu0 0.0
    %1131 = vmatpush1.msra.mxu0 0.0
    %1132 = vmatprep.subr.mxu0 0.0
    %1133 = vmatpush1.msra.mxu0 0.0
    %1134 = vmatprep.subr.mxu0 0.0
    %1135 = vmatpush1.msra.mxu0 0.0
    %1136 = vmatprep.mubr.f32.mxu0 0.0
    %1137 = vmatmul.mubr.f32.gmra.mrb[0].mxu0 %v1070
    %v1138 = vpop.f32.mrb[0].mxu0
    %v1139 = vadd.f32 0.0, %v1138
    %v1140 = vpop.f32.mrb[0].mxu0
    %v1141 = vadd.f32 0.0, %v1140
    %1142 = vdwg.mxu0
    %v1145 = vcombine.low %v1139, %v1141
    %v1147 = vunpack.c.l.s4 1983009808
    %v1148 = vunpack.c.0.s8 %v1147
    %v1149 = vlaneseq
    %v1150 = vshrl.u32 %v1149, 7
    %v1151 = vsub.s32 %v1148, %v1150
    %v1152 = vrot.slane %v1145, %v1151
    %v1154 = vadd.f32 %v1052, %v1152
    %v1155 = vxor.u32 %v1154, 2147483648
    %v1156 = vmul.f32 %v1155, 1.442695
    %v1157 = vpow.pop %v1156
    %v1158 = vadd.f32 %v1157, 1.0
    %v1159 = vrcp.pop %v1158
    %v1160 = vmul.f32 1.0, %v1159
    %v1162 = vrot.slane %v1154, 2
    %v1164 = vtanh.pop %v1162
    %1165 = vrot.lane.b32.xlu0 %v1154, 64
    %v1166 = vpop.permute.xlu0 %1165
    %v1167 = vrot.slane %v1166, 2
    %v1169 = vxor.u32 %v1167, 2147483648
    %v1170 = vmul.f32 %v1169, 1.442695
    %v1171 = vpow.pop %v1170
    %v1172 = vadd.f32 %v1171, 1.0
    %v1173 = vrcp.pop %v1172
    %v1174 = vmul.f32 1.0, %v1173
    %v1177 = vunpack.c.l.s4 1983009808
    %v1178 = vunpack.c.0.s8 %v1177
    %v1179 = vlaneseq
    %v1180 = vshrl.u32 %v1179, 7
    %v1181 = vsub.s32 %v1178, %v1180
    %v1182 = vrot.slane %v1050, %v1181
    %1183 = vrot.lane.b32.xlu0 %v1182, 64
    %v1184 = vpop.permute.xlu0 %1183
    %v1186 = vmul.f32 %v1160, %v1184
    %v1187 = vmul.f32 %v1160, %v1164
    %1189 = vrot.lane.b32.xlu0 %v1187, 64
    %v1190 = vpop.permute.xlu0 %1189
    %v1192 = vadd.f32 %v1186, %v1190
    %v1193 = vtanh.pop %v1192
    %1195 = vrot.lane.b32.xlu0 %v1193, 64
    %v1196 = vpop.permute.xlu0 %1195
    %v1198 = vmul.f32 %v1174, %v1196
    %s1199 = scalar_lea.vmem %s1, 12
    %v1200 = vld [vmem:[%s1199] sm:$0x3]
    %vm1201 = vcmp.gt.f32.partialorder %v1200, 0.5
    %v1202 = vsel %vm1201, %v1198, %v1049
    %1203 = vst.msk [vmem:[#allocation2] sm:$0x3] %vm177, %v1202
    %v1206 = vunpack.c.l.s4 1983009808
    %v1207 = vunpack.c.0.s8 %v1206
    %v1208 = vlaneseq
    %v1209 = vshrl.u32 %v1208, 7
    %v1210 = vsub.s32 %v1207, %v1209
    %v1211 = vrot.slane %v1192, %v1210
    %1212 = vrot.lane.b32.xlu0 %v1211, 64
    %v1213 = vpop.permute.xlu0 %1212
    %v1215 = vsel %vm1201, %v1213, %v1050
    %1216 = vst.msk [vmem:[#allocation3] sm:$0x3] %vm177, %v1215
    %v1217 = vsel %vm1201, %v1198, 0.0
    %s1218 = scalar_lea.vmem [#allocation4], 12
    %1219 = vst.msk [vmem:[%s1218] sm:$0x3] %vm177, %v1217
    %v1220 = vld [vmem:[#allocation2] sm:$0x3]
    %v1221 = vld [vmem:[#allocation3] sm:$0x3]
    %s1222 = scalar_lea.vmem %s0, 28
    %v1223 = vld [vmem:[%s1222] sm:$0xf]
    %v1224 = vld [vmem:[%s2] sm:$0xff]
    %v1225 = vld [vmem:[%s2 + $0x8] sm:$0xff]
    %v1226 = vld [vmem:[%s2 + $0x10] sm:$0xff]
    %v1227 = vld [vmem:[%s2 + $0x18] sm:$0xff]
    %v1228 = vld [vmem:[%s2 + $0x20] sm:$0xff]
    %v1229 = vld [vmem:[%s2 + $0x28] sm:$0xff]
    %v1230 = vld [vmem:[%s2 + $0x30] sm:$0xff]
    %v1231 = vld [vmem:[%s2 + $0x38] sm:$0xff]
    %v1232 = vld [vmem:[%s2 + $0x40] sm:$0xff]
    %v1233 = vld [vmem:[%s2 + $0x48] sm:$0xff]
    %v1234 = vld [vmem:[%s2 + $0x50] sm:$0xff]
    %v1235 = vld [vmem:[%s2 + $0x58] sm:$0xff]
    %v1236 = vld [vmem:[%s2 + $0x60] sm:$0xff]
    %v1237 = vld [vmem:[%s2 + $0x68] sm:$0xff]
    %v1238 = vld [vmem:[%s2 + $0x70] sm:$0xff]
    %v1239 = vld [vmem:[%s2 + $0x78] sm:$0xff]
    %v1241 = vsel %vm43, %v1220, 0
    %1243 = vmatprep.subr.mxu0 %v1225
    %1244 = vmatpush1.msra.mxu0 %v1224
    %1245 = vmatprep.subr.mxu0 %v1227
    %1246 = vmatpush1.msra.mxu0 %v1226
    %1247 = vmatprep.subr.mxu0 %v1229
    %1248 = vmatpush1.msra.mxu0 %v1228
    %1249 = vmatprep.subr.mxu0 %v1231
    %1250 = vmatpush1.msra.mxu0 %v1230
    %1251 = vmatprep.subr.mxu0 %v1233
    %1252 = vmatpush1.msra.mxu0 %v1232
    %1253 = vmatprep.subr.mxu0 %v1235
    %1254 = vmatpush1.msra.mxu0 %v1234
    %1255 = vmatprep.subr.mxu0 %v1237
    %1256 = vmatpush1.msra.mxu0 %v1236
    %1257 = vmatprep.subr.mxu0 %v1239
    %1258 = vmatpush1.msra.mxu0 %v1238
    %1259 = vmatprep.subr.mxu0 0.0
    %1260 = vmatpush1.msra.mxu0 0.0
    %1261 = vmatprep.subr.mxu0 0.0
    %1262 = vmatpush1.msra.mxu0 0.0
    %1263 = vmatprep.subr.mxu0 0.0
    %1264 = vmatpush1.msra.mxu0 0.0
    %1265 = vmatprep.subr.mxu0 0.0
    %1266 = vmatpush1.msra.mxu0 0.0
    %1267 = vmatprep.subr.mxu0 0.0
    %1268 = vmatpush1.msra.mxu0 0.0
    %1269 = vmatprep.subr.mxu0 0.0
    %1270 = vmatpush1.msra.mxu0 0.0
    %1271 = vmatprep.subr.mxu0 0.0
    %1272 = vmatpush1.msra.mxu0 0.0
    %1273 = vmatprep.subr.mxu0 0.0
    %1274 = vmatpush1.msra.mxu0 0.0
    %1275 = vmatprep.subr.mxu0 0.0
    %1276 = vmatpush1.msra.mxu0 0.0
    %1277 = vmatprep.subr.mxu0 0.0
    %1278 = vmatpush1.msra.mxu0 0.0
    %1279 = vmatprep.subr.mxu0 0.0
    %1280 = vmatpush1.msra.mxu0 0.0
    %1281 = vmatprep.subr.mxu0 0.0
    %1282 = vmatpush1.msra.mxu0 0.0
    %1283 = vmatprep.subr.mxu0 0.0
    %1284 = vmatpush1.msra.mxu0 0.0
    %1285 = vmatprep.subr.mxu0 0.0
    %1286 = vmatpush1.msra.mxu0 0.0
    %1287 = vmatprep.subr.mxu0 0.0
    %1288 = vmatpush1.msra.mxu0 0.0
    %1289 = vmatprep.subr.mxu0 0.0
    %1290 = vmatpush1.msra.mxu0 0.0
    %1291 = vmatprep.subr.mxu0 0.0
    %1292 = vmatpush1.msra.mxu0 0.0
    %1293 = vmatprep.subr.mxu0 0.0
    %1294 = vmatpush1.msra.mxu0 0.0
    %1295 = vmatprep.subr.mxu0 0.0
    %1296 = vmatpush1.msra.mxu0 0.0
    %1297 = vmatprep.subr.mxu0 0.0
    %1298 = vmatpush1.msra.mxu0 0.0
    %1299 = vmatprep.subr.mxu0 0.0
    %1300 = vmatpush1.msra.mxu0 0.0
    %1301 = vmatprep.subr.mxu0 0.0
    %1302 = vmatpush1.msra.mxu0 0.0
    %1303 = vmatprep.subr.mxu0 0.0
    %1304 = vmatpush1.msra.mxu0 0.0
    %1305 = vmatprep.subr.mxu0 0.0
    %1306 = vmatpush1.msra.mxu0 0.0
    %1307 = vmatprep.mubr.f32.mxu0 0.0
    %1308 = vmatmul.mubr.f32.gmra.mrb[0].mxu0 %v1241
    %v1309 = vpop.f32.mrb[0].mxu0
    %v1310 = vadd.f32 0.0, %v1309
    %v1311 = vpop.f32.mrb[0].mxu0
    %v1312 = vadd.f32 0.0, %v1311
    %1313 = vdwg.mxu0
    %v1316 = vcombine.low %v1310, %v1312
    %v1318 = vunpack.c.l.s4 1983009808
    %v1319 = vunpack.c.0.s8 %v1318
    %v1320 = vlaneseq
    %v1321 = vshrl.u32 %v1320, 7
    %v1322 = vsub.s32 %v1319, %v1321
    %v1323 = vrot.slane %v1316, %v1322
    %v1325 = vadd.f32 %v1223, %v1323
    %v1326 = vxor.u32 %v1325, 2147483648
    %v1327 = vmul.f32 %v1326, 1.442695
    %v1328 = vpow.pop %v1327
    %v1329 = vadd.f32 %v1328, 1.0
    %v1330 = vrcp.pop %v1329
    %v1331 = vmul.f32 1.0, %v1330
    %v1333 = vrot.slane %v1325, 2
    %v1335 = vtanh.pop %v1333
    %1336 = vrot.lane.b32.xlu0 %v1325, 64
    %v1337 = vpop.permute.xlu0 %1336
    %v1338 = vrot.slane %v1337, 2
    %v1340 = vxor.u32 %v1338, 2147483648
    %v1341 = vmul.f32 %v1340, 1.442695
    %v1342 = vpow.pop %v1341
    %v1343 = vadd.f32 %v1342, 1.0
    %v1344 = vrcp.pop %v1343
    %v1345 = vmul.f32 1.0, %v1344
    %v1348 = vunpack.c.l.s4 1983009808
    %v1349 = vunpack.c.0.s8 %v1348
    %v1350 = vlaneseq
    %v1351 = vshrl.u32 %v1350, 7
    %v1352 = vsub.s32 %v1349, %v1351
    %v1353 = vrot.slane %v1221, %v1352
    %1354 = vrot.lane.b32.xlu0 %v1353, 64
    %v1355 = vpop.permute.xlu0 %1354
    %v1357 = vmul.f32 %v1331, %v1355
    %v1358 = vmul.f32 %v1331, %v1335
    %1360 = vrot.lane.b32.xlu0 %v1358, 64
    %v1361 = vpop.permute.xlu0 %1360
    %v1363 = vadd.f32 %v1357, %v1361
    %v1364 = vtanh.pop %v1363
    %1366 = vrot.lane.b32.xlu0 %v1364, 64
    %v1367 = vpop.permute.xlu0 %1366
    %v1369 = vmul.f32 %v1345, %v1367
    %s1370 = scalar_lea.vmem %s1, 14
    %v1371 = vld [vmem:[%s1370] sm:$0x3]
    %vm1372 = vcmp.gt.f32.partialorder %v1371, 0.5
    %v1373 = vsel %vm1372, %v1369, %v1220
    %1374 = vst.msk [vmem:[#allocation2] sm:$0x3] %vm177, %v1373
    %v1377 = vunpack.c.l.s4 1983009808
    %v1378 = vunpack.c.0.s8 %v1377
    %v1379 = vlaneseq
    %v1380 = vshrl.u32 %v1379, 7
    %v1381 = vsub.s32 %v1378, %v1380
    %v1382 = vrot.slane %v1363, %v1381
    %1383 = vrot.lane.b32.xlu0 %v1382, 64
    %v1384 = vpop.permute.xlu0 %1383
    %v1386 = vsel %vm1372, %v1384, %v1221
    %1387 = vst.msk [vmem:[#allocation3] sm:$0x3] %vm177, %v1386
    %v1388 = vsel %vm1372, %v1369, 0.0
    %s1389 = scalar_lea.vmem [#allocation4], 14
    %1390 = vst.msk [vmem:[%s1389] sm:$0x3] %vm177, %v1388
    %v1391 = vld [vmem:[#allocation2] sm:$0x3]
    %1392 = vst.msk [vmem:[%s4] sm:$0x3] %vm177, %v1391
    // Predicated region
    $region18: #{bilstm_sequence_to_vector.3} parent=1 // pred_check
      _
    $region19: #{bilstm_sequence_to_vector.3} parent=1 // pred_check_branch
      %1394 = sbr.rel (0) target = $region21
    $region20: #{bilstm_sequence_to_vector.3} parent=1 // pred_region
      %s1396 = ssub.s32 256, 256
      %1397 = vsyncadd [#allocation5], %s1396
      %s1398 = sshll.u32 [#allocation4], 4
      %s1399 = int_to_ptr.vmem [resolvable:$true] %s1398
      %1404 = dma.vmem_to_hbm [thread:$0]  %s1399, 256, %s3, [#allocation5], 32, 32, 2
    $region21: #{bilstm_sequence_to_vector.3} parent=1 // pred_fallthru
      _
    // Predicated region
    $region22: #{bilstm_sequence_to_vector.3} parent=1 // pred_check
      _
    $region23: #{bilstm_sequence_to_vector.3} parent=1 // pred_check_branch
      %1406 = sbr.rel (0) target = $region25
    $region24: #{bilstm_sequence_to_vector.3} parent=1 // pred_region
      _
    $region25: #{bilstm_sequence_to_vector.3} parent=1 // pred_fallthru
      _
    // Predicated region
    $region26: #{bilstm_sequence_to_vector.3} parent=1 // pred_check
      _
    $region27: #{bilstm_sequence_to_vector.3} parent=1 // pred_check_branch
      %1408 = sbr.rel (0) target = $region29
    $region28: #{bilstm_sequence_to_vector.3} parent=1 // pred_region
      %1409 = dma.done [#allocation5], 256
    $region29: #{bilstm_sequence_to_vector.3} parent=1 // pred_fallthru
      _
    // Predicated region
    $region30: #{bilstm_sequence_to_vector.3} parent=1 // pred_check
      _
    $region31: #{bilstm_sequence_to_vector.3} parent=1 // pred_check_branch
      %1411 = sbr.rel (0) target = $region33
    $region32: #{bilstm_sequence_to_vector.3} parent=1 // pred_region
      _
    $region33: #{bilstm_sequence_to_vector.3} parent=1 // pred_fallthru
      _
    %1412 = vsyncpa [#allocation5], 1

// kernel: bilstm_sequence_to_vector.2
$region0: #{bilstm_sequence_to_vector.2}
  #allocation0 [shape = 'u32[]', space=smem, size = 0x4, offset = 0x4, fixed_abs, tag = 'smem constant byte address 0x4 - core index']
  #allocation1 [shape = 'u32[144,128]{1,0:T(1,128)}', space=vmem, size = 0x12000, scoped, tag = 'internal scratch']
  #allocation2 [shape = 'f32[2,64]{1,0:T(2,128)}', space=vmem, size = 0x400, scoped, tag = 'scratch operand']
  #allocation3 [shape = 'f32[2,64]{1,0:T(2,128)}', space=vmem, size = 0x400, scoped, tag = 'scratch operand']
  %s0 = inlined_call_operand.vmem [shape: f32[8,2,256], index: 0, kind: input, shape index: {}]
  %s1 = inlined_call_operand.vmem [shape: f32[8,2,64], index: 1, kind: input, shape index: {}]
  %s2 = inlined_call_operand.vmem [shape: f32[64,256], index: 2, kind: input, shape index: {}]
  %s3 = inlined_call_operand.vmem [shape: f32[8,2,64], index: 3, kind: output, shape index: {0}]
  %s4 = inlined_call_operand.vmem [shape: f32[2,64], index: 4, kind: output, shape index: {1}]
  %5 = xla_tuple %s3, %s4
  %s6 = sld [smem:[#allocation0]]
  $region34: #{bilstm_sequence_to_vector.2} parent=0
    _
  %s8 = ssub.s32 1, %s6
  %s9 = scalar_select 0, %s8, %s6
  // Predicated region
  $region2: #{bilstm_sequence_to_vector.2} parent=0 // pred_check
    _
  $region3: #{bilstm_sequence_to_vector.2} parent=0 // pred_check_branch
    %11 = sbr.rel (0) target = $region5
  $region4: #{bilstm_sequence_to_vector.2} parent=0 // pred_region
    _
  $region5: #{bilstm_sequence_to_vector.2} parent=0 // pred_fallthru
    _
  // Predicated region
  $region6: #{bilstm_sequence_to_vector.2} parent=0 // pred_check
    _
  $region7: #{bilstm_sequence_to_vector.2} parent=0 // pred_check_branch
    %13 = sbr.rel (0) target = $region9
  $region8: #{bilstm_sequence_to_vector.2} parent=0 // pred_region
    _
  $region9: #{bilstm_sequence_to_vector.2} parent=0 // pred_fallthru
    _
  // Predicated region
  $region10: #{bilstm_sequence_to_vector.2} parent=0 // pred_check
    _
  $region11: #{bilstm_sequence_to_vector.2} parent=0 // pred_check_branch
    %15 = sbr.rel (0) target = $region13
  $region12: #{bilstm_sequence_to_vector.2} parent=0 // pred_region
    _
  $region13: #{bilstm_sequence_to_vector.2} parent=0 // pred_fallthru
    _
  %p16 = scmp.eq.s32.totalorder 0, 0
  // Predicated region
  $region14: #{bilstm_sequence_to_vector.2} parent=0 // pred_check
    %p17 = pneg %p16
  $region15: #{bilstm_sequence_to_vector.2} parent=0 // pred_check_branch
    %19 = sbr.rel (%p17) target = $region17
  $region16: #{bilstm_sequence_to_vector.2} parent=0 // pred_region
    %vm20 = vcmask 517120
    %21 = vst.msk [vmem:[#allocation2] sm:$0x3] %vm20, 0.0
    %22 = vst.msk [vmem:[#allocation3] sm:$0x3] %vm20, 0.0
  $region17: #{bilstm_sequence_to_vector.2} parent=0 // pred_fallthru
    _
  %v23 = vld [vmem:[#allocation2] sm:$0x3]
  %v24 = vld [vmem:[#allocation3] sm:$0x3]
  %v25 = vld [vmem:[%s0] sm:$0xf]
  %v26 = vld [vmem:[%s2] sm:$0xff]
  %v27 = vld [vmem:[%s2 + $0x8] sm:$0xff]
  %v28 = vld [vmem:[%s2 + $0x10] sm:$0xff]
  %v29 = vld [vmem:[%s2 + $0x18] sm:$0xff]
  %v30 = vld [vmem:[%s2 + $0x20] sm:$0xff]
  %v31 = vld [vmem:[%s2 + $0x28] sm:$0xff]
  %v32 = vld [vmem:[%s2 + $0x30] sm:$0xff]
  %v33 = vld [vmem:[%s2 + $0x38] sm:$0xff]
  %v34 = vld [vmem:[%s2 + $0x40] sm:$0xff]
  %v35 = vld [vmem:[%s2 + $0x48] sm:$0xff]
  %v36 = vld [vmem:[%s2 + $0x50] sm:$0xff]
  %v37 = vld [vmem:[%s2 + $0x58] sm:$0xff]
  %v38 = vld [vmem:[%s2 + $0x60] sm:$0xff]
  %v39 = vld [vmem:[%s2 + $0x68] sm:$0xff]
  %v40 = vld [vmem:[%s2 + $0x70] sm:$0xff]
  %v41 = vld [vmem:[%s2 + $0x78] sm:$0xff]
  %vm42 = vcmask 523264
  %v44 = vsel %vm42, %v23, 0
  %46 = vmatprep.subr.mxu0 %v27
  %47 = vmatpush1.msra.mxu0 %v26
  %48 = vmatprep.subr.mxu0 %v29
  %49 = vmatpush1.msra.mxu0 %v28
  %50 = vmatprep.subr.mxu0 %v31
  %51 = vmatpush1.msra.mxu0 %v30
  %52 = vmatprep.subr.mxu0 %v33
  %53 = vmatpush1.msra.mxu0 %v32
  %54 = vmatprep.subr.mxu0 %v35
  %55 = vmatpush1.msra.mxu0 %v34
  %56 = vmatprep.subr.mxu0 %v37
  %57 = vmatpush1.msra.mxu0 %v36
  %58 = vmatprep.subr.mxu0 %v39
  %59 = vmatpush1.msra.mxu0 %v38
  %60 = vmatprep.subr.mxu0 %v41
  %61 = vmatpush1.msra.mxu0 %v40
  %62 = vmatprep.subr.mxu0 0.0
  %63 = vmatpush1.msra.mxu0 0.0
  %64 = vmatprep.subr.mxu0 0.0
  %65 = vmatpush1.msra.mxu0 0.0
  %66 = vmatprep.subr.mxu0 0.0
  %67 = vmatpush1.msra.mxu0 0.0
  %68 = vmatprep.subr.mxu0 0.0
  %69 = vmatpush1.msra.mxu0 0.0
  %70 = vmatprep.subr.mxu0 0.0
  %71 = vmatpush1.msra.mxu0 0.0
  %72 = vmatprep.subr.mxu0 0.0
  %73 = vmatpush1.msra.mxu0 0.0
  %74 = vmatprep.subr.mxu0 0.0
  %75 = vmatpush1.msra.mxu0 0.0
  %76 = vmatprep.subr.mxu0 0.0
  %77 = vmatpush1.msra.mxu0 0.0
  %78 = vmatprep.subr.mxu0 0.0
  %79 = vmatpush1.msra.mxu0 0.0
  %80 = vmatprep.subr.mxu0 0.0
  %81 = vmatpush1.msra.mxu0 0.0
  %82 = vmatprep.subr.mxu0 0.0
  %83 = vmatpush1.msra.mxu0 0.0
  %84 = vmatprep.subr.mxu0 0.0
  %85 = vmatpush1.msra.mxu0 0.0
  %86 = vmatprep.subr.mxu0 0.0
  %87 = vmatpush1.msra.mxu0 0.0
  %88 = vmatprep.subr.mxu0 0.0
  %89 = vmatpush1.msra.mxu0 0.0
  %90 = vmatprep.subr.mxu0 0.0
  %91 = vmatpush1.msra.mxu0 0.0
  %92 = vmatprep.subr.mxu0 0.0
  %93 = vmatpush1.msra.mxu0 0.0
  %94 = vmatprep.subr.mxu0 0.0
  %95 = vmatpush1.msra.mxu0 0.0
  %96 = vmatprep.subr.mxu0 0.0
  %97 = vmatpush1.msra.mxu0 0.0
  %98 = vmatprep.subr.mxu0 0.0
  %99 = vmatpush1.msra.mxu0 0.0
  %100 = vmatprep.subr.mxu0 0.0
  %101 = vmatpush1.msra.mxu0 0.0
  %102 = vmatprep.subr.mxu0 0.0
  %103 = vmatpush1.msra.mxu0 0.0
  %104 = vmatprep.subr.mxu0 0.0
  %105 = vmatpush1.msra.mxu0 0.0
  %106 = vmatprep.subr.mxu0 0.0
  %107 = vmatpush1.msra.mxu0 0.0
  %108 = vmatprep.subr.mxu0 0.0
  %109 = vmatpush1.msra.mxu0 0.0
  %110 = vmatprep.mubr.f32.mxu0 0.0
  %111 = vmatmul.mubr.f32.gmra.mrb[0].mxu0 %v44
  %v112 = vpop.f32.mrb[0].mxu0
  %v113 = vadd.f32 0.0, %v112
  %v114 = vpop.f32.mrb[0].mxu0
  %v115 = vadd.f32 0.0, %v114
  %116 = vdwg.mxu0
  %v119 = vcombine.low %v113, %v115
  %v121 = vunpack.c.l.s4 1983009808
  %v122 = vunpack.c.0.s8 %v121
  %v123 = vlaneseq
  %v124 = vshrl.u32 %v123, 7
  %v125 = vsub.s32 %v122, %v124
  %v126 = vrot.slane %v119, %v125
  %v128 = vadd.f32 %v25, %v126
  %v129 = vxor.u32 %v128, 2147483648
  %v130 = vmul.f32 %v129, 1.442695
  %v131 = vpow.pop %v130
  %v132 = vadd.f32 %v131, 1.0
  %v133 = vrcp.pop %v132
  %v134 = vmul.f32 1.0, %v133
  %v136 = vrot.slane %v128, 2
  %v138 = vtanh.pop %v136
  %139 = vrot.lane.b32.xlu0 %v128, 64
  %v140 = vpop.permute.xlu0 %139
  %v141 = vrot.slane %v140, 2
  %v143 = vxor.u32 %v141, 2147483648
  %v144 = vmul.f32 %v143, 1.442695
  %v145 = vpow.pop %v144
  %v146 = vadd.f32 %v145, 1.0
  %v147 = vrcp.pop %v146
  %v148 = vmul.f32 1.0, %v147
  %v151 = vunpack.c.l.s4 1983009808
  %v152 = vunpack.c.0.s8 %v151
  %v153 = vlaneseq
  %v154 = vshrl.u32 %v153, 7
  %v155 = vsub.s32 %v152, %v154
  %v156 = vrot.slane %v24, %v155
  %157 = vrot.lane.b32.xlu0 %v156, 64
  %v158 = vpop.permute.xlu0 %157
  %v160 = vmul.f32 %v134, %v158
  %v161 = vmul.f32 %v134, %v138
  %163 = vrot.lane.b32.xlu0 %v161, 64
  %v164 = vpop.permute.xlu0 %163
  %v166 = vadd.f32 %v160, %v164
  %v167 = vtanh.pop %v166
  %169 = vrot.lane.b32.xlu0 %v167, 64
  %v170 = vpop.permute.xlu0 %169
  %v172 = vmul.f32 %v148, %v170
  %v173 = vld [vmem:[%s1] sm:$0x3]
  %vm174 = vcmp.gt.f32.partialorder %v173, 0.5
  %v175 = vsel %vm174, %v172, %v23
  %vm176 = vcmask 517120
  %177 = vst.msk [vmem:[#allocation2] sm:$0x3] %vm176, %v175
  %v180 = vunpack.c.l.s4 1983009808
  %v181 = vunpack.c.0.s8 %v180
  %v182 = vlaneseq
  %v183 = vshrl.u32 %v182, 7
  %v184 = vsub.s32 %v181, %v183
  %v185 = vrot.slane %v166, %v184
  %186 = vrot.lane.b32.xlu0 %v185, 64
  %v187 = vpop.permute.xlu0 %186
  %v189 = vsel %vm174, %v187, %v24
  %190 = vst.msk [vmem:[#allocation3] sm:$0x3] %vm176, %v189
  %v191 = vsel %vm174, %v172, 0.0
  %192 = vst.msk [vmem:[%s3] sm:$0x3] %vm176, %v191
  %v193 = vld [vmem:[#allocation2] sm:$0x3]
  %v194 = vld [vmem:[#allocation3] sm:$0x3]
  %s195 = scalar_lea.vmem %s0, 4
  %v196 = vld [vmem:[%s195] sm:$0xf]
  %v197 = vld [vmem:[%s2] sm:$0xff]
  %v198 = vld [vmem:[%s2 + $0x8] sm:$0xff]
  %v199 = vld [vmem:[%s2 + $0x10] sm:$0xff]
  %v200 = vld [vmem:[%s2 + $0x18] sm:$0xff]
  %v201 = vld [vmem:[%s2 + $0x20] sm:$0xff]
  %v202 = vld [vmem:[%s2 + $0x28] sm:$0xff]
  %v203 = vld [vmem:[%s2 + $0x30] sm:$0xff]
  %v204 = vld [vmem:[%s2 + $0x38] sm:$0xff]
  %v205 = vld [vmem:[%s2 + $0x40] sm:$0xff]
  %v206 = vld [vmem:[%s2 + $0x48] sm:$0xff]
  %v207 = vld [vmem:[%s2 + $0x50] sm:$0xff]
  %v208 = vld [vmem:[%s2 + $0x58] sm:$0xff]
  %v209 = vld [vmem:[%s2 + $0x60] sm:$0xff]
  %v210 = vld [vmem:[%s2 + $0x68] sm:$0xff]
  %v211 = vld [vmem:[%s2 + $0x70] sm:$0xff]
  %v212 = vld [vmem:[%s2 + $0x78] sm:$0xff]
  %v214 = vsel %vm42, %v193, 0
  %216 = vmatprep.subr.mxu0 %v198
  %217 = vmatpush1.msra.mxu0 %v197
  %218 = vmatprep.subr.mxu0 %v200
  %219 = vmatpush1.msra.mxu0 %v199
  %220 = vmatprep.subr.mxu0 %v202
  %221 = vmatpush1.msra.mxu0 %v201
  %222 = vmatprep.subr.mxu0 %v204
  %223 = vmatpush1.msra.mxu0 %v203
  %224 = vmatprep.subr.mxu0 %v206
  %225 = vmatpush1.msra.mxu0 %v205
  %226 = vmatprep.subr.mxu0 %v208
  %227 = vmatpush1.msra.mxu0 %v207
  %228 = vmatprep.subr.mxu0 %v210
  %229 = vmatpush1.msra.mxu0 %v209
  %230 = vmatprep.subr.mxu0 %v212
  %231 = vmatpush1.msra.mxu0 %v211
  %232 = vmatprep.subr.mxu0 0.0
  %233 = vmatpush1.msra.mxu0 0.0
  %234 = vmatprep.subr.mxu0 0.0
  %235 = vmatpush1.msra.mxu0 0.0
  %236 = vmatprep.subr.mxu0 0.0
  %237 = vmatpush1.msra.mxu0 0.0
  %238 = vmatprep.subr.mxu0 0.0
  %239 = vmatpush1.msra.mxu0 0.0
  %240 = vmatprep.subr.mxu0 0.0
  %241 = vmatpush1.msra.mxu0 0.0
  %242 = vmatprep.subr.mxu0 0.0
  %243 = vmatpush1.msra.mxu0 0.0
  %244 = vmatprep.subr.mxu0 0.0
  %245 = vmatpush1.msra.mxu0 0.0
  %246 = vmatprep.subr.mxu0 0.0
  %247 = vmatpush1.msra.mxu0 0.0
  %248 = vmatprep.subr.mxu0 0.0
  %249 = vmatpush1.msra.mxu0 0.0
  %250 = vmatprep.subr.mxu0 0.0
  %251 = vmatpush1.msra.mxu0 0.0
  %252 = vmatprep.subr.mxu0 0.0
  %253 = vmatpush1.msra.mxu0 0.0
  %254 = vmatprep.subr.mxu0 0.0
  %255 = vmatpush1.msra.mxu0 0.0
  %256 = vmatprep.subr.mxu0 0.0
  %257 = vmatpush1.msra.mxu0 0.0
  %258 = vmatprep.subr.mxu0 0.0
  %259 = vmatpush1.msra.mxu0 0.0
  %260 = vmatprep.subr.mxu0 0.0
  %261 = vmatpush1.msra.mxu0 0.0
  %262 = vmatprep.subr.mxu0 0.0
  %263 = vmatpush1.msra.mxu0 0.0
  %264 = vmatprep.subr.mxu0 0.0
  %265 = vmatpush1.msra.mxu0 0.0
  %266 = vmatprep.subr.mxu0 0.0
  %267 = vmatpush1.msra.mxu0 0.0
  %268 = vmatprep.subr.mxu0 0.0
  %269 = vmatpush1.msra.mxu0 0.0
  %270 = vmatprep.subr.mxu0 0.0
  %271 = vmatpush1.msra.mxu0 0.0
  %272 = vmatprep.subr.mxu0 0.0
  %273 = vmatpush1.msra.mxu0 0.0
  %274 = vmatprep.subr.mxu0 0.0
  %275 = vmatpush1.msra.mxu0 0.0
  %276 = vmatprep.subr.mxu0 0.0
  %277 = vmatpush1.msra.mxu0 0.0
  %278 = vmatprep.subr.mxu0 0.0
  %279 = vmatpush1.msra.mxu0 0.0
  %280 = vmatprep.mubr.f32.mxu0 0.0
  %281 = vmatmul.mubr.f32.gmra.mrb[0].mxu0 %v214
  %v282 = vpop.f32.mrb[0].mxu0
  %v283 = vadd.f32 0.0, %v282
  %v284 = vpop.f32.mrb[0].mxu0
  %v285 = vadd.f32 0.0, %v284
  %286 = vdwg.mxu0
  %v289 = vcombine.low %v283, %v285
  %v291 = vunpack.c.l.s4 1983009808
  %v292 = vunpack.c.0.s8 %v291
  %v293 = vlaneseq
  %v294 = vshrl.u32 %v293, 7
  %v295 = vsub.s32 %v292, %v294
  %v296 = vrot.slane %v289, %v295
  %v298 = vadd.f32 %v196, %v296
  %v299 = vxor.u32 %v298, 2147483648
  %v300 = vmul.f32 %v299, 1.442695
  %v301 = vpow.pop %v300
  %v302 = vadd.f32 %v301, 1.0
  %v303 = vrcp.pop %v302
  %v304 = vmul.f32 1.0, %v303
  %v306 = vrot.slane %v298, 2
  %v308 = vtanh.pop %v306
  %309 = vrot.lane.b32.xlu0 %v298, 64
  %v310 = vpop.permute.xlu0 %309
  %v311 = vrot.slane %v310, 2
  %v313 = vxor.u32 %v311, 2147483648
  %v314 = vmul.f32 %v313, 1.442695
  %v315 = vpow.pop %v314
  %v316 = vadd.f32 %v315, 1.0
  %v317 = vrcp.pop %v316
  %v318 = vmul.f32 1.0, %v317
  %v321 = vunpack.c.l.s4 1983009808
  %v322 = vunpack.c.0.s8 %v321
  %v323 = vlaneseq
  %v324 = vshrl.u32 %v323, 7
  %v325 = vsub.s32 %v322, %v324
  %v326 = vrot.slane %v194, %v325
  %327 = vrot.lane.b32.xlu0 %v326, 64
  %v328 = vpop.permute.xlu0 %327
  %v330 = vmul.f32 %v304, %v328
  %v331 = vmul.f32 %v304, %v308
  %333 = vrot.lane.b32.xlu0 %v331, 64
  %v334 = vpop.permute.xlu0 %333
  %v336 = vadd.f32 %v330, %v334
  %v337 = vtanh.pop %v336
  %339 = vrot.lane.b32.xlu0 %v337, 64
  %v340 = vpop.permute.xlu0 %339
  %v342 = vmul.f32 %v318, %v340
  %s343 = scalar_lea.vmem %s1, 2
  %v344 = vld [vmem:[%s343] sm:$0x3]
  %vm345 = vcmp.gt.f32.partialorder %v344, 0.5
  %v346 = vsel %vm345, %v342, %v193
  %347 = vst.msk [vmem:[#allocation2] sm:$0x3] %vm176, %v346
  %v350 = vunpack.c.l.s4 1983009808
  %v351 = vunpack.c.0.s8 %v350
  %v352 = vlaneseq
  %v353 = vshrl.u32 %v352, 7
  %v354 = vsub.s32 %v351, %v353
  %v355 = vrot.slane %v336, %v354
  %356 = vrot.lane.b32.xlu0 %v355, 64
  %v357 = vpop.permute.xlu0 %356
  %v359 = vsel %vm345, %v357, %v194
  %360 = vst.msk [vmem:[#allocation3] sm:$0x3] %vm176, %v359
  %v361 = vsel %vm345, %v342, 0.0
  %s362 = scalar_lea.vmem %s3, 2
  %363 = vst.msk [vmem:[%s362] sm:$0x3] %vm176, %v361
  %v364 = vld [vmem:[#allocation2] sm:$0x3]
  %v365 = vld [vmem:[#allocation3] sm:$0x3]
  %s366 = scalar_lea.vmem %s0, 8
  %v367 = vld [vmem:[%s366] sm:$0xf]
  %v368 = vld [vmem:[%s2] sm:$0xff]
  %v369 = vld [vmem:[%s2 + $0x8] sm:$0xff]
  %v370 = vld [vmem:[%s2 + $0x10] sm:$0xff]
  %v371 = vld [vmem:[%s2 + $0x18] sm:$0xff]
  %v372 = vld [vmem:[%s2 + $0x20] sm:$0xff]
  %v373 = vld [vmem:[%s2 + $0x28] sm:$0xff]
  %v374 = vld [vmem:[%s2 + $0x30] sm:$0xff]
  %v375 = vld [vmem:[%s2 + $0x38] sm:$0xff]
  %v376 = vld [vmem:[%s2 + $0x40] sm:$0xff]
  %v377 = vld [vmem:[%s2 + $0x48] sm:$0xff]
  %v378 = vld [vmem:[%s2 + $0x50] sm:$0xff]
  %v379 = vld [vmem:[%s2 + $0x58] sm:$0xff]
  %v380 = vld [vmem:[%s2 + $0x60] sm:$0xff]
  %v381 = vld [vmem:[%s2 + $0x68] sm:$0xff]
  %v382 = vld [vmem:[%s2 + $0x70] sm:$0xff]
  %v383 = vld [vmem:[%s2 + $0x78] sm:$0xff]
  %v385 = vsel %vm42, %v364, 0
  %387 = vmatprep.subr.mxu0 %v369
  %388 = vmatpush1.msra.mxu0 %v368
  %389 = vmatprep.subr.mxu0 %v371
  %390 = vmatpush1.msra.mxu0 %v370
  %391 = vmatprep.subr.mxu0 %v373
  %392 = vmatpush1.msra.mxu0 %v372
  %393 = vmatprep.subr.mxu0 %v375
  %394 = vmatpush1.msra.mxu0 %v374
  %395 = vmatprep.subr.mxu0 %v377
  %396 = vmatpush1.msra.mxu0 %v376
  %397 = vmatprep.subr.mxu0 %v379
  %398 = vmatpush1.msra.mxu0 %v378
  %399 = vmatprep.subr.mxu0 %v381
  %400 = vmatpush1.msra.mxu0 %v380
  %401 = vmatprep.subr.mxu0 %v383
  %402 = vmatpush1.msra.mxu0 %v382
  %403 = vmatprep.subr.mxu0 0.0
  %404 = vmatpush1.msra.mxu0 0.0
  %405 = vmatprep.subr.mxu0 0.0
  %406 = vmatpush1.msra.mxu0 0.0
  %407 = vmatprep.subr.mxu0 0.0
  %408 = vmatpush1.msra.mxu0 0.0
  %409 = vmatprep.subr.mxu0 0.0
  %410 = vmatpush1.msra.mxu0 0.0
  %411 = vmatprep.subr.mxu0 0.0
  %412 = vmatpush1.msra.mxu0 0.0
  %413 = vmatprep.subr.mxu0 0.0
  %414 = vmatpush1.msra.mxu0 0.0
  %415 = vmatprep.subr.mxu0 0.0
  %416 = vmatpush1.msra.mxu0 0.0
  %417 = vmatprep.subr.mxu0 0.0
  %418 = vmatpush1.msra.mxu0 0.0
  %419 = vmatprep.subr.mxu0 0.0
  %420 = vmatpush1.msra.mxu0 0.0
  %421 = vmatprep.subr.mxu0 0.0
  %422 = vmatpush1.msra.mxu0 0.0
  %423 = vmatprep.subr.mxu0 0.0
  %424 = vmatpush1.msra.mxu0 0.0
  %425 = vmatprep.subr.mxu0 0.0
  %426 = vmatpush1.msra.mxu0 0.0
  %427 = vmatprep.subr.mxu0 0.0
  %428 = vmatpush1.msra.mxu0 0.0
  %429 = vmatprep.subr.mxu0 0.0
  %430 = vmatpush1.msra.mxu0 0.0
  %431 = vmatprep.subr.mxu0 0.0
  %432 = vmatpush1.msra.mxu0 0.0
  %433 = vmatprep.subr.mxu0 0.0
  %434 = vmatpush1.msra.mxu0 0.0
  %435 = vmatprep.subr.mxu0 0.0
  %436 = vmatpush1.msra.mxu0 0.0
  %437 = vmatprep.subr.mxu0 0.0
  %438 = vmatpush1.msra.mxu0 0.0
  %439 = vmatprep.subr.mxu0 0.0
  %440 = vmatpush1.msra.mxu0 0.0
  %441 = vmatprep.subr.mxu0 0.0
  %442 = vmatpush1.msra.mxu0 0.0
  %443 = vmatprep.subr.mxu0 0.0
  %444 = vmatpush1.msra.mxu0 0.0
  %445 = vmatprep.subr.mxu0 0.0
  %446 = vmatpush1.msra.mxu0 0.0
  %447 = vmatprep.subr.mxu0 0.0
  %448 = vmatpush1.msra.mxu0 0.0
  %449 = vmatprep.subr.mxu0 0.0
  %450 = vmatpush1.msra.mxu0 0.0
  %451 = vmatprep.mubr.f32.mxu0 0.0
  %452 = vmatmul.mubr.f32.gmra.mrb[0].mxu0 %v385
  %v453 = vpop.f32.mrb[0].mxu0
  %v454 = vadd.f32 0.0, %v453
  %v455 = vpop.f32.mrb[0].mxu0
  %v456 = vadd.f32 0.0, %v455
  %457 = vdwg.mxu0
  %v460 = vcombine.low %v454, %v456
  %v462 = vunpack.c.l.s4 1983009808
  %v463 = vunpack.c.0.s8 %v462
  %v464 = vlaneseq
  %v465 = vshrl.u32 %v464, 7
  %v466 = vsub.s32 %v463, %v465
  %v467 = vrot.slane %v460, %v466
  %v469 = vadd.f32 %v367, %v467
  %v470 = vxor.u32 %v469, 2147483648
  %v471 = vmul.f32 %v470, 1.442695
  %v472 = vpow.pop %v471
  %v473 = vadd.f32 %v472, 1.0
  %v474 = vrcp.pop %v473
  %v475 = vmul.f32 1.0, %v474
  %v477 = vrot.slane %v469, 2
  %v479 = vtanh.pop %v477
  %480 = vrot.lane.b32.xlu0 %v469, 64
  %v481 = vpop.permute.xlu0 %480
  %v482 = vrot.slane %v481, 2
  %v484 = vxor.u32 %v482, 2147483648
  %v485 = vmul.f32 %v484, 1.442695
  %v486 = vpow.pop %v485
  %v487 = vadd.f32 %v486, 1.0
  %v488 = vrcp.pop %v487
  %v489 = vmul.f32 1.0, %v488
  %v492 = vunpack.c.l.s4 1983009808
  %v493 = vunpack.c.0.s8 %v492
  %v494 = vlaneseq
  %v495 = vshrl.u32 %v494, 7
  %v496 = vsub.s32 %v493, %v495
  %v497 = vrot.slane %v365, %v496
  %498 = vrot.lane.b32.xlu0 %v497, 64
  %v499 = vpop.permute.xlu0 %498
  %v501 = vmul.f32 %v475, %v499
  %v502 = vmul.f32 %v475, %v479
  %504 = vrot.lane.b32.xlu0 %v502, 64
  %v505 = vpop.permute.xlu0 %504
  %v507 = vadd.f32 %v501, %v505
  %v508 = vtanh.pop %v507
  %510 = vrot.lane.b32.xlu0 %v508, 64
  %v511 = vpop.permute.xlu0 %510
  %v513 = vmul.f32 %v489, %v511
  %s514 = scalar_lea.vmem %s1, 4
  %v515 = vld [vmem:[%s514] sm:$0x3]
  %vm516 = vcmp.gt.f32.partialorder %v515, 0.5
  %v517 = vsel %vm516, %v513, %v364
  %518 = vst.msk [vmem:[#allocation2] sm:$0x3] %vm176, %v517
  %v521 = vunpack.c.l.s4 1983009808
  %v522 = vunpack.c.0.s8 %v521
  %v523 = vlaneseq
  %v524 = vshrl.u32 %v523, 7
  %v525 = vsub.s32 %v522, %v524
  %v526 = vrot.slane %v507, %v525
  %527 = vrot.lane.b32.xlu0 %v526, 64
  %v528 = vpop.permute.xlu0 %527
  %v530 = vsel %vm516, %v528, %v365
  %531 = vst.msk [vmem:[#allocation3] sm:$0x3] %vm176, %v530
  %v532 = vsel %vm516, %v513, 0.0
  %s533 = scalar_lea.vmem %s3, 4
  %534 = vst.msk [vmem:[%s533] sm:$0x3] %vm176, %v532
  %v535 = vld [vmem:[#allocation2] sm:$0x3]
  %v536 = vld [vmem:[#allocation3] sm:$0x3]
  %s537 = scalar_lea.vmem %s0, 12
  %v538 = vld [vmem:[%s537] sm:$0xf]
  %v539 = vld [vmem:[%s2] sm:$0xff]
  %v540 = vld [vmem:[%s2 + $0x8] sm:$0xff]
  %v541 = vld [vmem:[%s2 + $0x10] sm:$0xff]
  %v542 = vld [vmem:[%s2 + $0x18] sm:$0xff]
  %v543 = vld [vmem:[%s2 + $0x20] sm:$0xff]
  %v544 = vld [vmem:[%s2 + $0x28] sm:$0xff]
  %v545 = vld [vmem:[%s2 + $0x30] sm:$0xff]
  %v546 = vld [vmem:[%s2 + $0x38] sm:$0xff]
  %v547 = vld [vmem:[%s2 + $0x40] sm:$0xff]
  %v548 = vld [vmem:[%s2 + $0x48] sm:$0xff]
  %v549 = vld [vmem:[%s2 + $0x50] sm:$0xff]
  %v550 = vld [vmem:[%s2 + $0x58] sm:$0xff]
  %v551 = vld [vmem:[%s2 + $0x60] sm:$0xff]
  %v552 = vld [vmem:[%s2 + $0x68] sm:$0xff]
  %v553 = vld [vmem:[%s2 + $0x70] sm:$0xff]
  %v554 = vld [vmem:[%s2 + $0x78] sm:$0xff]
  %v556 = vsel %vm42, %v535, 0
  %558 = vmatprep.subr.mxu0 %v540
  %559 = vmatpush1.msra.mxu0 %v539
  %560 = vmatprep.subr.mxu0 %v542
  %561 = vmatpush1.msra.mxu0 %v541
  %562 = vmatprep.subr.mxu0 %v544
  %563 = vmatpush1.msra.mxu0 %v543
  %564 = vmatprep.subr.mxu0 %v546
  %565 = vmatpush1.msra.mxu0 %v545
  %566 = vmatprep.subr.mxu0 %v548
  %567 = vmatpush1.msra.mxu0 %v547
  %568 = vmatprep.subr.mxu0 %v550
  %569 = vmatpush1.msra.mxu0 %v549
  %570 = vmatprep.subr.mxu0 %v552
  %571 = vmatpush1.msra.mxu0 %v551
  %572 = vmatprep.subr.mxu0 %v554
  %573 = vmatpush1.msra.mxu0 %v553
  %574 = vmatprep.subr.mxu0 0.0
  %575 = vmatpush1.msra.mxu0 0.0
  %576 = vmatprep.subr.mxu0 0.0
  %577 = vmatpush1.msra.mxu0 0.0
  %578 = vmatprep.subr.mxu0 0.0
  %579 = vmatpush1.msra.mxu0 0.0
  %580 = vmatprep.subr.mxu0 0.0
  %581 = vmatpush1.msra.mxu0 0.0
  %582 = vmatprep.subr.mxu0 0.0
  %583 = vmatpush1.msra.mxu0 0.0
  %584 = vmatprep.subr.mxu0 0.0
  %585 = vmatpush1.msra.mxu0 0.0
  %586 = vmatprep.subr.mxu0 0.0
  %587 = vmatpush1.msra.mxu0 0.0
  %588 = vmatprep.subr.mxu0 0.0
  %589 = vmatpush1.msra.mxu0 0.0
  %590 = vmatprep.subr.mxu0 0.0
  %591 = vmatpush1.msra.mxu0 0.0
  %592 = vmatprep.subr.mxu0 0.0
  %593 = vmatpush1.msra.mxu0 0.0
  %594 = vmatprep.subr.mxu0 0.0
  %595 = vmatpush1.msra.mxu0 0.0
  %596 = vmatprep.subr.mxu0 0.0
  %597 = vmatpush1.msra.mxu0 0.0
  %598 = vmatprep.subr.mxu0 0.0
  %599 = vmatpush1.msra.mxu0 0.0
  %600 = vmatprep.subr.mxu0 0.0
  %601 = vmatpush1.msra.mxu0 0.0
  %602 = vmatprep.subr.mxu0 0.0
  %603 = vmatpush1.msra.mxu0 0.0
  %604 = vmatprep.subr.mxu0 0.0
  %605 = vmatpush1.msra.mxu0 0.0
  %606 = vmatprep.subr.mxu0 0.0
  %607 = vmatpush1.msra.mxu0 0.0
  %608 = vmatprep.subr.mxu0 0.0
  %609 = vmatpush1.msra.mxu0 0.0
  %610 = vmatprep.subr.mxu0 0.0
  %611 = vmatpush1.msra.mxu0 0.0
  %612 = vmatprep.subr.mxu0 0.0
  %613 = vmatpush1.msra.mxu0 0.0
  %614 = vmatprep.subr.mxu0 0.0
  %615 = vmatpush1.msra.mxu0 0.0
  %616 = vmatprep.subr.mxu0 0.0
  %617 = vmatpush1.msra.mxu0 0.0
  %618 = vmatprep.subr.mxu0 0.0
  %619 = vmatpush1.msra.mxu0 0.0
  %620 = vmatprep.subr.mxu0 0.0
  %621 = vmatpush1.msra.mxu0 0.0
  %622 = vmatprep.mubr.f32.mxu0 0.0
  %623 = vmatmul.mubr.f32.gmra.mrb[0].mxu0 %v556
  %v624 = vpop.f32.mrb[0].mxu0
  %v625 = vadd.f32 0.0, %v624
  %v626 = vpop.f32.mrb[0].mxu0
  %v627 = vadd.f32 0.0, %v626
  %628 = vdwg.mxu0
  %v631 = vcombine.low %v625, %v627
  %v633 = vunpack.c.l.s4 1983009808
  %v634 = vunpack.c.0.s8 %v633
  %v635 = vlaneseq
  %v636 = vshrl.u32 %v635, 7
  %v637 = vsub.s32 %v634, %v636
  %v638 = vrot.slane %v631, %v637
  %v640 = vadd.f32 %v538, %v638
  %v641 = vxor.u32 %v640, 2147483648
  %v642 = vmul.f32 %v641, 1.442695
  %v643 = vpow.pop %v642
  %v644 = vadd.f32 %v643, 1.0
  %v645 = vrcp.pop %v644
  %v646 = vmul.f32 1.0, %v645
  %v648 = vrot.slane %v640, 2
  %v650 = vtanh.pop %v648
  %651 = vrot.lane.b32.xlu0 %v640, 64
  %v652 = vpop.permute.xlu0 %651
  %v653 = vrot.slane %v652, 2
  %v655 = vxor.u32 %v653, 2147483648
  %v656 = vmul.f32 %v655, 1.442695
  %v657 = vpow.pop %v656
  %v658 = vadd.f32 %v657, 1.0
  %v659 = vrcp.pop %v658
  %v660 = vmul.f32 1.0, %v659
  %v663 = vunpack.c.l.s4 1983009808
  %v664 = vunpack.c.0.s8 %v663
  %v665 = vlaneseq
  %v666 = vshrl.u32 %v665, 7
  %v667 = vsub.s32 %v664, %v666
  %v668 = vrot.slane %v536, %v667
  %669 = vrot.lane.b32.xlu0 %v668, 64
  %v670 = vpop.permute.xlu0 %669
  %v672 = vmul.f32 %v646, %v670
  %v673 = vmul.f32 %v646, %v650
  %675 = vrot.lane.b32.xlu0 %v673, 64
  %v676 = vpop.permute.xlu0 %675
  %v678 = vadd.f32 %v672, %v676
  %v679 = vtanh.pop %v678
  %681 = vrot.lane.b32.xlu0 %v679, 64
  %v682 = vpop.permute.xlu0 %681
  %v684 = vmul.f32 %v660, %v682
  %s685 = scalar_lea.vmem %s1, 6
  %v686 = vld [vmem:[%s685] sm:$0x3]
  %vm687 = vcmp.gt.f32.partialorder %v686, 0.5
  %v688 = vsel %vm687, %v684, %v535
  %689 = vst.msk [vmem:[#allocation2] sm:$0x3] %vm176, %v688
  %v692 = vunpack.c.l.s4 1983009808
  %v693 = vunpack.c.0.s8 %v692
  %v694 = vlaneseq
  %v695 = vshrl.u32 %v694, 7
  %v696 = vsub.s32 %v693, %v695
  %v697 = vrot.slane %v678, %v696
  %698 = vrot.lane.b32.xlu0 %v697, 64
  %v699 = vpop.permute.xlu0 %698
  %v701 = vsel %vm687, %v699, %v536
  %702 = vst.msk [vmem:[#allocation3] sm:$0x3] %vm176, %v701
  %v703 = vsel %vm687, %v684, 0.0
  %s704 = scalar_lea.vmem %s3, 6
  %705 = vst.msk [vmem:[%s704] sm:$0x3] %vm176, %v703
  %v706 = vld [vmem:[#allocation2] sm:$0x3]
  %v707 = vld [vmem:[#allocation3] sm:$0x3]
  %s708 = scalar_lea.vmem %s0, 16
  %v709 = vld [vmem:[%s708] sm:$0xf]
  %v710 = vld [vmem:[%s2] sm:$0xff]
  %v711 = vld [vmem:[%s2 + $0x8] sm:$0xff]
  %v712 = vld [vmem:[%s2 + $0x10] sm:$0xff]
  %v713 = vld [vmem:[%s2 + $0x18] sm:$0xff]
  %v714 = vld [vmem:[%s2 + $0x20] sm:$0xff]
  %v715 = vld [vmem:[%s2 + $0x28] sm:$0xff]
  %v716 = vld [vmem:[%s2 + $0x30] sm:$0xff]
  %v717 = vld [vmem:[%s2 + $0x38] sm:$0xff]
  %v718 = vld [vmem:[%s2 + $0x40] sm:$0xff]
  %v719 = vld [vmem:[%s2 + $0x48] sm:$0xff]
  %v720 = vld [vmem:[%s2 + $0x50] sm:$0xff]
  %v721 = vld [vmem:[%s2 + $0x58] sm:$0xff]
  %v722 = vld [vmem:[%s2 + $0x60] sm:$0xff]
  %v723 = vld [vmem:[%s2 + $0x68] sm:$0xff]
  %v724 = vld [vmem:[%s2 + $0x70] sm:$0xff]
  %v725 = vld [vmem:[%s2 + $0x78] sm:$0xff]
  %v727 = vsel %vm42, %v706, 0
  %729 = vmatprep.subr.mxu0 %v711
  %730 = vmatpush1.msra.mxu0 %v710
  %731 = vmatprep.subr.mxu0 %v713
  %732 = vmatpush1.msra.mxu0 %v712
  %733 = vmatprep.subr.mxu0 %v715
  %734 = vmatpush1.msra.mxu0 %v714
  %735 = vmatprep.subr.mxu0 %v717
  %736 = vmatpush1.msra.mxu0 %v716
  %737 = vmatprep.subr.mxu0 %v719
  %738 = vmatpush1.msra.mxu0 %v718
  %739 = vmatprep.subr.mxu0 %v721
  %740 = vmatpush1.msra.mxu0 %v720
  %741 = vmatprep.subr.mxu0 %v723
  %742 = vmatpush1.msra.mxu0 %v722
  %743 = vmatprep.subr.mxu0 %v725
  %744 = vmatpush1.msra.mxu0 %v724
  %745 = vmatprep.subr.mxu0 0.0
  %746 = vmatpush1.msra.mxu0 0.0
  %747 = vmatprep.subr.mxu0 0.0
  %748 = vmatpush1.msra.mxu0 0.0
  %749 = vmatprep.subr.mxu0 0.0
  %750 = vmatpush1.msra.mxu0 0.0
  %751 = vmatprep.subr.mxu0 0.0
  %752 = vmatpush1.msra.mxu0 0.0
  %753 = vmatprep.subr.mxu0 0.0
  %754 = vmatpush1.msra.mxu0 0.0
  %755 = vmatprep.subr.mxu0 0.0
  %756 = vmatpush1.msra.mxu0 0.0
  %757 = vmatprep.subr.mxu0 0.0
  %758 = vmatpush1.msra.mxu0 0.0
  %759 = vmatprep.subr.mxu0 0.0
  %760 = vmatpush1.msra.mxu0 0.0
  %761 = vmatprep.subr.mxu0 0.0
  %762 = vmatpush1.msra.mxu0 0.0
  %763 = vmatprep.subr.mxu0 0.0
  %764 = vmatpush1.msra.mxu0 0.0
  %765 = vmatprep.subr.mxu0 0.0
  %766 = vmatpush1.msra.mxu0 0.0
  %767 = vmatprep.subr.mxu0 0.0
  %768 = vmatpush1.msra.mxu0 0.0
  %769 = vmatprep.subr.mxu0 0.0
  %770 = vmatpush1.msra.mxu0 0.0
  %771 = vmatprep.subr.mxu0 0.0
  %772 = vmatpush1.msra.mxu0 0.0
  %773 = vmatprep.subr.mxu0 0.0
  %774 = vmatpush1.msra.mxu0 0.0
  %775 = vmatprep.subr.mxu0 0.0
  %776 = vmatpush1.msra.mxu0 0.0
  %777 = vmatprep.subr.mxu0 0.0
  %778 = vmatpush1.msra.mxu0 0.0
  %779 = vmatprep.subr.mxu0 0.0
  %780 = vmatpush1.msra.mxu0 0.0
  %781 = vmatprep.subr.mxu0 0.0
  %782 = vmatpush1.msra.mxu0 0.0
  %783 = vmatprep.subr.mxu0 0.0
  %784 = vmatpush1.msra.mxu0 0.0
  %785 = vmatprep.subr.mxu0 0.0
  %786 = vmatpush1.msra.mxu0 0.0
  %787 = vmatprep.subr.mxu0 0.0
  %788 = vmatpush1.msra.mxu0 0.0
  %789 = vmatprep.subr.mxu0 0.0
  %790 = vmatpush1.msra.mxu0 0.0
  %791 = vmatprep.subr.mxu0 0.0
  %792 = vmatpush1.msra.mxu0 0.0
  %793 = vmatprep.mubr.f32.mxu0 0.0
  %794 = vmatmul.mubr.f32.gmra.mrb[0].mxu0 %v727
  %v795 = vpop.f32.mrb[0].mxu0
  %v796 = vadd.f32 0.0, %v795
  %v797 = vpop.f32.mrb[0].mxu0
  %v798 = vadd.f32 0.0, %v797
  %799 = vdwg.mxu0
  %v802 = vcombine.low %v796, %v798
  %v804 = vunpack.c.l.s4 1983009808
  %v805 = vunpack.c.0.s8 %v804
  %v806 = vlaneseq
  %v807 = vshrl.u32 %v806, 7
  %v808 = vsub.s32 %v805, %v807
  %v809 = vrot.slane %v802, %v808
  %v811 = vadd.f32 %v709, %v809
  %v812 = vxor.u32 %v811, 2147483648
  %v813 = vmul.f32 %v812, 1.442695
  %v814 = vpow.pop %v813
  %v815 = vadd.f32 %v814, 1.0
  %v816 = vrcp.pop %v815
  %v817 = vmul.f32 1.0, %v816
  %v819 = vrot.slane %v811, 2
  %v821 = vtanh.pop %v819
  %822 = vrot.lane.b32.xlu0 %v811, 64
  %v823 = vpop.permute.xlu0 %822
  %v824 = vrot.slane %v823, 2
  %v826 = vxor.u32 %v824, 2147483648
  %v827 = vmul.f32 %v826, 1.442695
  %v828 = vpow.pop %v827
  %v829 = vadd.f32 %v828, 1.0
  %v830 = vrcp.pop %v829
  %v831 = vmul.f32 1.0, %v830
  %v834 = vunpack.c.l.s4 1983009808
  %v835 = vunpack.c.0.s8 %v834
  %v836 = vlaneseq
  %v837 = vshrl.u32 %v836, 7
  %v838 = vsub.s32 %v835, %v837
  %v839 = vrot.slane %v707, %v838
  %840 = vrot.lane.b32.xlu0 %v839, 64
  %v841 = vpop.permute.xlu0 %840
  %v843 = vmul.f32 %v817, %v841
  %v844 = vmul.f32 %v817, %v821
  %846 = vrot.lane.b32.xlu0 %v844, 64
  %v847 = vpop.permute.xlu0 %846
  %v849 = vadd.f32 %v843, %v847
  %v850 = vtanh.pop %v849
  %852 = vrot.lane.b32.xlu0 %v850, 64
  %v853 = vpop.permute.xlu0 %852
  %v855 = vmul.f32 %v831, %v853
  %s856 = scalar_lea.vmem %s1, 8
  %v857 = vld [vmem:[%s856] sm:$0x3]
  %vm858 = vcmp.gt.f32.partialorder %v857, 0.5
  %v859 = vsel %vm858, %v855, %v706
  %860 = vst.msk [vmem:[#allocation2] sm:$0x3] %vm176, %v859
  %v863 = vunpack.c.l.s4 1983009808
  %v864 = vunpack.c.0.s8 %v863
  %v865 = vlaneseq
  %v866 = vshrl.u32 %v865, 7
  %v867 = vsub.s32 %v864, %v866
  %v868 = vrot.slane %v849, %v867
  %869 = vrot.lane.b32.xlu0 %v868, 64
  %v870 = vpop.permute.xlu0 %869
  %v872 = vsel %vm858, %v870, %v707
  %873 = vst.msk [vmem:[#allocation3] sm:$0x3] %vm176, %v872
  %v874 = vsel %vm858, %v855, 0.0
  %s875 = scalar_lea.vmem %s3, 8
  %876 = vst.msk [vmem:[%s875] sm:$0x3] %vm176, %v874
  %v877 = vld [vmem:[#allocation2] sm:$0x3]
  %v878 = vld [vmem:[#allocation3] sm:$0x3]
  %s879 = scalar_lea.vmem %s0, 20
  %v880 = vld [vmem:[%s879] sm:$0xf]
  %v881 = vld [vmem:[%s2] sm:$0xff]
  %v882 = vld [vmem:[%s2 + $0x8] sm:$0xff]
  %v883 = vld [vmem:[%s2 + $0x10] sm:$0xff]
  %v884 = vld [vmem:[%s2 + $0x18] sm:$0xff]
  %v885 = vld [vmem:[%s2 + $0x20] sm:$0xff]
  %v886 = vld [vmem:[%s2 + $0x28] sm:$0xff]
  %v887 = vld [vmem:[%s2 + $0x30] sm:$0xff]
  %v888 = vld [vmem:[%s2 + $0x38] sm:$0xff]
  %v889 = vld [vmem:[%s2 + $0x40] sm:$0xff]
  %v890 = vld [vmem:[%s2 + $0x48] sm:$0xff]
  %v891 = vld [vmem:[%s2 + $0x50] sm:$0xff]
  %v892 = vld [vmem:[%s2 + $0x58] sm:$0xff]
  %v893 = vld [vmem:[%s2 + $0x60] sm:$0xff]
  %v894 = vld [vmem:[%s2 + $0x68] sm:$0xff]
  %v895 = vld [vmem:[%s2 + $0x70] sm:$0xff]
  %v896 = vld [vmem:[%s2 + $0x78] sm:$0xff]
  %v898 = vsel %vm42, %v877, 0
  %900 = vmatprep.subr.mxu0 %v882
  %901 = vmatpush1.msra.mxu0 %v881
  %902 = vmatprep.subr.mxu0 %v884
  %903 = vmatpush1.msra.mxu0 %v883
  %904 = vmatprep.subr.mxu0 %v886
  %905 = vmatpush1.msra.mxu0 %v885
  %906 = vmatprep.subr.mxu0 %v888
  %907 = vmatpush1.msra.mxu0 %v887
  %908 = vmatprep.subr.mxu0 %v890
  %909 = vmatpush1.msra.mxu0 %v889
  %910 = vmatprep.subr.mxu0 %v892
  %911 = vmatpush1.msra.mxu0 %v891
  %912 = vmatprep.subr.mxu0 %v894
  %913 = vmatpush1.msra.mxu0 %v893
  %914 = vmatprep.subr.mxu0 %v896
  %915 = vmatpush1.msra.mxu0 %v895
  %916 = vmatprep.subr.mxu0 0.0
  %917 = vmatpush1.msra.mxu0 0.0
  %918 = vmatprep.subr.mxu0 0.0
  %919 = vmatpush1.msra.mxu0 0.0
  %920 = vmatprep.subr.mxu0 0.0
  %921 = vmatpush1.msra.mxu0 0.0
  %922 = vmatprep.subr.mxu0 0.0
  %923 = vmatpush1.msra.mxu0 0.0
  %924 = vmatprep.subr.mxu0 0.0
  %925 = vmatpush1.msra.mxu0 0.0
  %926 = vmatprep.subr.mxu0 0.0
  %927 = vmatpush1.msra.mxu0 0.0
  %928 = vmatprep.subr.mxu0 0.0
  %929 = vmatpush1.msra.mxu0 0.0
  %930 = vmatprep.subr.mxu0 0.0
  %931 = vmatpush1.msra.mxu0 0.0
  %932 = vmatprep.subr.mxu0 0.0
  %933 = vmatpush1.msra.mxu0 0.0
  %934 = vmatprep.subr.mxu0 0.0
  %935 = vmatpush1.msra.mxu0 0.0
  %936 = vmatprep.subr.mxu0 0.0
  %937 = vmatpush1.msra.mxu0 0.0
  %938 = vmatprep.subr.mxu0 0.0
  %939 = vmatpush1.msra.mxu0 0.0
  %940 = vmatprep.subr.mxu0 0.0
  %941 = vmatpush1.msra.mxu0 0.0
  %942 = vmatprep.subr.mxu0 0.0
  %943 = vmatpush1.msra.mxu0 0.0
  %944 = vmatprep.subr.mxu0 0.0
  %945 = vmatpush1.msra.mxu0 0.0
  %946 = vmatprep.subr.mxu0 0.0
  %947 = vmatpush1.msra.mxu0 0.0
  %948 = vmatprep.subr.mxu0 0.0
  %949 = vmatpush1.msra.mxu0 0.0
  %950 = vmatprep.subr.mxu0 0.0
  %951 = vmatpush1.msra.mxu0 0.0
  %952 = vmatprep.subr.mxu0 0.0
  %953 = vmatpush1.msra.mxu0 0.0
  %954 = vmatprep.subr.mxu0 0.0
  %955 = vmatpush1.msra.mxu0 0.0
  %956 = vmatprep.subr.mxu0 0.0
  %957 = vmatpush1.msra.mxu0 0.0
  %958 = vmatprep.subr.mxu0 0.0
  %959 = vmatpush1.msra.mxu0 0.0
  %960 = vmatprep.subr.mxu0 0.0
  %961 = vmatpush1.msra.mxu0 0.0
  %962 = vmatprep.subr.mxu0 0.0
  %963 = vmatpush1.msra.mxu0 0.0
  %964 = vmatprep.mubr.f32.mxu0 0.0
  %965 = vmatmul.mubr.f32.gmra.mrb[0].mxu0 %v898
  %v966 = vpop.f32.mrb[0].mxu0
  %v967 = vadd.f32 0.0, %v966
  %v968 = vpop.f32.mrb[0].mxu0
  %v969 = vadd.f32 0.0, %v968
  %970 = vdwg.mxu0
  %v973 = vcombine.low %v967, %v969
  %v975 = vunpack.c.l.s4 1983009808
  %v976 = vunpack.c.0.s8 %v975
  %v977 = vlaneseq
  %v978 = vshrl.u32 %v977, 7
  %v979 = vsub.s32 %v976, %v978
  %v980 = vrot.slane %v973, %v979
  %v982 = vadd.f32 %v880, %v980
  %v983 = vxor.u32 %v982, 2147483648
  %v984 = vmul.f32 %v983, 1.442695
  %v985 = vpow.pop %v984
  %v986 = vadd.f32 %v985, 1.0
  %v987 = vrcp.pop %v986
  %v988 = vmul.f32 1.0, %v987
  %v990 = vrot.slane %v982, 2
  %v992 = vtanh.pop %v990
  %993 = vrot.lane.b32.xlu0 %v982, 64
  %v994 = vpop.permute.xlu0 %993
  %v995 = vrot.slane %v994, 2
  %v997 = vxor.u32 %v995, 2147483648
  %v998 = vmul.f32 %v997, 1.442695
  %v999 = vpow.pop %v998
  %v1000 = vadd.f32 %v999, 1.0
  %v1001 = vrcp.pop %v1000
  %v1002 = vmul.f32 1.0, %v1001
  %v1005 = vunpack.c.l.s4 1983009808
  %v1006 = vunpack.c.0.s8 %v1005
  %v1007 = vlaneseq
  %v1008 = vshrl.u32 %v1007, 7
  %v1009 = vsub.s32 %v1006, %v1008
  %v1010 = vrot.slane %v878, %v1009
  %1011 = vrot.lane.b32.xlu0 %v1010, 64
  %v1012 = vpop.permute.xlu0 %1011
  %v1014 = vmul.f32 %v988, %v1012
  %v1015 = vmul.f32 %v988, %v992
  %1017 = vrot.lane.b32.xlu0 %v1015, 64
  %v1018 = vpop.permute.xlu0 %1017
  %v1020 = vadd.f32 %v1014, %v1018
  %v1021 = vtanh.pop %v1020
  %1023 = vrot.lane.b32.xlu0 %v1021, 64
  %v1024 = vpop.permute.xlu0 %1023
  %v1026 = vmul.f32 %v1002, %v1024
  %s1027 = scalar_lea.vmem %s1, 10
  %v1028 = vld [vmem:[%s1027] sm:$0x3]
  %vm1029 = vcmp.gt.f32.partialorder %v1028, 0.5
  %v1030 = vsel %vm1029, %v1026, %v877
  %1031 = vst.msk [vmem:[#allocation2] sm:$0x3] %vm176, %v1030
  %v1034 = vunpack.c.l.s4 1983009808
  %v1035 = vunpack.c.0.s8 %v1034
  %v1036 = vlaneseq
  %v1037 = vshrl.u32 %v1036, 7
  %v1038 = vsub.s32 %v1035, %v1037
  %v1039 = vrot.slane %v1020, %v1038
  %1040 = vrot.lane.b32.xlu0 %v1039, 64
  %v1041 = vpop.permute.xlu0 %1040
  %v1043 = vsel %vm1029, %v1041, %v878
  %1044 = vst.msk [vmem:[#allocation3] sm:$0x3] %vm176, %v1043
  %v1045 = vsel %vm1029, %v1026, 0.0
  %s1046 = scalar_lea.vmem %s3, 10
  %1047 = vst.msk [vmem:[%s1046] sm:$0x3] %vm176, %v1045
  %v1048 = vld [vmem:[#allocation2] sm:$0x3]
  %v1049 = vld [vmem:[#allocation3] sm:$0x3]
  %s1050 = scalar_lea.vmem %s0, 24
  %v1051 = vld [vmem:[%s1050] sm:$0xf]
  %v1052 = vld [vmem:[%s2] sm:$0xff]
  %v1053 = vld [vmem:[%s2 + $0x8] sm:$0xff]
  %v1054 = vld [vmem:[%s2 + $0x10] sm:$0xff]
  %v1055 = vld [vmem:[%s2 + $0x18] sm:$0xff]
  %v1056 = vld [vmem:[%s2 + $0x20] sm:$0xff]
  %v1057 = vld [vmem:[%s2 + $0x28] sm:$0xff]
  %v1058 = vld [vmem:[%s2 + $0x30] sm:$0xff]
  %v1059 = vld [vmem:[%s2 + $0x38] sm:$0xff]
  %v1060 = vld [vmem:[%s2 + $0x40] sm:$0xff]
  %v1061 = vld [vmem:[%s2 + $0x48] sm:$0xff]
  %v1062 = vld [vmem:[%s2 + $0x50] sm:$0xff]
  %v1063 = vld [vmem:[%s2 + $0x58] sm:$0xff]
  %v1064 = vld [vmem:[%s2 + $0x60] sm:$0xff]
  %v1065 = vld [vmem:[%s2 + $0x68] sm:$0xff]
  %v1066 = vld [vmem:[%s2 + $0x70] sm:$0xff]
  %v1067 = vld [vmem:[%s2 + $0x78] sm:$0xff]
  %v1069 = vsel %vm42, %v1048, 0
  %1071 = vmatprep.subr.mxu0 %v1053
  %1072 = vmatpush1.msra.mxu0 %v1052
  %1073 = vmatprep.subr.mxu0 %v1055
  %1074 = vmatpush1.msra.mxu0 %v1054
  %1075 = vmatprep.subr.mxu0 %v1057
  %1076 = vmatpush1.msra.mxu0 %v1056
  %1077 = vmatprep.subr.mxu0 %v1059
  %1078 = vmatpush1.msra.mxu0 %v1058
  %1079 = vmatprep.subr.mxu0 %v1061
  %1080 = vmatpush1.msra.mxu0 %v1060
  %1081 = vmatprep.subr.mxu0 %v1063
  %1082 = vmatpush1.msra.mxu0 %v1062
  %1083 = vmatprep.subr.mxu0 %v1065
  %1084 = vmatpush1.msra.mxu0 %v1064
  %1085 = vmatprep.subr.mxu0 %v1067
  %1086 = vmatpush1.msra.mxu0 %v1066
  %1087 = vmatprep.subr.mxu0 0.0
  %1088 = vmatpush1.msra.mxu0 0.0
  %1089 = vmatprep.subr.mxu0 0.0
  %1090 = vmatpush1.msra.mxu0 0.0
  %1091 = vmatprep.subr.mxu0 0.0
  %1092 = vmatpush1.msra.mxu0 0.0
  %1093 = vmatprep.subr.mxu0 0.0
  %1094 = vmatpush1.msra.mxu0 0.0
  %1095 = vmatprep.subr.mxu0 0.0
  %1096 = vmatpush1.msra.mxu0 0.0
  %1097 = vmatprep.subr.mxu0 0.0
  %1098 = vmatpush1.msra.mxu0 0.0
  %1099 = vmatprep.subr.mxu0 0.0
  %1100 = vmatpush1.msra.mxu0 0.0
  %1101 = vmatprep.subr.mxu0 0.0
  %1102 = vmatpush1.msra.mxu0 0.0
  %1103 = vmatprep.subr.mxu0 0.0
  %1104 = vmatpush1.msra.mxu0 0.0
  %1105 = vmatprep.subr.mxu0 0.0
  %1106 = vmatpush1.msra.mxu0 0.0
  %1107 = vmatprep.subr.mxu0 0.0
  %1108 = vmatpush1.msra.mxu0 0.0
  %1109 = vmatprep.subr.mxu0 0.0
  %1110 = vmatpush1.msra.mxu0 0.0
  %1111 = vmatprep.subr.mxu0 0.0
  %1112 = vmatpush1.msra.mxu0 0.0
  %1113 = vmatprep.subr.mxu0 0.0
  %1114 = vmatpush1.msra.mxu0 0.0
  %1115 = vmatprep.subr.mxu0 0.0
  %1116 = vmatpush1.msra.mxu0 0.0
  %1117 = vmatprep.subr.mxu0 0.0
  %1118 = vmatpush1.msra.mxu0 0.0
  %1119 = vmatprep.subr.mxu0 0.0
  %1120 = vmatpush1.msra.mxu0 0.0
  %1121 = vmatprep.subr.mxu0 0.0
  %1122 = vmatpush1.msra.mxu0 0.0
  %1123 = vmatprep.subr.mxu0 0.0
  %1124 = vmatpush1.msra.mxu0 0.0
  %1125 = vmatprep.subr.mxu0 0.0
  %1126 = vmatpush1.msra.mxu0 0.0
  %1127 = vmatprep.subr.mxu0 0.0
  %1128 = vmatpush1.msra.mxu0 0.0
  %1129 = vmatprep.subr.mxu0 0.0
  %1130 = vmatpush1.msra.mxu0 0.0
  %1131 = vmatprep.subr.mxu0 0.0
  %1132 = vmatpush1.msra.mxu0 0.0
  %1133 = vmatprep.subr.mxu0 0.0
  %1134 = vmatpush1.msra.mxu0 0.0
  %1135 = vmatprep.mubr.f32.mxu0 0.0
  %1136 = vmatmul.mubr.f32.gmra.mrb[0].mxu0 %v1069
  %v1137 = vpop.f32.mrb[0].mxu0
  %v1138 = vadd.f32 0.0, %v1137
  %v1139 = vpop.f32.mrb[0].mxu0
  %v1140 = vadd.f32 0.0, %v1139
  %1141 = vdwg.mxu0
  %v1144 = vcombine.low %v1138, %v1140
  %v1146 = vunpack.c.l.s4 1983009808
  %v1147 = vunpack.c.0.s8 %v1146
  %v1148 = vlaneseq
  %v1149 = vshrl.u32 %v1148, 7
  %v1150 = vsub.s32 %v1147, %v1149
  %v1151 = vrot.slane %v1144, %v1150
  %v1153 = vadd.f32 %v1051, %v1151
  %v1154 = vxor.u32 %v1153, 2147483648
  %v1155 = vmul.f32 %v1154, 1.442695
  %v1156 = vpow.pop %v1155
  %v1157 = vadd.f32 %v1156, 1.0
  %v1158 = vrcp.pop %v1157
  %v1159 = vmul.f32 1.0, %v1158
  %v1161 = vrot.slane %v1153, 2
  %v1163 = vtanh.pop %v1161
  %1164 = vrot.lane.b32.xlu0 %v1153, 64
  %v1165 = vpop.permute.xlu0 %1164
  %v1166 = vrot.slane %v1165, 2
  %v1168 = vxor.u32 %v1166, 2147483648
  %v1169 = vmul.f32 %v1168, 1.442695
  %v1170 = vpow.pop %v1169
  %v1171 = vadd.f32 %v1170, 1.0
  %v1172 = vrcp.pop %v1171
  %v1173 = vmul.f32 1.0, %v1172
  %v1176 = vunpack.c.l.s4 1983009808
  %v1177 = vunpack.c.0.s8 %v1176
  %v1178 = vlaneseq
  %v1179 = vshrl.u32 %v1178, 7
  %v1180 = vsub.s32 %v1177, %v1179
  %v1181 = vrot.slane %v1049, %v1180
  %1182 = vrot.lane.b32.xlu0 %v1181, 64
  %v1183 = vpop.permute.xlu0 %1182
  %v1185 = vmul.f32 %v1159, %v1183
  %v1186 = vmul.f32 %v1159, %v1163
  %1188 = vrot.lane.b32.xlu0 %v1186, 64
  %v1189 = vpop.permute.xlu0 %1188
  %v1191 = vadd.f32 %v1185, %v1189
  %v1192 = vtanh.pop %v1191
  %1194 = vrot.lane.b32.xlu0 %v1192, 64
  %v1195 = vpop.permute.xlu0 %1194
  %v1197 = vmul.f32 %v1173, %v1195
  %s1198 = scalar_lea.vmem %s1, 12
  %v1199 = vld [vmem:[%s1198] sm:$0x3]
  %vm1200 = vcmp.gt.f32.partialorder %v1199, 0.5
  %v1201 = vsel %vm1200, %v1197, %v1048
  %1202 = vst.msk [vmem:[#allocation2] sm:$0x3] %vm176, %v1201
  %v1205 = vunpack.c.l.s4 1983009808
  %v1206 = vunpack.c.0.s8 %v1205
  %v1207 = vlaneseq
  %v1208 = vshrl.u32 %v1207, 7
  %v1209 = vsub.s32 %v1206, %v1208
  %v1210 = vrot.slane %v1191, %v1209
  %1211 = vrot.lane.b32.xlu0 %v1210, 64
  %v1212 = vpop.permute.xlu0 %1211
  %v1214 = vsel %vm1200, %v1212, %v1049
  %1215 = vst.msk [vmem:[#allocation3] sm:$0x3] %vm176, %v1214
  %v1216 = vsel %vm1200, %v1197, 0.0
  %s1217 = scalar_lea.vmem %s3, 12
  %1218 = vst.msk [vmem:[%s1217] sm:$0x3] %vm176, %v1216
  %v1219 = vld [vmem:[#allocation2] sm:$0x3]
  %v1220 = vld [vmem:[#allocation3] sm:$0x3]
  %s1221 = scalar_lea.vmem %s0, 28
  %v1222 = vld [vmem:[%s1221] sm:$0xf]
  %v1223 = vld [vmem:[%s2] sm:$0xff]
  %v1224 = vld [vmem:[%s2 + $0x8] sm:$0xff]
  %v1225 = vld [vmem:[%s2 + $0x10] sm:$0xff]
  %v1226 = vld [vmem:[%s2 + $0x18] sm:$0xff]
  %v1227 = vld [vmem:[%s2 + $0x20] sm:$0xff]
  %v1228 = vld [vmem:[%s2 + $0x28] sm:$0xff]
  %v1229 = vld [vmem:[%s2 + $0x30] sm:$0xff]
  %v1230 = vld [vmem:[%s2 + $0x38] sm:$0xff]
  %v1231 = vld [vmem:[%s2 + $0x40] sm:$0xff]
  %v1232 = vld [vmem:[%s2 + $0x48] sm:$0xff]
  %v1233 = vld [vmem:[%s2 + $0x50] sm:$0xff]
  %v1234 = vld [vmem:[%s2 + $0x58] sm:$0xff]
  %v1235 = vld [vmem:[%s2 + $0x60] sm:$0xff]
  %v1236 = vld [vmem:[%s2 + $0x68] sm:$0xff]
  %v1237 = vld [vmem:[%s2 + $0x70] sm:$0xff]
  %v1238 = vld [vmem:[%s2 + $0x78] sm:$0xff]
  %v1240 = vsel %vm42, %v1219, 0
  %1242 = vmatprep.subr.mxu0 %v1224
  %1243 = vmatpush1.msra.mxu0 %v1223
  %1244 = vmatprep.subr.mxu0 %v1226
  %1245 = vmatpush1.msra.mxu0 %v1225
  %1246 = vmatprep.subr.mxu0 %v1228
  %1247 = vmatpush1.msra.mxu0 %v1227
  %1248 = vmatprep.subr.mxu0 %v1230
  %1249 = vmatpush1.msra.mxu0 %v1229
  %1250 = vmatprep.subr.mxu0 %v1232
  %1251 = vmatpush1.msra.mxu0 %v1231
  %1252 = vmatprep.subr.mxu0 %v1234
  %1253 = vmatpush1.msra.mxu0 %v1233
  %1254 = vmatprep.subr.mxu0 %v1236
  %1255 = vmatpush1.msra.mxu0 %v1235
  %1256 = vmatprep.subr.mxu0 %v1238
  %1257 = vmatpush1.msra.mxu0 %v1237
  %1258 = vmatprep.subr.mxu0 0.0
  %1259 = vmatpush1.msra.mxu0 0.0
  %1260 = vmatprep.subr.mxu0 0.0
  %1261 = vmatpush1.msra.mxu0 0.0
  %1262 = vmatprep.subr.mxu0 0.0
  %1263 = vmatpush1.msra.mxu0 0.0
  %1264 = vmatprep.subr.mxu0 0.0
  %1265 = vmatpush1.msra.mxu0 0.0
  %1266 = vmatprep.subr.mxu0 0.0
  %1267 = vmatpush1.msra.mxu0 0.0
  %1268 = vmatprep.subr.mxu0 0.0
  %1269 = vmatpush1.msra.mxu0 0.0
  %1270 = vmatprep.subr.mxu0 0.0
  %1271 = vmatpush1.msra.mxu0 0.0
  %1272 = vmatprep.subr.mxu0 0.0
  %1273 = vmatpush1.msra.mxu0 0.0
  %1274 = vmatprep.subr.mxu0 0.0
  %1275 = vmatpush1.msra.mxu0 0.0
  %1276 = vmatprep.subr.mxu0 0.0
  %1277 = vmatpush1.msra.mxu0 0.0
  %1278 = vmatprep.subr.mxu0 0.0
  %1279 = vmatpush1.msra.mxu0 0.0
  %1280 = vmatprep.subr.mxu0 0.0
  %1281 = vmatpush1.msra.mxu0 0.0
  %1282 = vmatprep.subr.mxu0 0.0
  %1283 = vmatpush1.msra.mxu0 0.0
  %1284 = vmatprep.subr.mxu0 0.0
  %1285 = vmatpush1.msra.mxu0 0.0
  %1286 = vmatprep.subr.mxu0 0.0
  %1287 = vmatpush1.msra.mxu0 0.0
  %1288 = vmatprep.subr.mxu0 0.0
  %1289 = vmatpush1.msra.mxu0 0.0
  %1290 = vmatprep.subr.mxu0 0.0
  %1291 = vmatpush1.msra.mxu0 0.0
  %1292 = vmatprep.subr.mxu0 0.0
  %1293 = vmatpush1.msra.mxu0 0.0
  %1294 = vmatprep.subr.mxu0 0.0
  %1295 = vmatpush1.msra.mxu0 0.0
  %1296 = vmatprep.subr.mxu0 0.0
  %1297 = vmatpush1.msra.mxu0 0.0
  %1298 = vmatprep.subr.mxu0 0.0
  %1299 = vmatpush1.msra.mxu0 0.0
  %1300 = vmatprep.subr.mxu0 0.0
  %1301 = vmatpush1.msra.mxu0 0.0
  %1302 = vmatprep.subr.mxu0 0.0
  %1303 = vmatpush1.msra.mxu0 0.0
  %1304 = vmatprep.subr.mxu0 0.0
  %1305 = vmatpush1.msra.mxu0 0.0
  %1306 = vmatprep.mubr.f32.mxu0 0.0
  %1307 = vmatmul.mubr.f32.gmra.mrb[0].mxu0 %v1240
  %v1308 = vpop.f32.mrb[0].mxu0
  %v1309 = vadd.f32 0.0, %v1308
  %v1310 = vpop.f32.mrb[0].mxu0
  %v1311 = vadd.f32 0.0, %v1310
  %1312 = vdwg.mxu0
  %v1315 = vcombine.low %v1309, %v1311
  %v1317 = vunpack.c.l.s4 1983009808
  %v1318 = vunpack.c.0.s8 %v1317
  %v1319 = vlaneseq
  %v1320 = vshrl.u32 %v1319, 7
  %v1321 = vsub.s32 %v1318, %v1320
  %v1322 = vrot.slane %v1315, %v1321
  %v1324 = vadd.f32 %v1222, %v1322
  %v1325 = vxor.u32 %v1324, 2147483648
  %v1326 = vmul.f32 %v1325, 1.442695
  %v1327 = vpow.pop %v1326
  %v1328 = vadd.f32 %v1327, 1.0
  %v1329 = vrcp.pop %v1328
  %v1330 = vmul.f32 1.0, %v1329
  %v1332 = vrot.slane %v1324, 2
  %v1334 = vtanh.pop %v1332
  %1335 = vrot.lane.b32.xlu0 %v1324, 64
  %v1336 = vpop.permute.xlu0 %1335
  %v1337 = vrot.slane %v1336, 2
  %v1339 = vxor.u32 %v1337, 2147483648
  %v1340 = vmul.f32 %v1339, 1.442695
  %v1341 = vpow.pop %v1340
  %v1342 = vadd.f32 %v1341, 1.0
  %v1343 = vrcp.pop %v1342
  %v1344 = vmul.f32 1.0, %v1343
  %v1347 = vunpack.c.l.s4 1983009808
  %v1348 = vunpack.c.0.s8 %v1347
  %v1349 = vlaneseq
  %v1350 = vshrl.u32 %v1349, 7
  %v1351 = vsub.s32 %v1348, %v1350
  %v1352 = vrot.slane %v1220, %v1351
  %1353 = vrot.lane.b32.xlu0 %v1352, 64
  %v1354 = vpop.permute.xlu0 %1353
  %v1356 = vmul.f32 %v1330, %v1354
  %v1357 = vmul.f32 %v1330, %v1334
  %1359 = vrot.lane.b32.xlu0 %v1357, 64
  %v1360 = vpop.permute.xlu0 %1359
  %v1362 = vadd.f32 %v1356, %v1360
  %v1363 = vtanh.pop %v1362
  %1365 = vrot.lane.b32.xlu0 %v1363, 64
  %v1366 = vpop.permute.xlu0 %1365
  %v1368 = vmul.f32 %v1344, %v1366
  %s1369 = scalar_lea.vmem %s1, 14
  %v1370 = vld [vmem:[%s1369] sm:$0x3]
  %vm1371 = vcmp.gt.f32.partialorder %v1370, 0.5
  %v1372 = vsel %vm1371, %v1368, %v1219
  %1373 = vst.msk [vmem:[#allocation2] sm:$0x3] %vm176, %v1372
  %v1376 = vunpack.c.l.s4 1983009808
  %v1377 = vunpack.c.0.s8 %v1376
  %v1378 = vlaneseq
  %v1379 = vshrl.u32 %v1378, 7
  %v1380 = vsub.s32 %v1377, %v1379
  %v1381 = vrot.slane %v1362, %v1380
  %1382 = vrot.lane.b32.xlu0 %v1381, 64
  %v1383 = vpop.permute.xlu0 %1382
  %v1385 = vsel %vm1371, %v1383, %v1220
  %1386 = vst.msk [vmem:[#allocation3] sm:$0x3] %vm176, %v1385
  %v1387 = vsel %vm1371, %v1368, 0.0
  %s1388 = scalar_lea.vmem %s3, 14
  %1389 = vst.msk [vmem:[%s1388] sm:$0x3] %vm176, %v1387
  %v1390 = vld [vmem:[#allocation2] sm:$0x3]
  %1391 = vst.msk [vmem:[%s4] sm:$0x3] %vm176, %v1390
  // Predicated region
  $region18: #{bilstm_sequence_to_vector.2} parent=0 // pred_check
    _
  $region19: #{bilstm_sequence_to_vector.2} parent=0 // pred_check_branch
    %1393 = sbr.rel (0) target = $region21
  $region20: #{bilstm_sequence_to_vector.2} parent=0 // pred_region
    _
  $region21: #{bilstm_sequence_to_vector.2} parent=0 // pred_fallthru
    _
  // Predicated region
  $region22: #{bilstm_sequence_to_vector.2} parent=0 // pred_check
    _
  $region23: #{bilstm_sequence_to_vector.2} parent=0 // pred_check_branch
    %1395 = sbr.rel (0) target = $region25
  $region24: #{bilstm_sequence_to_vector.2} parent=0 // pred_region
    _
  $region25: #{bilstm_sequence_to_vector.2} parent=0 // pred_fallthru
    _
  // Predicated region
  $region26: #{bilstm_sequence_to_vector.2} parent=0 // pred_check
    _
  $region27: #{bilstm_sequence_to_vector.2} parent=0 // pred_check_branch
    %1397 = sbr.rel (0) target = $region29
  $region28: #{bilstm_sequence_to_vector.2} parent=0 // pred_region
    _
  $region29: #{bilstm_sequence_to_vector.2} parent=0 // pred_fallthru
    _
  // Predicated region
  $region30: #{bilstm_sequence_to_vector.2} parent=0 // pred_check
    _
  $region31: #{bilstm_sequence_to_vector.2} parent=0 // pred_check_branch
    %1399 = sbr.rel (0) target = $region33
  $region32: #{bilstm_sequence_to_vector.2} parent=0 // pred_region
    _
  $region33: #{bilstm_sequence_to_vector.2} parent=0 // pred_fallthru
    _

</llo_original>
